<compile_context>
chip_gen: v6e
topology: v6e:2x2x1
jax: 0.10.0
libtpu: 0.0.40
codegen_flags: <defaults>
</compile_context>

<pallas_src>
import functools
import math

import jax
import jax.numpy as jnp
from jax.experimental import pallas as pl
from jax.experimental.pallas import tpu as pltpu


# ----------------------------------------------------------------------------
# Chip info / tiling helpers
# ----------------------------------------------------------------------------
_VMEM_CAP_CACHE = [None]


def _vmem_cap():
    if _VMEM_CAP_CACHE[0] is None:
        try:
            _VMEM_CAP_CACHE[0] = int(pltpu.get_tpu_info().vmem_capacity_bytes)
        except Exception:
            _VMEM_CAP_CACHE[0] = 64 * 2 ** 20      # conservative (v7x-sized)
    return _VMEM_CAP_CACHE[0]


def _round_up(a, b):
    return (a + b - 1) // b * b


def _row_tiling(m, cap=512):
    """Row tile up to `cap` (per-grid-step overhead dominates at small tiles)."""
    tm = min(cap, _round_up(m, 8))
    m_pad = _round_up(m, tm)
    return tm, m_pad


def _elem_row_tile(m_pad):
    """Row tile for elementwise kernels; always divides m_pad (no re-pad)."""
    cap = 1024 if _vmem_cap() >= 96 * 2 ** 20 else 512   # v5e/v6e: 1024, v7x: 512
    for t in (1024, 512, 256, 128, 64, 32, 16, 8):
        if t <= cap and m_pad % t == 0:
            return t
    return m_pad


def _col_tiling(n):
    """N tile: full when small; 256-wide (2x256x256 MXU) when it divides N."""
    if n > 256 and n % 256 == 0:
        return 256
    return n


def _pad_rows(x, m_pad, axis=0):
    if x.shape[axis] == m_pad:
        return x
    pads = [(0, 0)] * x.ndim
    pads[axis] = (0, m_pad - x.shape[axis])
    return jnp.pad(x, pads)


def _compiler_params(block_bytes, grid_rank):
    # 2x per pipelined array (double buffering), clamped to ~75% of physical
    # VMEM so we never over-request on v7x's 64 MiB TensorCore.
    cap = max(32 * 2 ** 20, int(0.75 * _vmem_cap()))
    vmem = int(min(cap, max(32 * 2 ** 20, 2 * block_bytes)))
    return pltpu.CompilerParams(
        dimension_semantics=("parallel",) * grid_rank,
        vmem_limit_bytes=vmem)


# ----------------------------------------------------------------------------
# Pallas kernels
# ----------------------------------------------------------------------------
def _matmul_stats_kernel(x_ref, w_ref, o_ref, st_ref):
    """y = x @ w (bf16 in, f32 acc); bf16 output + per-block column sum/sumsq."""
    y = jnp.dot(x_ref[...], w_ref[...], preferred_element_type=jnp.float32)
    o_ref[...] = y.astype(o_ref.dtype)
    st_ref[0, 0:1, :] = jnp.sum(y, axis=0, keepdims=True)
    st_ref[0, 1:2, :] = jnp.sum(y * y, axis=0, keepdims=True)


def _affine_relu_matmul_stats_kernel(tm, m_valid, need_mask,
                                     x_ref, s_ref, b_ref, w_ref, o_ref, st_ref):
    """Previous layer's BN affine + ReLU fused into the matmul prologue."""
    x = x_ref[...].astype(jnp.float32) * s_ref[...] + b_ref[...]
    x = jnp.maximum(x, 0.0)
    if need_mask:
        # Keep padded rows exactly zero so the fused stats stay unbiased.
        rows = jax.lax.broadcasted_iota(jnp.int32, x.shape, 0) + pl.program_id(0) * tm
        x = jnp.where(rows < m_valid, x, 0.0)
    y = jnp.dot(x.astype(jnp.bfloat16), w_ref[...],
                preferred_element_type=jnp.float32)
    o_ref[...] = y.astype(o_ref.dtype)
    st_ref[0, 0:1, :] = jnp.sum(y, axis=0, keepdims=True)
    st_ref[0, 1:2, :] = jnp.sum(y * y, axis=0, keepdims=True)


def _bn_relu_kernel(x_ref, s_ref, b_ref, o_ref):
    """out = relu(x * scale + shift); f32 math, bf16 streams."""
    out = jnp.maximum(x_ref[...].astype(jnp.float32) * s_ref[...] + b_ref[...], 0.0)
    o_ref[...] = out.astype(o_ref.dtype)


def _bn_add_relu_kernel(y_ref, s_ref, b_ref, r_ref, o_ref):
    """out = relu(y*scale + shift + residual) (identity shortcut, bf16 residual)."""
    a = y_ref[...].astype(jnp.float32) * s_ref[...] + b_ref[...]
    o_ref[...] = jnp.maximum(a + r_ref[...].astype(jnp.float32), 0.0).astype(o_ref.dtype)


def _dual_bn_add_relu_kernel(y_ref, s_ref, b_ref, r_ref, rs_ref, rb_ref, o_ref):
    """out = relu(y*s + b + r*rs + rb): both BN affines fused into the add."""
    a = y_ref[...].astype(jnp.float32) * s_ref[...] + b_ref[...]
    r = r_ref[...].astype(jnp.float32) * rs_ref[...] + rb_ref[...]
    o_ref[...] = jnp.maximum(a + r, 0.0).astype(o_ref.dtype)


# ----------------------------------------------------------------------------
# Pallas wrappers
# ----------------------------------------------------------------------------
def _finish_stats(st, count):
    # Tiny partial-stats reduction (grid_m x N) in JAX; padded rows contribute
    # exactly zero, divisor is the true row count.
    mean = jnp.sum(st[:, 0, :], axis=0) / float(count)
    var = jnp.maximum(jnp.sum(st[:, 1, :], axis=0) / float(count) - mean * mean, 0.0)
    return mean, var


def conv_bn_stats(x, w):
    """Dense conv-as-matmul with fused BN batch statistics.

    x: (M, K) bf16, w: (K, N) bf16 -> y (M_pad, N) bf16, mean (N,), var (N,).
    """
    m, k = x.shape
    n = w.shape[1]
    tm, m_pad = _row_tiling(m)
    tn = _col_tiling(n)
    xp = _pad_rows(x, m_pad)
    grid = (m_pad // tm, n // tn)
    block_bytes = tm * k * 2 + k * tn * 2 + tm * tn * 2 + 2 * tn * 4
    y, st = pl.pallas_call(
        _matmul_stats_kernel,
        out_shape=(jax.ShapeDtypeStruct((m_pad, n), jnp.bfloat16),
                   jax.ShapeDtypeStruct((grid[0], 2, n), jnp.float32)),
        grid=grid,
        in_specs=[pl.BlockSpec((tm, k), lambda i, j: (i, 0)),
                  pl.BlockSpec((k, tn), lambda i, j: (0, j))],
        out_specs=(pl.BlockSpec((tm, tn), lambda i, j: (i, j)),
                   pl.BlockSpec((1, 2, tn), lambda i, j: (i, 0, j))),
        compiler_params=_compiler_params(block_bytes, 2),
    )(xp, w)
    mean, var = _finish_stats(st, m)
    return y, mean, var


def affine_relu_conv_bn_stats(x, scale, shift, w, m_valid):
    """relu(x*scale + shift) @ w, affine fused into the matmul prologue."""
    m_in, k = x.shape
    n = w.shape[1]
    tm, m_pad = _row_tiling(m_in)
    tn = _col_tiling(n)
    xp = _pad_rows(x, m_pad)
    need_mask = (m_pad != m_valid)
    grid = (m_pad // tm, n // tn)
    block_bytes = tm * k * 2 + 2 * k * 4 + k * tn * 2 + tm * tn * 2 + 2 * tn * 4
    y, st = pl.pallas_call(
        functools.partial(_affine_relu_matmul_stats_kernel, tm, m_valid, need_mask),
        out_shape=(jax.ShapeDtypeStruct((m_pad, n), jnp.bfloat16),
                   jax.ShapeDtypeStruct((grid[0], 2, n), jnp.float32)),
        grid=grid,
        in_specs=[pl.BlockSpec((tm, k), lambda i, j: (i, 0)),
                  pl.BlockSpec((1, k), lambda i, j: (0, 0)),
                  pl.BlockSpec((1, k), lambda i, j: (0, 0)),
                  pl.BlockSpec((k, tn), lambda i, j: (0, j))],
        out_specs=(pl.BlockSpec((tm, tn), lambda i, j: (i, j)),
                   pl.BlockSpec((1, 2, tn), lambda i, j: (i, 0, j))),
        compiler_params=_compiler_params(block_bytes, 2),
    )(xp, scale, shift, w)
    mean, var = _finish_stats(st, m_valid)
    return y, mean, var


def bn_relu(y, scale, shift, out_dtype=jnp.bfloat16):
    """Standalone BN affine + ReLU (bf16 in / bf16 out, f32 math)."""
    m_pad, c = y.shape
    tm = _elem_row_tile(m_pad)
    grid = (m_pad // tm,)
    block_bytes = 2 * tm * c * 2 + 2 * c * 4
    return pl.pallas_call(
        _bn_relu_kernel,
        out_shape=jax.ShapeDtypeStruct((m_pad, c), out_dtype),
        grid=grid,
        in_specs=[pl.BlockSpec((tm, c), lambda i: (i, 0)),
                  pl.BlockSpec((1, c), lambda i: (0, 0)),
                  pl.BlockSpec((1, c), lambda i: (0, 0))],
        out_specs=pl.BlockSpec((tm, c), lambda i: (i, 0)),
        compiler_params=_compiler_params(block_bytes, 1),
    )(y, scale, shift)


def bn_add_relu(y, scale, shift, residual, out_dtype=jnp.float32):
    """out = relu(bn3(y) + residual) with bf16 residual stream."""
    m_pad, c = y.shape
    tm = _elem_row_tile(m_pad)
    rp = _pad_rows(residual, m_pad)
    grid = (m_pad // tm,)
    block_bytes = 2 * tm * c * 2 + tm * c * 4 + 2 * c * 4
    return pl.pallas_call(
        _bn_add_relu_kernel,
        out_shape=jax.ShapeDtypeStruct((m_pad, c), out_dtype),
        grid=grid,
        in_specs=[pl.BlockSpec((tm, c), lambda i: (i, 0)),
                  pl.BlockSpec((1, c), lambda i: (0, 0)),
                  pl.BlockSpec((1, c), lambda i: (0, 0)),
                  pl.BlockSpec((tm, c), lambda i: (i, 0))],
        out_specs=pl.BlockSpec((tm, c), lambda i: (i, 0)),
        compiler_params=_compiler_params(block_bytes, 1),
    )(y, scale, shift, rp)


def dual_bn_add_relu(y, scale, shift, r, rscale, rshift, out_dtype=jnp.float32):
    """out = relu(bn3(y) + bn_d(r)): downsample BN affine fused in."""
    m_pad, c = y.shape
    tm = _elem_row_tile(m_pad)
    rp = _pad_rows(r, m_pad)
    grid = (m_pad // tm,)
    block_bytes = 2 * tm * c * 2 + tm * c * 4 + 4 * c * 4
    return pl.pallas_call(
        _dual_bn_add_relu_kernel,
        out_shape=jax.ShapeDtypeStruct((m_pad, c), out_dtype),
        grid=grid,
        in_specs=[pl.BlockSpec((tm, c), lambda i: (i, 0)),
                  pl.BlockSpec((1, c), lambda i: (0, 0)),
                  pl.BlockSpec((1, c), lambda i: (0, 0)),
                  pl.BlockSpec((tm, c), lambda i: (i, 0)),
                  pl.BlockSpec((1, c), lambda i: (0, 0)),
                  pl.BlockSpec((1, c), lambda i: (0, 0))],
        out_specs=pl.BlockSpec((tm, c), lambda i: (i, 0)),
        compiler_params=_compiler_params(block_bytes, 1),
    )(y, scale, shift, rp, rscale, rshift)


# ----------------------------------------------------------------------------
# JAX glue
# ----------------------------------------------------------------------------
def _bn_affine(mean, var, eps):
    scale = (1.0 / jnp.sqrt(var + eps)).astype(jnp.float32)
    shift = (-mean.astype(jnp.float32)) * scale
    return scale.reshape(1, -1), shift.reshape(1, -1)


def im2col_tap_major(x, stride, pad=1, k=3):
    """x: (N,H,W,C) -> (N*Ho*Wo, k*k*C), column index = tap*C + c (lane-dense).

    TODO(synk): implicit im2col (in-kernel shifted DMA of the padded input)
    would remove the 9x HBM materialization; still JAX glue here.
    """
    n, h, w, c = x.shape
    ho = (h + 2 * pad - k) // stride + 1
    wo = (w + 2 * pad - k) // stride + 1
    xp = jnp.pad(x, ((0, 0), (pad, pad), (pad, pad), (0, 0)))
    taps = []
    for dy in range(k):
        for dx in range(k):
            taps.append(xp[:, dy:dy + stride * (ho - 1) + 1:stride,
                           dx:dx + stride * (wo - 1) + 1:stride, :])
    t = jnp.stack(taps, axis=3)                            # (N, Ho, Wo, 9, C)
    return t.reshape(n * ho * wo, k * k * c), (ho, wo)


def grouped_to_dense_3x3(w2g):
    """(groups, 9*gc, gc) grouped weights -> block-diagonal dense (9*C, C),
    tap-major rows to match `im2col_tap_major` column ordering."""
    groups, _, gc = w2g.shape
    c = groups * gc
    w = w2g.reshape(groups, 9, gc, gc)                     # (g, tap, ic, oc)
    eye = jnp.eye(groups, dtype=w.dtype)
    dense = jnp.einsum('gtio,gh->tgiho', w, eye)           # zero off-diag blocks
    return dense.reshape(9 * c, c)


# ----------------------------------------------------------------------------
# Bottleneck forward
# ----------------------------------------------------------------------------
def bottleneck_forward(params, x_nchw, eps=1e-5):
    x = jnp.transpose(x_nchw, (0, 2, 3, 1))                # NHWC
    n, h, w, cin = x.shape
    stride = params['stride']
    hidden = params['hidden']
    out_ch = params['out_channels']

    xb = x.astype(jnp.bfloat16)
    w1 = params['w1'].astype(jnp.bfloat16)
    w2 = grouped_to_dense_3x3(params['w2']).astype(jnp.bfloat16)
    w3 = params['w3'].astype(jnp.bfloat16)

    # conv1 (1x1) with fused BN1 batch stats, then BN1 affine + ReLU.
    m1 = n * h * w
    y1, mean1, var1 = conv_bn_stats(xb.reshape(m1, cin), w1)
    s1, b1 = _bn_affine(mean1, var1, eps)
    h1 = bn_relu(y1, s1, b1)[:m1]                          # bf16

    # conv2 (3x3 grouped -> block-diagonal dense matmul) with fused BN2 stats.
    patches, (ho, wo) = im2col_tap_major(h1.reshape(n, h, w, hidden), stride)
    m2 = n * ho * wo
    y2, mean2, var2 = conv_bn_stats(patches, w2)
    s2, b2 = _bn_affine(mean2, var2, eps)

    # conv3 (1x1): BN2 affine + ReLU fused into the matmul prologue.
    y3, mean3, var3 = affine_relu_conv_bn_stats(y2, s2, b2, w3, m_valid=m2)
    s3, b3 = _bn_affine(mean3, var3, eps)

    if 'wd' in params:
        # Projection shortcut: 1x1 strided conv; its BN affine is fused into
        # the final add kernel (no standalone bn_act pass, no f32 residual).
        wd = params['wd'].astype(jnp.bfloat16)
        xd = xb[:, ::stride, ::stride, :] if stride != 1 else xb
        yd, meand, vard = conv_bn_stats(xd.reshape(m2, cin), wd)
        sd, bd = _bn_affine(meand, vard, eps)
        out = dual_bn_add_relu(y3, s3, b3, yd, sd, bd)[:m2]
    else:
        # Identity shortcut is only valid when shapes already match.
        assert stride == 1 and cin == out_ch, "identity shortcut shape mismatch"
        out = bn_add_relu(y3, s3, b3, xb.reshape(m2, out_ch))[:m2]

    return jnp.transpose(out.reshape(n, ho, wo, out_ch), (0, 3, 1, 2))


# ----------------------------------------------------------------------------
# Deterministic synthetic parameters (matching the module's shapes)
# ----------------------------------------------------------------------------
def init_bottleneck_params(key, in_channels, mult_factor=2, stride=1,
                           stage_index=1, cardinality=32, d=4):
    hidden = stage_index * d * cardinality
    out_ch = hidden * mult_factor
    gc = hidden // cardinality
    k1, k2, k3, kd = jax.random.split(key, 4)

    def _w(k, shape, fan_in):
        return jax.random.normal(k, shape, jnp.float32) * math.sqrt(2.0 / fan_in)

    params = {
        'stride': stride, 'groups': cardinality,
        'hidden': hidden, 'out_channels': out_ch,
        'w1': _w(k1, (in_channels, hidden), in_channels),        # 1x1
        'w2': _w(k2, (cardinality, 9 * gc, gc), 9 * gc),          # grouped 3x3
        'w3': _w(k3, (hidden, out_ch), hidden),                   # 1x1
    }
    if stride != 1 or in_channels != out_ch:
        params['wd'] = _w(kd, (in_channels, out_ch), in_channels)
    return params


# ----------------------------------------------------------------------------
if __name__ == "__main__":
    cfg = dict(in_channels=8, mult_factor=2, stride=2,
               stage_index=1, cardinality=4, d=4)

    key = jax.random.PRNGKey(0)
    pkey, xkey = jax.random.split(key)
    params = init_bottleneck_params(pkey, **cfg)

    # Input in the PyTorch NCHW convention.
    x = jax.random.normal(xkey, (2, cfg['in_channels'], 16, 16), jnp.float32)

    fwd = jax.jit(functools.partial(bottleneck_forward, params))
    out = fwd(x)
    jax.block_until_ready(out)

    hidden = cfg['stage_index'] * cfg['d'] * cfg['cardinality']
    out_ch = hidden * cfg['mult_factor']
    assert out.shape == (2, out_ch, 8, 8), out.shape
    assert bool(jnp.all(jnp.isfinite(out)))
    print("KERNEL_OK")
</pallas_src>

<mosaic_0001>
module attributes {stable_mosaic.version = 11 : i64} {
  func.func @_matmul_stats_kernel(%arg0: i32, %arg1: i32, %arg2: memref<512x8xbf16, #tpu.memory_space<vmem>>, %arg3: memref<8x16xbf16, #tpu.memory_space<vmem>>, %arg4: memref<512x16xbf16, #tpu.memory_space<vmem>>, %arg5: memref<1x2x16xf32, #tpu.memory_space<vmem>>) attributes {dimension_semantics = [#tpu.dimension_semantics<parallel>, #tpu.dimension_semantics<parallel>], iteration_bounds = array<i64: 1, 1>, scalar_prefetch = 0 : i64, scratch_operands = 0 : i64, tpu.core_type = #tpu.core_type<tc>, window_params = [{transform_indices = @transform_0, window_bounds = array<i64: 512, 8>}, {transform_indices = @transform_1, window_bounds = array<i64: 8, 16>}, {transform_indices = @transform_2, window_bounds = array<i64: 512, 16>}, {transform_indices = @transform_3, window_bounds = array<i64: 1, 2, 16>}]} {
    %c0 = arith.constant 0 : index
    %c0_0 = arith.constant 0 : index
    %0 = vector.load %arg2[%c0, %c0_0] : memref<512x8xbf16, #tpu.memory_space<vmem>>, vector<512x8xbf16>
    %c0_1 = arith.constant 0 : index
    %c0_2 = arith.constant 0 : index
    %1 = vector.load %arg3[%c0_1, %c0_2] : memref<8x16xbf16, #tpu.memory_space<vmem>>, vector<8x16xbf16>
    %cst = arith.constant dense<0.000000e+00> : vector<512x16xf32>
    %2 = tpu.matmul %0, %1, %cst {dimension_numbers = #tpu.dot_dimension_numbers<[1], [0], [0], [1], [0, 0, 1, 1], [], []>} : vector<512x8xbf16>, vector<8x16xbf16>, vector<512x16xf32> -> vector<512x16xf32>
    %3 = arith.truncf %2 : vector<512x16xf32> to vector<512x16xbf16>
    %c0_3 = arith.constant 0 : index
    %c0_4 = arith.constant 0 : index
    %4 = vector.load %arg4[%c0_3, %c0_4] : memref<512x16xbf16, #tpu.memory_space<vmem>>, vector<512x16xbf16>
    tpu.vector_store %arg4[%c0_3, %c0_4], %3 {strides = array<i32>} : memref<512x16xbf16, #tpu.memory_space<vmem>>, vector<512x16xbf16>,
    %cst_5 = arith.constant dense<0.000000e+00> : vector<16xf32>
    %5 = vector.multi_reduction <add>, %2, %cst_5 [0] : vector<512x16xf32> to vector<16xf32>
    %6 = vector.shape_cast %5 : vector<16xf32> to vector<1x16xf32>
    %c0_6 = arith.constant 0 : index
    %c0_7 = arith.constant 0 : index
    %c0_8 = arith.constant 0 : index
    %7 = vector.load %arg5[%c0_6, %c0_7, %c0_8] : memref<1x2x16xf32, #tpu.memory_space<vmem>>, vector<1x1x16xf32>
    %8 = vector.shape_cast %7 : vector<1x1x16xf32> to vector<1x16xf32>
    %9 = vector.shape_cast %6 : vector<1x16xf32> to vector<1x1x16xf32>
    tpu.vector_store %arg5[%c0_6, %c0_7, %c0_8], %9 {strides = array<i32>} : memref<1x2x16xf32, #tpu.memory_space<vmem>>, vector<1x1x16xf32>,
    %10 = arith.mulf %2, %2 : vector<512x16xf32>
    %cst_9 = arith.constant dense<0.000000e+00> : vector<16xf32>
    %11 = vector.multi_reduction <add>, %10, %cst_9 [0] : vector<512x16xf32> to vector<16xf32>
    %12 = vector.shape_cast %11 : vector<16xf32> to vector<1x16xf32>
    %c0_10 = arith.constant 0 : index
    %c1 = arith.constant 1 : index
    %c0_11 = arith.constant 0 : index
    %13 = vector.load %arg5[%c0_10, %c1, %c0_11] : memref<1x2x16xf32, #tpu.memory_space<vmem>>, vector<1x1x16xf32>
    %14 = vector.shape_cast %13 : vector<1x1x16xf32> to vector<1x16xf32>
    %15 = vector.shape_cast %12 : vector<1x16xf32> to vector<1x1x16xf32>
    tpu.vector_store %arg5[%c0_10, %c1, %c0_11], %15 {strides = array<i32>} : memref<1x2x16xf32, #tpu.memory_space<vmem>>, vector<1x1x16xf32>,
    return
  }
  func.func @transform_0(%arg0: i32, %arg1: i32) -> (i32, i32) {
    %c0_i32 = arith.constant 0 : i32
    %c0_i32_0 = arith.constant 0 : i32
    return %arg0, %c0_i32 : i32, i32
  }
  func.func @transform_1(%arg0: i32, %arg1: i32) -> (i32, i32) {
    %c0_i32 = arith.constant 0 : i32
    %c0_i32_0 = arith.constant 0 : i32
    return %c0_i32, %arg1 : i32, i32
  }
  func.func @transform_2(%arg0: i32, %arg1: i32) -> (i32, i32) {
    %c0_i32 = arith.constant 0 : i32
    return %arg0, %arg1 : i32, i32
  }
  func.func @transform_3(%arg0: i32, %arg1: i32) -> (i32, i32, i32) {
    %c0_i32 = arith.constant 0 : i32
    %c0_i32_0 = arith.constant 0 : i32
    return %arg0, %c0_i32, %arg1 : i32, i32, i32
  }
}

module attributes {stable_mosaic.version = 11 : i64} {
  func.func @_bn_relu_kernel(%arg0: i32, %arg1: memref<512x16xbf16, #tpu.memory_space<vmem>>, %arg2: memref<1x16xf32, #tpu.memory_space<vmem>>, %arg3: memref<1x16xf32, #tpu.memory_space<vmem>>, %arg4: memref<512x16xbf16, #tpu.memory_space<vmem>>) attributes {dimension_semantics = [#tpu.dimension_semantics<parallel>], iteration_bounds = array<i64: 1>, scalar_prefetch = 0 : i64, scratch_operands = 0 : i64, tpu.core_type = #tpu.core_type<tc>, window_params = [{transform_indices = @transform_0, window_bounds = array<i64: 512, 16>}, {pipeline_mode = #tpu.pipeline_mode<synchronous>, transform_indices = @transform_1, window_bounds = array<i64: 1, 16>}, {pipeline_mode = #tpu.pipeline_mode<synchronous>, transform_indices = @transform_2, window_bounds = array<i64: 1, 16>}, {transform_indices = @transform_3, window_bounds = array<i64: 512, 16>}]} {
    %c0 = arith.constant 0 : index
    %c0_0 = arith.constant 0 : index
    %0 = vector.load %arg1[%c0, %c0_0] : memref<512x16xbf16, #tpu.memory_space<vmem>>, vector<512x16xbf16>
    %1 = arith.extf %0 : vector<512x16xbf16> to vector<512x16xf32>
    %c0_1 = arith.constant 0 : index
    %c0_2 = arith.constant 0 : index
    %2 = vector.load %arg2[%c0_1, %c0_2] : memref<1x16xf32, #tpu.memory_space<vmem>>, vector<1x16xf32>
    %3 = vector.broadcast %2 : vector<1x16xf32> to vector<512x16xf32>
    %4 = arith.mulf %1, %3 : vector<512x16xf32>
    %c0_3 = arith.constant 0 : index
    %c0_4 = arith.constant 0 : index
    %5 = vector.load %arg3[%c0_3, %c0_4] : memref<1x16xf32, #tpu.memory_space<vmem>>, vector<1x16xf32>
    %6 = vector.broadcast %5 : vector<1x16xf32> to vector<512x16xf32>
    %7 = arith.addf %4, %6 : vector<512x16xf32>
    %cst = arith.constant 0.000000e+00 : f32
    %8 = vector.broadcast %cst : f32 to vector<512x16xf32>
    %9 = arith.maximumf %7, %8 : vector<512x16xf32>
    %10 = arith.truncf %9 : vector<512x16xf32> to vector<512x16xbf16>
    %c0_5 = arith.constant 0 : index
    %c0_6 = arith.constant 0 : index
    %11 = vector.load %arg4[%c0_5, %c0_6] : memref<512x16xbf16, #tpu.memory_space<vmem>>, vector<512x16xbf16>
    tpu.vector_store %arg4[%c0_5, %c0_6], %10 {strides = array<i32>} : memref<512x16xbf16, #tpu.memory_space<vmem>>, vector<512x16xbf16>,
    return
  }
  func.func @transform_0(%arg0: i32) -> (i32, i32) {
    %c0_i32 = arith.constant 0 : i32
    %c0_i32_0 = arith.constant 0 : i32
    return %arg0, %c0_i32 : i32, i32
  }
  func.func @transform_1(%arg0: i32) -> (i32, i32) {
    %c0_i32 = arith.constant 0 : i32
    %c0_i32_0 = arith.constant 0 : i32
    %c0_i32_1 = arith.constant 0 : i32
    return %c0_i32, %c0_i32_0 : i32, i32
  }
  func.func @transform_2(%arg0: i32) -> (i32, i32) {
    %c0_i32 = arith.constant 0 : i32
    %c0_i32_0 = arith.constant 0 : i32
    %c0_i32_1 = arith.constant 0 : i32
    return %c0_i32, %c0_i32_0 : i32, i32
  }
  func.func @transform_3(%arg0: i32) -> (i32, i32) {
    %c0_i32 = arith.constant 0 : i32
    %c0_i32_0 = arith.constant 0 : i32
    return %arg0, %c0_i32 : i32, i32
  }
}

module attributes {stable_mosaic.version = 11 : i64} {
  func.func @_affine_relu_matmul_stats_kernel(%arg0: i32, %arg1: i32, %arg2: memref<128x16xbf16, #tpu.memory_space<vmem>>, %arg3: memref<1x16xf32, #tpu.memory_space<vmem>>, %arg4: memref<1x16xf32, #tpu.memory_space<vmem>>, %arg5: memref<16x32xbf16, #tpu.memory_space<vmem>>, %arg6: memref<128x32xbf16, #tpu.memory_space<vmem>>, %arg7: memref<1x2x32xf32, #tpu.memory_space<vmem>>) attributes {dimension_semantics = [#tpu.dimension_semantics<parallel>, #tpu.dimension_semantics<parallel>], iteration_bounds = array<i64: 1, 1>, scalar_prefetch = 0 : i64, scratch_operands = 0 : i64, tpu.core_type = #tpu.core_type<tc>, window_params = [{transform_indices = @transform_0, window_bounds = array<i64: 128, 16>}, {pipeline_mode = #tpu.pipeline_mode<synchronous>, transform_indices = @transform_1, window_bounds = array<i64: 1, 16>}, {pipeline_mode = #tpu.pipeline_mode<synchronous>, transform_indices = @transform_2, window_bounds = array<i64: 1, 16>}, {transform_indices = @transform_3, window_bounds = array<i64: 16, 32>}, {transform_indices = @transform_4, window_bounds = array<i64: 128, 32>}, {transform_indices = @transform_5, window_bounds = array<i64: 1, 2, 32>}]} {
    %c0 = arith.constant 0 : index
    %c0_0 = arith.constant 0 : index
    %0 = vector.load %arg2[%c0, %c0_0] : memref<128x16xbf16, #tpu.memory_space<vmem>>, vector<128x16xbf16>
    %1 = arith.extf %0 : vector<128x16xbf16> to vector<128x16xf32>
    %c0_1 = arith.constant 0 : index
    %c0_2 = arith.constant 0 : index
    %2 = vector.load %arg3[%c0_1, %c0_2] : memref<1x16xf32, #tpu.memory_space<vmem>>, vector<1x16xf32>
    %3 = vector.broadcast %2 : vector<1x16xf32> to vector<128x16xf32>
    %4 = arith.mulf %1, %3 : vector<128x16xf32>
    %c0_3 = arith.constant 0 : index
    %c0_4 = arith.constant 0 : index
    %5 = vector.load %arg4[%c0_3, %c0_4] : memref<1x16xf32, #tpu.memory_space<vmem>>, vector<1x16xf32>
    %6 = vector.broadcast %5 : vector<1x16xf32> to vector<128x16xf32>
    %7 = arith.addf %4, %6 : vector<128x16xf32>
    %cst = arith.constant 0.000000e+00 : f32
    %8 = vector.broadcast %cst : f32 to vector<128x16xf32>
    %9 = arith.maximumf %7, %8 : vector<128x16xf32>
    %10 = arith.truncf %9 : vector<128x16xf32> to vector<128x16xbf16>
    %c0_5 = arith.constant 0 : index
    %c0_6 = arith.constant 0 : index
    %11 = vector.load %arg5[%c0_5, %c0_6] : memref<16x32xbf16, #tpu.memory_space<vmem>>, vector<16x32xbf16>
    %cst_7 = arith.constant dense<0.000000e+00> : vector<128x32xf32>
    %12 = tpu.matmul %10, %11, %cst_7 {dimension_numbers = #tpu.dot_dimension_numbers<[1], [0], [0], [1], [0, 0, 1, 1], [], []>} : vector<128x16xbf16>, vector<16x32xbf16>, vector<128x32xf32> -> vector<128x32xf32>
    %13 = arith.truncf %12 : vector<128x32xf32> to vector<128x32xbf16>
    %c0_8 = arith.constant 0 : index
    %c0_9 = arith.constant 0 : index
    %14 = vector.load %arg6[%c0_8, %c0_9] : memref<128x32xbf16, #tpu.memory_space<vmem>>, vector<128x32xbf16>
    tpu.vector_store %arg6[%c0_8, %c0_9], %13 {strides = array<i32>} : memref<128x32xbf16, #tpu.memory_space<vmem>>, vector<128x32xbf16>,
    %cst_10 = arith.constant dense<0.000000e+00> : vector<32xf32>
    %15 = vector.multi_reduction <add>, %12, %cst_10 [0] : vector<128x32xf32> to vector<32xf32>
    %16 = vector.shape_cast %15 : vector<32xf32> to vector<1x32xf32>
    %c0_11 = arith.constant 0 : index
    %c0_12 = arith.constant 0 : index
    %c0_13 = arith.constant 0 : index
    %17 = vector.load %arg7[%c0_11, %c0_12, %c0_13] : memref<1x2x32xf32, #tpu.memory_space<vmem>>, vector<1x1x32xf32>
    %18 = vector.shape_cast %17 : vector<1x1x32xf32> to vector<1x32xf32>
    %19 = vector.shape_cast %16 : vector<1x32xf32> to vector<1x1x32xf32>
    tpu.vector_store %arg7[%c0_11, %c0_12, %c0_13], %19 {strides = array<i32>} : memref<1x2x32xf32, #tpu.memory_space<vmem>>, vector<1x1x32xf32>,
    %20 = arith.mulf %12, %12 : vector<128x32xf32>
    %cst_14 = arith.constant dense<0.000000e+00> : vector<32xf32>
    %21 = vector.multi_reduction <add>, %20, %cst_14 [0] : vector<128x32xf32> to vector<32xf32>
    %22 = vector.shape_cast %21 : vector<32xf32> to vector<1x32xf32>
    %c0_15 = arith.constant 0 : index
    %c1 = arith.constant 1 : index
    %c0_16 = arith.constant 0 : index
    %23 = vector.load %arg7[%c0_15, %c1, %c0_16] : memref<1x2x32xf32, #tpu.memory_space<vmem>>, vector<1x1x32xf32>
    %24 = vector.shape_cast %23 : vector<1x1x32xf32> to vector<1x32xf32>
    %25 = vector.shape_cast %22 : vector<1x32xf32> to vector<1x1x32xf32>
    tpu.vector_store %arg7[%c0_15, %c1, %c0_16], %25 {strides = array<i32>} : memref<1x2x32xf32, #tpu.memory_space<vmem>>, vector<1x1x32xf32>,
    return
  }
  func.func @transform_0(%arg0: i32, %arg1: i32) -> (i32, i32) {
    %c0_i32 = arith.constant 0 : i32
    %c0_i32_0 = arith.constant 0 : i32
    return %arg0, %c0_i32 : i32, i32
  }
  func.func @transform_1(%arg0: i32, %arg1: i32) -> (i32, i32) {
    %c0_i32 = arith.constant 0 : i32
    %c0_i32_0 = arith.constant 0 : i32
    %c0_i32_1 = arith.constant 0 : i32
    return %c0_i32, %c0_i32_0 : i32, i32
  }
  func.func @transform_2(%arg0: i32, %arg1: i32) -> (i32, i32) {
    %c0_i32 = arith.constant 0 : i32
    %c0_i32_0 = arith.constant 0 : i32
    %c0_i32_1 = arith.constant 0 : i32
    return %c0_i32, %c0_i32_0 : i32, i32
  }
  func.func @transform_3(%arg0: i32, %arg1: i32) -> (i32, i32) {
    %c0_i32 = arith.constant 0 : i32
    %c0_i32_0 = arith.constant 0 : i32
    return %c0_i32, %arg1 : i32, i32
  }
  func.func @transform_4(%arg0: i32, %arg1: i32) -> (i32, i32) {
    %c0_i32 = arith.constant 0 : i32
    return %arg0, %arg1 : i32, i32
  }
  func.func @transform_5(%arg0: i32, %arg1: i32) -> (i32, i32, i32) {
    %c0_i32 = arith.constant 0 : i32
    %c0_i32_0 = arith.constant 0 : i32
    return %arg0, %c0_i32, %arg1 : i32, i32, i32
  }
}

module attributes {stable_mosaic.version = 11 : i64} {
  func.func @_matmul_stats_kernel(%arg0: i32, %arg1: i32, %arg2: memref<128x144xbf16, #tpu.memory_space<vmem>>, %arg3: memref<144x16xbf16, #tpu.memory_space<vmem>>, %arg4: memref<128x16xbf16, #tpu.memory_space<vmem>>, %arg5: memref<1x2x16xf32, #tpu.memory_space<vmem>>) attributes {dimension_semantics = [#tpu.dimension_semantics<parallel>, #tpu.dimension_semantics<parallel>], iteration_bounds = array<i64: 1, 1>, scalar_prefetch = 0 : i64, scratch_operands = 0 : i64, tpu.core_type = #tpu.core_type<tc>, window_params = [{transform_indices = @transform_0, window_bounds = array<i64: 128, 144>}, {transform_indices = @transform_1, window_bounds = array<i64: 144, 16>}, {transform_indices = @transform_2, window_bounds = array<i64: 128, 16>}, {transform_indices = @transform_3, window_bounds = array<i64: 1, 2, 16>}]} {
    %c0 = arith.constant 0 : index
    %c0_0 = arith.constant 0 : index
    %0 = vector.load %arg2[%c0, %c0_0] : memref<128x144xbf16, #tpu.memory_space<vmem>>, vector<128x144xbf16>
    %c0_1 = arith.constant 0 : index
    %c0_2 = arith.constant 0 : index
    %1 = vector.load %arg3[%c0_1, %c0_2] : memref<144x16xbf16, #tpu.memory_space<vmem>>, vector<144x16xbf16>
    %cst = arith.constant dense<0.000000e+00> : vector<128x16xf32>
    %2 = tpu.matmul %0, %1, %cst {dimension_numbers = #tpu.dot_dimension_numbers<[1], [0], [0], [1], [0, 0, 1, 1], [], []>} : vector<128x144xbf16>, vector<144x16xbf16>, vector<128x16xf32> -> vector<128x16xf32>
    %3 = arith.truncf %2 : vector<128x16xf32> to vector<128x16xbf16>
    %c0_3 = arith.constant 0 : index
    %c0_4 = arith.constant 0 : index
    %4 = vector.load %arg4[%c0_3, %c0_4] : memref<128x16xbf16, #tpu.memory_space<vmem>>, vector<128x16xbf16>
    tpu.vector_store %arg4[%c0_3, %c0_4], %3 {strides = array<i32>} : memref<128x16xbf16, #tpu.memory_space<vmem>>, vector<128x16xbf16>,
    %cst_5 = arith.constant dense<0.000000e+00> : vector<16xf32>
    %5 = vector.multi_reduction <add>, %2, %cst_5 [0] : vector<128x16xf32> to vector<16xf32>
    %6 = vector.shape_cast %5 : vector<16xf32> to vector<1x16xf32>
    %c0_6 = arith.constant 0 : index
    %c0_7 = arith.constant 0 : index
    %c0_8 = arith.constant 0 : index
    %7 = vector.load %arg5[%c0_6, %c0_7, %c0_8] : memref<1x2x16xf32, #tpu.memory_space<vmem>>, vector<1x1x16xf32>
    %8 = vector.shape_cast %7 : vector<1x1x16xf32> to vector<1x16xf32>
    %9 = vector.shape_cast %6 : vector<1x16xf32> to vector<1x1x16xf32>
    tpu.vector_store %arg5[%c0_6, %c0_7, %c0_8], %9 {strides = array<i32>} : memref<1x2x16xf32, #tpu.memory_space<vmem>>, vector<1x1x16xf32>,
    %10 = arith.mulf %2, %2 : vector<128x16xf32>
    %cst_9 = arith.constant dense<0.000000e+00> : vector<16xf32>
    %11 = vector.multi_reduction <add>, %10, %cst_9 [0] : vector<128x16xf32> to vector<16xf32>
    %12 = vector.shape_cast %11 : vector<16xf32> to vector<1x16xf32>
    %c0_10 = arith.constant 0 : index
    %c1 = arith.constant 1 : index
    %c0_11 = arith.constant 0 : index
    %13 = vector.load %arg5[%c0_10, %c1, %c0_11] : memref<1x2x16xf32, #tpu.memory_space<vmem>>, vector<1x1x16xf32>
    %14 = vector.shape_cast %13 : vector<1x1x16xf32> to vector<1x16xf32>
    %15 = vector.shape_cast %12 : vector<1x16xf32> to vector<1x1x16xf32>
    tpu.vector_store %arg5[%c0_10, %c1, %c0_11], %15 {strides = array<i32>} : memref<1x2x16xf32, #tpu.memory_space<vmem>>, vector<1x1x16xf32>,
    return
  }
  func.func @transform_0(%arg0: i32, %arg1: i32) -> (i32, i32) {
    %c0_i32 = arith.constant 0 : i32
    %c0_i32_0 = arith.constant 0 : i32
    return %arg0, %c0_i32 : i32, i32
  }
  func.func @transform_1(%arg0: i32, %arg1: i32) -> (i32, i32) {
    %c0_i32 = arith.constant 0 : i32
    %c0_i32_0 = arith.constant 0 : i32
    return %c0_i32, %arg1 : i32, i32
  }
  func.func @transform_2(%arg0: i32, %arg1: i32) -> (i32, i32) {
    %c0_i32 = arith.constant 0 : i32
    return %arg0, %arg1 : i32, i32
  }
  func.func @transform_3(%arg0: i32, %arg1: i32) -> (i32, i32, i32) {
    %c0_i32 = arith.constant 0 : i32
    %c0_i32_0 = arith.constant 0 : i32
    return %arg0, %c0_i32, %arg1 : i32, i32, i32
  }
}

module attributes {stable_mosaic.version = 11 : i64} {
  func.func @_matmul_stats_kernel(%arg0: i32, %arg1: i32, %arg2: memref<128x8xbf16, #tpu.memory_space<vmem>>, %arg3: memref<8x32xbf16, #tpu.memory_space<vmem>>, %arg4: memref<128x32xbf16, #tpu.memory_space<vmem>>, %arg5: memref<1x2x32xf32, #tpu.memory_space<vmem>>) attributes {dimension_semantics = [#tpu.dimension_semantics<parallel>, #tpu.dimension_semantics<parallel>], iteration_bounds = array<i64: 1, 1>, scalar_prefetch = 0 : i64, scratch_operands = 0 : i64, tpu.core_type = #tpu.core_type<tc>, window_params = [{transform_indices = @transform_0, window_bounds = array<i64: 128, 8>}, {transform_indices = @transform_1, window_bounds = array<i64: 8, 32>}, {transform_indices = @transform_2, window_bounds = array<i64: 128, 32>}, {transform_indices = @transform_3, window_bounds = array<i64: 1, 2, 32>}]} {
    %c0 = arith.constant 0 : index
    %c0_0 = arith.constant 0 : index
    %0 = vector.load %arg2[%c0, %c0_0] : memref<128x8xbf16, #tpu.memory_space<vmem>>, vector<128x8xbf16>
    %c0_1 = arith.constant 0 : index
    %c0_2 = arith.constant 0 : index
    %1 = vector.load %arg3[%c0_1, %c0_2] : memref<8x32xbf16, #tpu.memory_space<vmem>>, vector<8x32xbf16>
    %cst = arith.constant dense<0.000000e+00> : vector<128x32xf32>
    %2 = tpu.matmul %0, %1, %cst {dimension_numbers = #tpu.dot_dimension_numbers<[1], [0], [0], [1], [0, 0, 1, 1], [], []>} : vector<128x8xbf16>, vector<8x32xbf16>, vector<128x32xf32> -> vector<128x32xf32>
    %3 = arith.truncf %2 : vector<128x32xf32> to vector<128x32xbf16>
    %c0_3 = arith.constant 0 : index
    %c0_4 = arith.constant 0 : index
    %4 = vector.load %arg4[%c0_3, %c0_4] : memref<128x32xbf16, #tpu.memory_space<vmem>>, vector<128x32xbf16>
    tpu.vector_store %arg4[%c0_3, %c0_4], %3 {strides = array<i32>} : memref<128x32xbf16, #tpu.memory_space<vmem>>, vector<128x32xbf16>,
    %cst_5 = arith.constant dense<0.000000e+00> : vector<32xf32>
    %5 = vector.multi_reduction <add>, %2, %cst_5 [0] : vector<128x32xf32> to vector<32xf32>
    %6 = vector.shape_cast %5 : vector<32xf32> to vector<1x32xf32>
    %c0_6 = arith.constant 0 : index
    %c0_7 = arith.constant 0 : index
    %c0_8 = arith.constant 0 : index
    %7 = vector.load %arg5[%c0_6, %c0_7, %c0_8] : memref<1x2x32xf32, #tpu.memory_space<vmem>>, vector<1x1x32xf32>
    %8 = vector.shape_cast %7 : vector<1x1x32xf32> to vector<1x32xf32>
    %9 = vector.shape_cast %6 : vector<1x32xf32> to vector<1x1x32xf32>
    tpu.vector_store %arg5[%c0_6, %c0_7, %c0_8], %9 {strides = array<i32>} : memref<1x2x32xf32, #tpu.memory_space<vmem>>, vector<1x1x32xf32>,
    %10 = arith.mulf %2, %2 : vector<128x32xf32>
    %cst_9 = arith.constant dense<0.000000e+00> : vector<32xf32>
    %11 = vector.multi_reduction <add>, %10, %cst_9 [0] : vector<128x32xf32> to vector<32xf32>
    %12 = vector.shape_cast %11 : vector<32xf32> to vector<1x32xf32>
    %c0_10 = arith.constant 0 : index
    %c1 = arith.constant 1 : index
    %c0_11 = arith.constant 0 : index
    %13 = vector.load %arg5[%c0_10, %c1, %c0_11] : memref<1x2x32xf32, #tpu.memory_space<vmem>>, vector<1x1x32xf32>
    %14 = vector.shape_cast %13 : vector<1x1x32xf32> to vector<1x32xf32>
    %15 = vector.shape_cast %12 : vector<1x32xf32> to vector<1x1x32xf32>
    tpu.vector_store %arg5[%c0_10, %c1, %c0_11], %15 {strides = array<i32>} : memref<1x2x32xf32, #tpu.memory_space<vmem>>, vector<1x1x32xf32>,
    return
  }
  func.func @transform_0(%arg0: i32, %arg1: i32) -> (i32, i32) {
    %c0_i32 = arith.constant 0 : i32
    %c0_i32_0 = arith.constant 0 : i32
    return %arg0, %c0_i32 : i32, i32
  }
  func.func @transform_1(%arg0: i32, %arg1: i32) -> (i32, i32) {
    %c0_i32 = arith.constant 0 : i32
    %c0_i32_0 = arith.constant 0 : i32
    return %c0_i32, %arg1 : i32, i32
  }
  func.func @transform_2(%arg0: i32, %arg1: i32) -> (i32, i32) {
    %c0_i32 = arith.constant 0 : i32
    return %arg0, %arg1 : i32, i32
  }
  func.func @transform_3(%arg0: i32, %arg1: i32) -> (i32, i32, i32) {
    %c0_i32 = arith.constant 0 : i32
    %c0_i32_0 = arith.constant 0 : i32
    return %arg0, %c0_i32, %arg1 : i32, i32, i32
  }
}

module attributes {stable_mosaic.version = 11 : i64} {
  func.func @_dual_bn_add_relu_kernel(%arg0: i32, %arg1: memref<128x32xbf16, #tpu.memory_space<vmem>>, %arg2: memref<1x32xf32, #tpu.memory_space<vmem>>, %arg3: memref<1x32xf32, #tpu.memory_space<vmem>>, %arg4: memref<128x32xbf16, #tpu.memory_space<vmem>>, %arg5: memref<1x32xf32, #tpu.memory_space<vmem>>, %arg6: memref<1x32xf32, #tpu.memory_space<vmem>>, %arg7: memref<128x32xf32, #tpu.memory_space<vmem>>) attributes {dimension_semantics = [#tpu.dimension_semantics<parallel>], iteration_bounds = array<i64: 1>, scalar_prefetch = 0 : i64, scratch_operands = 0 : i64, tpu.core_type = #tpu.core_type<tc>, window_params = [{transform_indices = @transform_0, window_bounds = array<i64: 128, 32>}, {pipeline_mode = #tpu.pipeline_mode<synchronous>, transform_indices = @transform_1, window_bounds = array<i64: 1, 32>}, {pipeline_mode = #tpu.pipeline_mode<synchronous>, transform_indices = @transform_2, window_bounds = array<i64: 1, 32>}, {transform_indices = @transform_3, window_bounds = array<i64: 128, 32>}, {pipeline_mode = #tpu.pipeline_mode<synchronous>, transform_indices = @transform_4, window_bounds = array<i64: 1, 32>}, {pipeline_mode = #tpu.pipeline_mode<synchronous>, transform_indices = @transform_5, window_bounds = array<i64: 1, 32>}, {transform_indices = @transform_6, window_bounds = array<i64: 128, 32>}]} {
    %c0 = arith.constant 0 : index
    %c0_0 = arith.constant 0 : index
    %0 = vector.load %arg1[%c0, %c0_0] : memref<128x32xbf16, #tpu.memory_space<vmem>>, vector<128x32xbf16>
    %1 = arith.extf %0 : vector<128x32xbf16> to vector<128x32xf32>
    %c0_1 = arith.constant 0 : index
    %c0_2 = arith.constant 0 : index
    %2 = vector.load %arg2[%c0_1, %c0_2] : memref<1x32xf32, #tpu.memory_space<vmem>>, vector<1x32xf32>
    %3 = vector.broadcast %2 : vector<1x32xf32> to vector<128x32xf32>
    %4 = arith.mulf %1, %3 : vector<128x32xf32>
    %c0_3 = arith.constant 0 : index
    %c0_4 = arith.constant 0 : index
    %5 = vector.load %arg3[%c0_3, %c0_4] : memref<1x32xf32, #tpu.memory_space<vmem>>, vector<1x32xf32>
    %6 = vector.broadcast %5 : vector<1x32xf32> to vector<128x32xf32>
    %7 = arith.addf %4, %6 : vector<128x32xf32>
    %c0_5 = arith.constant 0 : index
    %c0_6 = arith.constant 0 : index
    %8 = vector.load %arg4[%c0_5, %c0_6] : memref<128x32xbf16, #tpu.memory_space<vmem>>, vector<128x32xbf16>
    %9 = arith.extf %8 : vector<128x32xbf16> to vector<128x32xf32>
    %c0_7 = arith.constant 0 : index
    %c0_8 = arith.constant 0 : index
    %10 = vector.load %arg5[%c0_7, %c0_8] : memref<1x32xf32, #tpu.memory_space<vmem>>, vector<1x32xf32>
    %11 = vector.broadcast %10 : vector<1x32xf32> to vector<128x32xf32>
    %12 = arith.mulf %9, %11 : vector<128x32xf32>
    %c0_9 = arith.constant 0 : index
    %c0_10 = arith.constant 0 : index
    %13 = vector.load %arg6[%c0_9, %c0_10] : memref<1x32xf32, #tpu.memory_space<vmem>>, vector<1x32xf32>
    %14 = vector.broadcast %13 : vector<1x32xf32> to vector<128x32xf32>
    %15 = arith.addf %12, %14 : vector<128x32xf32>
    %16 = arith.addf %7, %15 : vector<128x32xf32>
    %cst = arith.constant 0.000000e+00 : f32
    %17 = vector.broadcast %cst : f32 to vector<128x32xf32>
    %18 = arith.maximumf %16, %17 : vector<128x32xf32>
    %c0_11 = arith.constant 0 : index
    %c0_12 = arith.constant 0 : index
    %19 = vector.load %arg7[%c0_11, %c0_12] : memref<128x32xf32, #tpu.memory_space<vmem>>, vector<128x32xf32>
    tpu.vector_store %arg7[%c0_11, %c0_12], %18 {strides = array<i32>} : memref<128x32xf32, #tpu.memory_space<vmem>>, vector<128x32xf32>,
    return
  }
  func.func @transform_0(%arg0: i32) -> (i32, i32) {
    %c0_i32 = arith.constant 0 : i32
    %c0_i32_0 = arith.constant 0 : i32
    return %arg0, %c0_i32 : i32, i32
  }
  func.func @transform_1(%arg0: i32) -> (i32, i32) {
    %c0_i32 = arith.constant 0 : i32
    %c0_i32_0 = arith.constant 0 : i32
    %c0_i32_1 = arith.constant 0 : i32
    return %c0_i32, %c0_i32_0 : i32, i32
  }
  func.func @transform_2(%arg0: i32) -> (i32, i32) {
    %c0_i32 = arith.constant 0 : i32
    %c0_i32_0 = arith.constant 0 : i32
    %c0_i32_1 = arith.constant 0 : i32
    return %c0_i32, %c0_i32_0 : i32, i32
  }
  func.func @transform_3(%arg0: i32) -> (i32, i32) {
    %c0_i32 = arith.constant 0 : i32
    %c0_i32_0 = arith.constant 0 : i32
    return %arg0, %c0_i32 : i32, i32
  }
  func.func @transform_4(%arg0: i32) -> (i32, i32) {
    %c0_i32 = arith.constant 0 : i32
    %c0_i32_0 = arith.constant 0 : i32
    %c0_i32_1 = arith.constant 0 : i32
    return %c0_i32, %c0_i32_0 : i32, i32
  }
  func.func @transform_5(%arg0: i32) -> (i32, i32) {
    %c0_i32 = arith.constant 0 : i32
    %c0_i32_0 = arith.constant 0 : i32
    %c0_i32_1 = arith.constant 0 : i32
    return %c0_i32, %c0_i32_0 : i32, i32
  }
  func.func @transform_6(%arg0: i32) -> (i32, i32) {
    %c0_i32 = arith.constant 0 : i32
    %c0_i32_0 = arith.constant 0 : i32
    return %arg0, %c0_i32 : i32, i32
  }
}

</mosaic_0001>

<llo_original>
// kernel: bottleneck_forward.7
$region0: #{bottleneck_forward.7}
  #allocation0 [shape = 'u32[]', space=smem, size = 0x4, offset = 0x4, fixed_abs, tag = 'smem constant byte address 0x4 - core index']
  #allocation1 [shape = 'u32[144,128]{1,0:T(1,128)}', space=vmem, size = 0x12000, scoped, tag = 'internal scratch']
  %s0 = inlined_call_operand.vmem [shape: bf16[512,16], index: 0, kind: input, shape index: {}]
  %s1 = inlined_call_operand.vmem [shape: f32[1,16], index: 1, kind: input, shape index: {}]
  %s2 = inlined_call_operand.vmem [shape: f32[1,16], index: 2, kind: input, shape index: {}]
  %s3 = inlined_call_operand.vmem [shape: bf16[512,16], index: 3, kind: output, shape index: {}]
  %s4 = sld [smem:[#allocation0]]
  $region22: #{bottleneck_forward.7} parent=0
    _
  %s6 = ssub.s32 1, %s4
  %s7 = scalar_select 0, %s6, %s4
  // Predicated region
  $region2: #{bottleneck_forward.7} parent=0 // pred_check
    _
  $region3: #{bottleneck_forward.7} parent=0 // pred_check_branch
    %9 = sbr.rel (0) target = $region5
  $region4: #{bottleneck_forward.7} parent=0 // pred_region
    _
  $region5: #{bottleneck_forward.7} parent=0 // pred_fallthru
    _
  // Predicated region
  $region6: #{bottleneck_forward.7} parent=0 // pred_check
    _
  $region7: #{bottleneck_forward.7} parent=0 // pred_check_branch
    %11 = sbr.rel (0) target = $region9
  $region8: #{bottleneck_forward.7} parent=0 // pred_region
    _
  $region9: #{bottleneck_forward.7} parent=0 // pred_fallthru
    _
  // Predicated region
  $region10: #{bottleneck_forward.7} parent=0 // pred_check
    _
  $region11: #{bottleneck_forward.7} parent=0 // pred_check_branch
    %13 = sbr.rel (0) target = $region13
  $region12: #{bottleneck_forward.7} parent=0 // pred_region
    _
  $region13: #{bottleneck_forward.7} parent=0 // pred_fallthru
    _
  %v14 = vld [vmem:[%s0] sm:$0xf]
  %v15 = vld [vmem:[%s0 + $0x4] sm:$0xf]
  %v16 = vld [vmem:[%s0 + $0x8] sm:$0xf]
  %v17 = vld [vmem:[%s0 + $0xc] sm:$0xf]
  %v18 = vld [vmem:[%s0 + $0x10] sm:$0xf]
  %v19 = vld [vmem:[%s0 + $0x14] sm:$0xf]
  %v20 = vld [vmem:[%s0 + $0x18] sm:$0xf]
  %v21 = vld [vmem:[%s0 + $0x1c] sm:$0xf]
  %v22 = vld [vmem:[%s0 + $0x20] sm:$0xf]
  %v23 = vld [vmem:[%s0 + $0x24] sm:$0xf]
  %v24 = vld [vmem:[%s0 + $0x28] sm:$0xf]
  %v25 = vld [vmem:[%s0 + $0x2c] sm:$0xf]
  %v26 = vld [vmem:[%s0 + $0x30] sm:$0xf]
  %v27 = vld [vmem:[%s0 + $0x34] sm:$0xf]
  %v28 = vld [vmem:[%s0 + $0x38] sm:$0xf]
  %v29 = vld [vmem:[%s0 + $0x3c] sm:$0xf]
  %v30 = vld [vmem:[%s0 + $0x40] sm:$0xf]
  %v31 = vld [vmem:[%s0 + $0x44] sm:$0xf]
  %v32 = vld [vmem:[%s0 + $0x48] sm:$0xf]
  %v33 = vld [vmem:[%s0 + $0x4c] sm:$0xf]
  %v34 = vld [vmem:[%s0 + $0x50] sm:$0xf]
  %v35 = vld [vmem:[%s0 + $0x54] sm:$0xf]
  %v36 = vld [vmem:[%s0 + $0x58] sm:$0xf]
  %v37 = vld [vmem:[%s0 + $0x5c] sm:$0xf]
  %v38 = vld [vmem:[%s0 + $0x60] sm:$0xf]
  %v39 = vld [vmem:[%s0 + $0x64] sm:$0xf]
  %v40 = vld [vmem:[%s0 + $0x68] sm:$0xf]
  %v41 = vld [vmem:[%s0 + $0x6c] sm:$0xf]
  %v42 = vld [vmem:[%s0 + $0x70] sm:$0xf]
  %v43 = vld [vmem:[%s0 + $0x74] sm:$0xf]
  %v44 = vld [vmem:[%s0 + $0x78] sm:$0xf]
  %v45 = vld [vmem:[%s0 + $0x7c] sm:$0xf]
  %v46 = vld [vmem:[%s0 + $0x80] sm:$0xf]
  %v47 = vld [vmem:[%s0 + $0x84] sm:$0xf]
  %v48 = vld [vmem:[%s0 + $0x88] sm:$0xf]
  %v49 = vld [vmem:[%s0 + $0x8c] sm:$0xf]
  %v50 = vld [vmem:[%s0 + $0x90] sm:$0xf]
  %v51 = vld [vmem:[%s0 + $0x94] sm:$0xf]
  %v52 = vld [vmem:[%s0 + $0x98] sm:$0xf]
  %v53 = vld [vmem:[%s0 + $0x9c] sm:$0xf]
  %v54 = vld [vmem:[%s0 + $0xa0] sm:$0xf]
  %v55 = vld [vmem:[%s0 + $0xa4] sm:$0xf]
  %v56 = vld [vmem:[%s0 + $0xa8] sm:$0xf]
  %v57 = vld [vmem:[%s0 + $0xac] sm:$0xf]
  %v58 = vld [vmem:[%s0 + $0xb0] sm:$0xf]
  %v59 = vld [vmem:[%s0 + $0xb4] sm:$0xf]
  %v60 = vld [vmem:[%s0 + $0xb8] sm:$0xf]
  %v61 = vld [vmem:[%s0 + $0xbc] sm:$0xf]
  %v62 = vld [vmem:[%s0 + $0xc0] sm:$0xf]
  %v63 = vld [vmem:[%s0 + $0xc4] sm:$0xf]
  %v64 = vld [vmem:[%s0 + $0xc8] sm:$0xf]
  %v65 = vld [vmem:[%s0 + $0xcc] sm:$0xf]
  %v66 = vld [vmem:[%s0 + $0xd0] sm:$0xf]
  %v67 = vld [vmem:[%s0 + $0xd4] sm:$0xf]
  %v68 = vld [vmem:[%s0 + $0xd8] sm:$0xf]
  %v69 = vld [vmem:[%s0 + $0xdc] sm:$0xf]
  %v70 = vld [vmem:[%s0 + $0xe0] sm:$0xf]
  %v71 = vld [vmem:[%s0 + $0xe4] sm:$0xf]
  %v72 = vld [vmem:[%s0 + $0xe8] sm:$0xf]
  %v73 = vld [vmem:[%s0 + $0xec] sm:$0xf]
  %v74 = vld [vmem:[%s0 + $0xf0] sm:$0xf]
  %v75 = vld [vmem:[%s0 + $0xf4] sm:$0xf]
  %v76 = vld [vmem:[%s0 + $0xf8] sm:$0xf]
  %v77 = vld [vmem:[%s0 + $0xfc] sm:$0xf]
  %v78 = vunpack.c.l.bf16 %v14
  %v79 = vunpack.c.l.bf16 %v15
  %v80 = vunpack.c.l.bf16 %v16
  %v81 = vunpack.c.l.bf16 %v17
  %v82 = vunpack.c.l.bf16 %v18
  %v83 = vunpack.c.l.bf16 %v19
  %v84 = vunpack.c.l.bf16 %v20
  %v85 = vunpack.c.l.bf16 %v21
  %v86 = vunpack.c.l.bf16 %v22
  %v87 = vunpack.c.l.bf16 %v23
  %v88 = vunpack.c.l.bf16 %v24
  %v89 = vunpack.c.l.bf16 %v25
  %v90 = vunpack.c.l.bf16 %v26
  %v91 = vunpack.c.l.bf16 %v27
  %v92 = vunpack.c.l.bf16 %v28
  %v93 = vunpack.c.l.bf16 %v29
  %v94 = vunpack.c.l.bf16 %v30
  %v95 = vunpack.c.l.bf16 %v31
  %v96 = vunpack.c.l.bf16 %v32
  %v97 = vunpack.c.l.bf16 %v33
  %v98 = vunpack.c.l.bf16 %v34
  %v99 = vunpack.c.l.bf16 %v35
  %v100 = vunpack.c.l.bf16 %v36
  %v101 = vunpack.c.l.bf16 %v37
  %v102 = vunpack.c.l.bf16 %v38
  %v103 = vunpack.c.l.bf16 %v39
  %v104 = vunpack.c.l.bf16 %v40
  %v105 = vunpack.c.l.bf16 %v41
  %v106 = vunpack.c.l.bf16 %v42
  %v107 = vunpack.c.l.bf16 %v43
  %v108 = vunpack.c.l.bf16 %v44
  %v109 = vunpack.c.l.bf16 %v45
  %v110 = vunpack.c.l.bf16 %v46
  %v111 = vunpack.c.l.bf16 %v47
  %v112 = vunpack.c.l.bf16 %v48
  %v113 = vunpack.c.l.bf16 %v49
  %v114 = vunpack.c.l.bf16 %v50
  %v115 = vunpack.c.l.bf16 %v51
  %v116 = vunpack.c.l.bf16 %v52
  %v117 = vunpack.c.l.bf16 %v53
  %v118 = vunpack.c.l.bf16 %v54
  %v119 = vunpack.c.l.bf16 %v55
  %v120 = vunpack.c.l.bf16 %v56
  %v121 = vunpack.c.l.bf16 %v57
  %v122 = vunpack.c.l.bf16 %v58
  %v123 = vunpack.c.l.bf16 %v59
  %v124 = vunpack.c.l.bf16 %v60
  %v125 = vunpack.c.l.bf16 %v61
  %v126 = vunpack.c.l.bf16 %v62
  %v127 = vunpack.c.l.bf16 %v63
  %v128 = vunpack.c.l.bf16 %v64
  %v129 = vunpack.c.l.bf16 %v65
  %v130 = vunpack.c.l.bf16 %v66
  %v131 = vunpack.c.l.bf16 %v67
  %v132 = vunpack.c.l.bf16 %v68
  %v133 = vunpack.c.l.bf16 %v69
  %v134 = vunpack.c.l.bf16 %v70
  %v135 = vunpack.c.l.bf16 %v71
  %v136 = vunpack.c.l.bf16 %v72
  %v137 = vunpack.c.l.bf16 %v73
  %v138 = vunpack.c.l.bf16 %v74
  %v139 = vunpack.c.l.bf16 %v75
  %v140 = vunpack.c.l.bf16 %v76
  %v141 = vunpack.c.l.bf16 %v77
  %v142 = vld [vmem:[%s1] sm:$0x1]
  %v144 = vlaneseq
  %v145 = vshrl.u32 %v144, 7
  %v146 = vsub.s32 0, %v145
  %v147 = vrot.slane %v142, %v146
  %v149 = vmul.f32 %v78, %v147
  %v150 = vmul.f32 %v79, %v147
  %v151 = vmul.f32 %v80, %v147
  %v152 = vmul.f32 %v81, %v147
  %v153 = vmul.f32 %v82, %v147
  %v154 = vmul.f32 %v83, %v147
  %v155 = vmul.f32 %v84, %v147
  %v156 = vmul.f32 %v85, %v147
  %v157 = vmul.f32 %v86, %v147
  %v158 = vmul.f32 %v87, %v147
  %v159 = vmul.f32 %v88, %v147
  %v160 = vmul.f32 %v89, %v147
  %v161 = vmul.f32 %v90, %v147
  %v162 = vmul.f32 %v91, %v147
  %v163 = vmul.f32 %v92, %v147
  %v164 = vmul.f32 %v93, %v147
  %v165 = vmul.f32 %v94, %v147
  %v166 = vmul.f32 %v95, %v147
  %v167 = vmul.f32 %v96, %v147
  %v168 = vmul.f32 %v97, %v147
  %v169 = vmul.f32 %v98, %v147
  %v170 = vmul.f32 %v99, %v147
  %v171 = vmul.f32 %v100, %v147
  %v172 = vmul.f32 %v101, %v147
  %v173 = vmul.f32 %v102, %v147
  %v174 = vmul.f32 %v103, %v147
  %v175 = vmul.f32 %v104, %v147
  %v176 = vmul.f32 %v105, %v147
  %v177 = vmul.f32 %v106, %v147
  %v178 = vmul.f32 %v107, %v147
  %v179 = vmul.f32 %v108, %v147
  %v180 = vmul.f32 %v109, %v147
  %v181 = vmul.f32 %v110, %v147
  %v182 = vmul.f32 %v111, %v147
  %v183 = vmul.f32 %v112, %v147
  %v184 = vmul.f32 %v113, %v147
  %v185 = vmul.f32 %v114, %v147
  %v186 = vmul.f32 %v115, %v147
  %v187 = vmul.f32 %v116, %v147
  %v188 = vmul.f32 %v117, %v147
  %v189 = vmul.f32 %v118, %v147
  %v190 = vmul.f32 %v119, %v147
  %v191 = vmul.f32 %v120, %v147
  %v192 = vmul.f32 %v121, %v147
  %v193 = vmul.f32 %v122, %v147
  %v194 = vmul.f32 %v123, %v147
  %v195 = vmul.f32 %v124, %v147
  %v196 = vmul.f32 %v125, %v147
  %v197 = vmul.f32 %v126, %v147
  %v198 = vmul.f32 %v127, %v147
  %v199 = vmul.f32 %v128, %v147
  %v200 = vmul.f32 %v129, %v147
  %v201 = vmul.f32 %v130, %v147
  %v202 = vmul.f32 %v131, %v147
  %v203 = vmul.f32 %v132, %v147
  %v204 = vmul.f32 %v133, %v147
  %v205 = vmul.f32 %v134, %v147
  %v206 = vmul.f32 %v135, %v147
  %v207 = vmul.f32 %v136, %v147
  %v208 = vmul.f32 %v137, %v147
  %v209 = vmul.f32 %v138, %v147
  %v210 = vmul.f32 %v139, %v147
  %v211 = vmul.f32 %v140, %v147
  %v212 = vmul.f32 %v141, %v147
  %v213 = vld [vmem:[%s2] sm:$0x1]
  %v215 = vlaneseq
  %v216 = vshrl.u32 %v215, 7
  %v217 = vsub.s32 0, %v216
  %v218 = vrot.slane %v213, %v217
  %v220 = vadd.f32 %v149, %v218
  %v221 = vadd.f32 %v150, %v218
  %v222 = vadd.f32 %v151, %v218
  %v223 = vadd.f32 %v152, %v218
  %v224 = vadd.f32 %v153, %v218
  %v225 = vadd.f32 %v154, %v218
  %v226 = vadd.f32 %v155, %v218
  %v227 = vadd.f32 %v156, %v218
  %v228 = vadd.f32 %v157, %v218
  %v229 = vadd.f32 %v158, %v218
  %v230 = vadd.f32 %v159, %v218
  %v231 = vadd.f32 %v160, %v218
  %v232 = vadd.f32 %v161, %v218
  %v233 = vadd.f32 %v162, %v218
  %v234 = vadd.f32 %v163, %v218
  %v235 = vadd.f32 %v164, %v218
  %v236 = vadd.f32 %v165, %v218
  %v237 = vadd.f32 %v166, %v218
  %v238 = vadd.f32 %v167, %v218
  %v239 = vadd.f32 %v168, %v218
  %v240 = vadd.f32 %v169, %v218
  %v241 = vadd.f32 %v170, %v218
  %v242 = vadd.f32 %v171, %v218
  %v243 = vadd.f32 %v172, %v218
  %v244 = vadd.f32 %v173, %v218
  %v245 = vadd.f32 %v174, %v218
  %v246 = vadd.f32 %v175, %v218
  %v247 = vadd.f32 %v176, %v218
  %v248 = vadd.f32 %v177, %v218
  %v249 = vadd.f32 %v178, %v218
  %v250 = vadd.f32 %v179, %v218
  %v251 = vadd.f32 %v180, %v218
  %v252 = vadd.f32 %v181, %v218
  %v253 = vadd.f32 %v182, %v218
  %v254 = vadd.f32 %v183, %v218
  %v255 = vadd.f32 %v184, %v218
  %v256 = vadd.f32 %v185, %v218
  %v257 = vadd.f32 %v186, %v218
  %v258 = vadd.f32 %v187, %v218
  %v259 = vadd.f32 %v188, %v218
  %v260 = vadd.f32 %v189, %v218
  %v261 = vadd.f32 %v190, %v218
  %v262 = vadd.f32 %v191, %v218
  %v263 = vadd.f32 %v192, %v218
  %v264 = vadd.f32 %v193, %v218
  %v265 = vadd.f32 %v194, %v218
  %v266 = vadd.f32 %v195, %v218
  %v267 = vadd.f32 %v196, %v218
  %v268 = vadd.f32 %v197, %v218
  %v269 = vadd.f32 %v198, %v218
  %v270 = vadd.f32 %v199, %v218
  %v271 = vadd.f32 %v200, %v218
  %v272 = vadd.f32 %v201, %v218
  %v273 = vadd.f32 %v202, %v218
  %v274 = vadd.f32 %v203, %v218
  %v275 = vadd.f32 %v204, %v218
  %v276 = vadd.f32 %v205, %v218
  %v277 = vadd.f32 %v206, %v218
  %v278 = vadd.f32 %v207, %v218
  %v279 = vadd.f32 %v208, %v218
  %v280 = vadd.f32 %v209, %v218
  %v281 = vadd.f32 %v210, %v218
  %v282 = vadd.f32 %v211, %v218
  %v283 = vadd.f32 %v212, %v218
  %v284 = vmax.f32 %v220, 0.0
  %v285 = vmax.f32 %v221, 0.0
  %v286 = vmax.f32 %v222, 0.0
  %v287 = vmax.f32 %v223, 0.0
  %v288 = vmax.f32 %v224, 0.0
  %v289 = vmax.f32 %v225, 0.0
  %v290 = vmax.f32 %v226, 0.0
  %v291 = vmax.f32 %v227, 0.0
  %v292 = vmax.f32 %v228, 0.0
  %v293 = vmax.f32 %v229, 0.0
  %v294 = vmax.f32 %v230, 0.0
  %v295 = vmax.f32 %v231, 0.0
  %v296 = vmax.f32 %v232, 0.0
  %v297 = vmax.f32 %v233, 0.0
  %v298 = vmax.f32 %v234, 0.0
  %v299 = vmax.f32 %v235, 0.0
  %v300 = vmax.f32 %v236, 0.0
  %v301 = vmax.f32 %v237, 0.0
  %v302 = vmax.f32 %v238, 0.0
  %v303 = vmax.f32 %v239, 0.0
  %v304 = vmax.f32 %v240, 0.0
  %v305 = vmax.f32 %v241, 0.0
  %v306 = vmax.f32 %v242, 0.0
  %v307 = vmax.f32 %v243, 0.0
  %v308 = vmax.f32 %v244, 0.0
  %v309 = vmax.f32 %v245, 0.0
  %v310 = vmax.f32 %v246, 0.0
  %v311 = vmax.f32 %v247, 0.0
  %v312 = vmax.f32 %v248, 0.0
  %v313 = vmax.f32 %v249, 0.0
  %v314 = vmax.f32 %v250, 0.0
  %v315 = vmax.f32 %v251, 0.0
  %v316 = vmax.f32 %v252, 0.0
  %v317 = vmax.f32 %v253, 0.0
  %v318 = vmax.f32 %v254, 0.0
  %v319 = vmax.f32 %v255, 0.0
  %v320 = vmax.f32 %v256, 0.0
  %v321 = vmax.f32 %v257, 0.0
  %v322 = vmax.f32 %v258, 0.0
  %v323 = vmax.f32 %v259, 0.0
  %v324 = vmax.f32 %v260, 0.0
  %v325 = vmax.f32 %v261, 0.0
  %v326 = vmax.f32 %v262, 0.0
  %v327 = vmax.f32 %v263, 0.0
  %v328 = vmax.f32 %v264, 0.0
  %v329 = vmax.f32 %v265, 0.0
  %v330 = vmax.f32 %v266, 0.0
  %v331 = vmax.f32 %v267, 0.0
  %v332 = vmax.f32 %v268, 0.0
  %v333 = vmax.f32 %v269, 0.0
  %v334 = vmax.f32 %v270, 0.0
  %v335 = vmax.f32 %v271, 0.0
  %v336 = vmax.f32 %v272, 0.0
  %v337 = vmax.f32 %v273, 0.0
  %v338 = vmax.f32 %v274, 0.0
  %v339 = vmax.f32 %v275, 0.0
  %v340 = vmax.f32 %v276, 0.0
  %v341 = vmax.f32 %v277, 0.0
  %v342 = vmax.f32 %v278, 0.0
  %v343 = vmax.f32 %v279, 0.0
  %v344 = vmax.f32 %v280, 0.0
  %v345 = vmax.f32 %v281, 0.0
  %v346 = vmax.f32 %v282, 0.0
  %v347 = vmax.f32 %v283, 0.0
  %v348 = vpack.c.bf16 %v285, %v284
  %v349 = vpack.c.bf16 %v287, %v286
  %v350 = vpack.c.bf16 %v289, %v288
  %v351 = vpack.c.bf16 %v291, %v290
  %v352 = vpack.c.bf16 %v293, %v292
  %v353 = vpack.c.bf16 %v295, %v294
  %v354 = vpack.c.bf16 %v297, %v296
  %v355 = vpack.c.bf16 %v299, %v298
  %v356 = vpack.c.bf16 %v301, %v300
  %v357 = vpack.c.bf16 %v303, %v302
  %v358 = vpack.c.bf16 %v305, %v304
  %v359 = vpack.c.bf16 %v307, %v306
  %v360 = vpack.c.bf16 %v309, %v308
  %v361 = vpack.c.bf16 %v311, %v310
  %v362 = vpack.c.bf16 %v313, %v312
  %v363 = vpack.c.bf16 %v315, %v314
  %v364 = vpack.c.bf16 %v317, %v316
  %v365 = vpack.c.bf16 %v319, %v318
  %v366 = vpack.c.bf16 %v321, %v320
  %v367 = vpack.c.bf16 %v323, %v322
  %v368 = vpack.c.bf16 %v325, %v324
  %v369 = vpack.c.bf16 %v327, %v326
  %v370 = vpack.c.bf16 %v329, %v328
  %v371 = vpack.c.bf16 %v331, %v330
  %v372 = vpack.c.bf16 %v333, %v332
  %v373 = vpack.c.bf16 %v335, %v334
  %v374 = vpack.c.bf16 %v337, %v336
  %v375 = vpack.c.bf16 %v339, %v338
  %v376 = vpack.c.bf16 %v341, %v340
  %v377 = vpack.c.bf16 %v343, %v342
  %v378 = vpack.c.bf16 %v345, %v344
  %v379 = vpack.c.bf16 %v347, %v346
  %v412 = vunpack.c.l.b16 %v348
  %v413 = vunpack.c.h.b16 %v348
  %v414 = vunpack.c.l.b16 %v349
  %v415 = vunpack.c.h.b16 %v349
  %v416 = vunpack.c.l.b16 %v350
  %v417 = vunpack.c.h.b16 %v350
  %v418 = vunpack.c.l.b16 %v351
  %v419 = vunpack.c.h.b16 %v351
  %v420 = vunpack.c.l.b16 %v352
  %v421 = vunpack.c.h.b16 %v352
  %v422 = vunpack.c.l.b16 %v353
  %v423 = vunpack.c.h.b16 %v353
  %v424 = vunpack.c.l.b16 %v354
  %v425 = vunpack.c.h.b16 %v354
  %v426 = vunpack.c.l.b16 %v355
  %v427 = vunpack.c.h.b16 %v355
  %v428 = vunpack.c.l.b16 %v356
  %v429 = vunpack.c.h.b16 %v356
  %v430 = vunpack.c.l.b16 %v357
  %v431 = vunpack.c.h.b16 %v357
  %v432 = vunpack.c.l.b16 %v358
  %v433 = vunpack.c.h.b16 %v358
  %v434 = vunpack.c.l.b16 %v359
  %v435 = vunpack.c.h.b16 %v359
  %v436 = vunpack.c.l.b16 %v360
  %v437 = vunpack.c.h.b16 %v360
  %v438 = vunpack.c.l.b16 %v361
  %v439 = vunpack.c.h.b16 %v361
  %v440 = vunpack.c.l.b16 %v362
  %v441 = vunpack.c.h.b16 %v362
  %v442 = vunpack.c.l.b16 %v363
  %v443 = vunpack.c.h.b16 %v363
  %v444 = vunpack.c.l.b16 %v364
  %v445 = vunpack.c.h.b16 %v364
  %v446 = vunpack.c.l.b16 %v365
  %v447 = vunpack.c.h.b16 %v365
  %v448 = vunpack.c.l.b16 %v366
  %v449 = vunpack.c.h.b16 %v366
  %v450 = vunpack.c.l.b16 %v367
  %v451 = vunpack.c.h.b16 %v367
  %v452 = vunpack.c.l.b16 %v368
  %v453 = vunpack.c.h.b16 %v368
  %v454 = vunpack.c.l.b16 %v369
  %v455 = vunpack.c.h.b16 %v369
  %v456 = vunpack.c.l.b16 %v370
  %v457 = vunpack.c.h.b16 %v370
  %v458 = vunpack.c.l.b16 %v371
  %v459 = vunpack.c.h.b16 %v371
  %v460 = vunpack.c.l.b16 %v372
  %v461 = vunpack.c.h.b16 %v372
  %v462 = vunpack.c.l.b16 %v373
  %v463 = vunpack.c.h.b16 %v373
  %v464 = vunpack.c.l.b16 %v374
  %v465 = vunpack.c.h.b16 %v374
  %v466 = vunpack.c.l.b16 %v375
  %v467 = vunpack.c.h.b16 %v375
  %v468 = vunpack.c.l.b16 %v376
  %v469 = vunpack.c.h.b16 %v376
  %v470 = vunpack.c.l.b16 %v377
  %v471 = vunpack.c.h.b16 %v377
  %v472 = vunpack.c.l.b16 %v378
  %v473 = vunpack.c.h.b16 %v378
  %v474 = vunpack.c.l.b16 %v379
  %v475 = vunpack.c.h.b16 %v379
  %v476 = vpack.c.b16 %v412, %v412
  %v477 = vpack.c.b16 %v413, %v413
  %v478 = vpack.c.b16 %v414, %v414
  %v479 = vpack.c.b16 %v415, %v415
  %v480 = vpack.c.b16 %v416, %v416
  %v481 = vpack.c.b16 %v417, %v417
  %v482 = vpack.c.b16 %v418, %v418
  %v483 = vpack.c.b16 %v419, %v419
  %v484 = vpack.c.b16 %v420, %v420
  %v485 = vpack.c.b16 %v421, %v421
  %v486 = vpack.c.b16 %v422, %v422
  %v487 = vpack.c.b16 %v423, %v423
  %v488 = vpack.c.b16 %v424, %v424
  %v489 = vpack.c.b16 %v425, %v425
  %v490 = vpack.c.b16 %v426, %v426
  %v491 = vpack.c.b16 %v427, %v427
  %v492 = vpack.c.b16 %v428, %v428
  %v493 = vpack.c.b16 %v429, %v429
  %v494 = vpack.c.b16 %v430, %v430
  %v495 = vpack.c.b16 %v431, %v431
  %v496 = vpack.c.b16 %v432, %v432
  %v497 = vpack.c.b16 %v433, %v433
  %v498 = vpack.c.b16 %v434, %v434
  %v499 = vpack.c.b16 %v435, %v435
  %v500 = vpack.c.b16 %v436, %v436
  %v501 = vpack.c.b16 %v437, %v437
  %v502 = vpack.c.b16 %v438, %v438
  %v503 = vpack.c.b16 %v439, %v439
  %v504 = vpack.c.b16 %v440, %v440
  %v505 = vpack.c.b16 %v441, %v441
  %v506 = vpack.c.b16 %v442, %v442
  %v507 = vpack.c.b16 %v443, %v443
  %v508 = vpack.c.b16 %v444, %v444
  %v509 = vpack.c.b16 %v445, %v445
  %v510 = vpack.c.b16 %v446, %v446
  %v511 = vpack.c.b16 %v447, %v447
  %v512 = vpack.c.b16 %v448, %v448
  %v513 = vpack.c.b16 %v449, %v449
  %v514 = vpack.c.b16 %v450, %v450
  %v515 = vpack.c.b16 %v451, %v451
  %v516 = vpack.c.b16 %v452, %v452
  %v517 = vpack.c.b16 %v453, %v453
  %v518 = vpack.c.b16 %v454, %v454
  %v519 = vpack.c.b16 %v455, %v455
  %v520 = vpack.c.b16 %v456, %v456
  %v521 = vpack.c.b16 %v457, %v457
  %v522 = vpack.c.b16 %v458, %v458
  %v523 = vpack.c.b16 %v459, %v459
  %v524 = vpack.c.b16 %v460, %v460
  %v525 = vpack.c.b16 %v461, %v461
  %v526 = vpack.c.b16 %v462, %v462
  %v527 = vpack.c.b16 %v463, %v463
  %v528 = vpack.c.b16 %v464, %v464
  %v529 = vpack.c.b16 %v465, %v465
  %v530 = vpack.c.b16 %v466, %v466
  %v531 = vpack.c.b16 %v467, %v467
  %v532 = vpack.c.b16 %v468, %v468
  %v533 = vpack.c.b16 %v469, %v469
  %v534 = vpack.c.b16 %v470, %v470
  %v535 = vpack.c.b16 %v471, %v471
  %v536 = vpack.c.b16 %v472, %v472
  %v537 = vpack.c.b16 %v473, %v473
  %v538 = vpack.c.b16 %v474, %v474
  %v539 = vpack.c.b16 %v475, %v475
  %vm604 = vcmask 125952
  %605 = vst.msk [vmem:[%s3] sm:$0xf] %vm604, %v476
  %606 = vst.msk [vmem:[%s3 + $0x4] sm:$0xf] %vm604, %v477
  %607 = vst.msk [vmem:[%s3 + $0x8] sm:$0xf] %vm604, %v478
  %608 = vst.msk [vmem:[%s3 + $0xc] sm:$0xf] %vm604, %v479
  %609 = vst.msk [vmem:[%s3 + $0x10] sm:$0xf] %vm604, %v480
  %610 = vst.msk [vmem:[%s3 + $0x14] sm:$0xf] %vm604, %v481
  %611 = vst.msk [vmem:[%s3 + $0x18] sm:$0xf] %vm604, %v482
  %612 = vst.msk [vmem:[%s3 + $0x1c] sm:$0xf] %vm604, %v483
  %613 = vst.msk [vmem:[%s3 + $0x20] sm:$0xf] %vm604, %v484
  %614 = vst.msk [vmem:[%s3 + $0x24] sm:$0xf] %vm604, %v485
  %615 = vst.msk [vmem:[%s3 + $0x28] sm:$0xf] %vm604, %v486
  %616 = vst.msk [vmem:[%s3 + $0x2c] sm:$0xf] %vm604, %v487
  %617 = vst.msk [vmem:[%s3 + $0x30] sm:$0xf] %vm604, %v488
  %618 = vst.msk [vmem:[%s3 + $0x34] sm:$0xf] %vm604, %v489
  %619 = vst.msk [vmem:[%s3 + $0x38] sm:$0xf] %vm604, %v490
  %620 = vst.msk [vmem:[%s3 + $0x3c] sm:$0xf] %vm604, %v491
  %621 = vst.msk [vmem:[%s3 + $0x40] sm:$0xf] %vm604, %v492
  %622 = vst.msk [vmem:[%s3 + $0x44] sm:$0xf] %vm604, %v493
  %623 = vst.msk [vmem:[%s3 + $0x48] sm:$0xf] %vm604, %v494
  %624 = vst.msk [vmem:[%s3 + $0x4c] sm:$0xf] %vm604, %v495
  %625 = vst.msk [vmem:[%s3 + $0x50] sm:$0xf] %vm604, %v496
  %626 = vst.msk [vmem:[%s3 + $0x54] sm:$0xf] %vm604, %v497
  %627 = vst.msk [vmem:[%s3 + $0x58] sm:$0xf] %vm604, %v498
  %628 = vst.msk [vmem:[%s3 + $0x5c] sm:$0xf] %vm604, %v499
  %629 = vst.msk [vmem:[%s3 + $0x60] sm:$0xf] %vm604, %v500
  %630 = vst.msk [vmem:[%s3 + $0x64] sm:$0xf] %vm604, %v501
  %631 = vst.msk [vmem:[%s3 + $0x68] sm:$0xf] %vm604, %v502
  %632 = vst.msk [vmem:[%s3 + $0x6c] sm:$0xf] %vm604, %v503
  %633 = vst.msk [vmem:[%s3 + $0x70] sm:$0xf] %vm604, %v504
  %634 = vst.msk [vmem:[%s3 + $0x74] sm:$0xf] %vm604, %v505
  %635 = vst.msk [vmem:[%s3 + $0x78] sm:$0xf] %vm604, %v506
  %636 = vst.msk [vmem:[%s3 + $0x7c] sm:$0xf] %vm604, %v507
  %637 = vst.msk [vmem:[%s3 + $0x80] sm:$0xf] %vm604, %v508
  %638 = vst.msk [vmem:[%s3 + $0x84] sm:$0xf] %vm604, %v509
  %639 = vst.msk [vmem:[%s3 + $0x88] sm:$0xf] %vm604, %v510
  %640 = vst.msk [vmem:[%s3 + $0x8c] sm:$0xf] %vm604, %v511
  %641 = vst.msk [vmem:[%s3 + $0x90] sm:$0xf] %vm604, %v512
  %642 = vst.msk [vmem:[%s3 + $0x94] sm:$0xf] %vm604, %v513
  %643 = vst.msk [vmem:[%s3 + $0x98] sm:$0xf] %vm604, %v514
  %644 = vst.msk [vmem:[%s3 + $0x9c] sm:$0xf] %vm604, %v515
  %645 = vst.msk [vmem:[%s3 + $0xa0] sm:$0xf] %vm604, %v516
  %646 = vst.msk [vmem:[%s3 + $0xa4] sm:$0xf] %vm604, %v517
  %647 = vst.msk [vmem:[%s3 + $0xa8] sm:$0xf] %vm604, %v518
  %648 = vst.msk [vmem:[%s3 + $0xac] sm:$0xf] %vm604, %v519
  %649 = vst.msk [vmem:[%s3 + $0xb0] sm:$0xf] %vm604, %v520
  %650 = vst.msk [vmem:[%s3 + $0xb4] sm:$0xf] %vm604, %v521
  %651 = vst.msk [vmem:[%s3 + $0xb8] sm:$0xf] %vm604, %v522
  %652 = vst.msk [vmem:[%s3 + $0xbc] sm:$0xf] %vm604, %v523
  %653 = vst.msk [vmem:[%s3 + $0xc0] sm:$0xf] %vm604, %v524
  %654 = vst.msk [vmem:[%s3 + $0xc4] sm:$0xf] %vm604, %v525
  %655 = vst.msk [vmem:[%s3 + $0xc8] sm:$0xf] %vm604, %v526
  %656 = vst.msk [vmem:[%s3 + $0xcc] sm:$0xf] %vm604, %v527
  %657 = vst.msk [vmem:[%s3 + $0xd0] sm:$0xf] %vm604, %v528
  %658 = vst.msk [vmem:[%s3 + $0xd4] sm:$0xf] %vm604, %v529
  %659 = vst.msk [vmem:[%s3 + $0xd8] sm:$0xf] %vm604, %v530
  %660 = vst.msk [vmem:[%s3 + $0xdc] sm:$0xf] %vm604, %v531
  %661 = vst.msk [vmem:[%s3 + $0xe0] sm:$0xf] %vm604, %v532
  %662 = vst.msk [vmem:[%s3 + $0xe4] sm:$0xf] %vm604, %v533
  %663 = vst.msk [vmem:[%s3 + $0xe8] sm:$0xf] %vm604, %v534
  %664 = vst.msk [vmem:[%s3 + $0xec] sm:$0xf] %vm604, %v535
  %665 = vst.msk [vmem:[%s3 + $0xf0] sm:$0xf] %vm604, %v536
  %666 = vst.msk [vmem:[%s3 + $0xf4] sm:$0xf] %vm604, %v537
  %667 = vst.msk [vmem:[%s3 + $0xf8] sm:$0xf] %vm604, %v538
  %668 = vst.msk [vmem:[%s3 + $0xfc] sm:$0xf] %vm604, %v539
  // Predicated region
  $region14: #{bottleneck_forward.7} parent=0 // pred_check
    _
  $region15: #{bottleneck_forward.7} parent=0 // pred_check_branch
    %670 = sbr.rel (0) target = $region17
  $region16: #{bottleneck_forward.7} parent=0 // pred_region
    _
  $region17: #{bottleneck_forward.7} parent=0 // pred_fallthru
    _
  // Predicated region
  $region18: #{bottleneck_forward.7} parent=0 // pred_check
    _
  $region19: #{bottleneck_forward.7} parent=0 // pred_check_branch
    %672 = sbr.rel (0) target = $region21
  $region20: #{bottleneck_forward.7} parent=0 // pred_region
    _
  $region21: #{bottleneck_forward.7} parent=0 // pred_fallthru
    _

// kernel: bottleneck_forward.6
$region0: #{bottleneck_forward.6}
  #allocation0 [shape = 'u32[]', space=smem, size = 0x4, offset = 0x4, fixed_abs, tag = 'smem constant byte address 0x4 - core index']
  #allocation1 [shape = 'u32[144,128]{1,0:T(1,128)}', space=vmem, size = 0x12000, scoped, tag = 'internal scratch']
  %s0 = inlined_call_operand.vmem [shape: bf16[512,8], index: 0, kind: input, shape index: {}]
  %s1 = inlined_call_operand.vmem [shape: bf16[8,16], index: 1, kind: input, shape index: {}]
  %s2 = inlined_call_operand.vmem [shape: bf16[512,16], index: 2, kind: output, shape index: {0}]
  %s3 = inlined_call_operand.vmem [shape: f32[1,2,16], index: 3, kind: output, shape index: {1}]
  %4 = xla_tuple %s2, %s3
  %s5 = sld [smem:[#allocation0]]
  $region26: #{bottleneck_forward.6} parent=0
    _
  %s7 = ssub.s32 1, %s5
  %s8 = scalar_select 0, %s7, %s5
  // Predicated region
  $region2: #{bottleneck_forward.6} parent=0 // pred_check
    _
  $region3: #{bottleneck_forward.6} parent=0 // pred_check_branch
    %10 = sbr.rel (0) target = $region5
  $region4: #{bottleneck_forward.6} parent=0 // pred_region
    _
  $region5: #{bottleneck_forward.6} parent=0 // pred_fallthru
    _
  // Predicated region
  $region6: #{bottleneck_forward.6} parent=0 // pred_check
    _
  $region7: #{bottleneck_forward.6} parent=0 // pred_check_branch
    %12 = sbr.rel (0) target = $region9
  $region8: #{bottleneck_forward.6} parent=0 // pred_region
    _
  $region9: #{bottleneck_forward.6} parent=0 // pred_fallthru
    _
  %v14 = vld [vmem:[%s0] sm:$0xf]
  %v15 = vld [vmem:[%s0 + $0x4] sm:$0xf]
  %v16 = vld [vmem:[%s0 + $0x8] sm:$0xf]
  %v17 = vld [vmem:[%s0 + $0xc] sm:$0xf]
  %v18 = vld [vmem:[%s0 + $0x10] sm:$0xf]
  %v19 = vld [vmem:[%s0 + $0x14] sm:$0xf]
  %v20 = vld [vmem:[%s0 + $0x18] sm:$0xf]
  %v21 = vld [vmem:[%s0 + $0x1c] sm:$0xf]
  %v22 = vld [vmem:[%s0 + $0x20] sm:$0xf]
  %v23 = vld [vmem:[%s0 + $0x24] sm:$0xf]
  %v24 = vld [vmem:[%s0 + $0x28] sm:$0xf]
  %v25 = vld [vmem:[%s0 + $0x2c] sm:$0xf]
  %v26 = vld [vmem:[%s0 + $0x30] sm:$0xf]
  %v27 = vld [vmem:[%s0 + $0x34] sm:$0xf]
  %v28 = vld [vmem:[%s0 + $0x38] sm:$0xf]
  %v29 = vld [vmem:[%s0 + $0x3c] sm:$0xf]
  %v30 = vld [vmem:[%s0 + $0x40] sm:$0xf]
  %v31 = vld [vmem:[%s0 + $0x44] sm:$0xf]
  %v32 = vld [vmem:[%s0 + $0x48] sm:$0xf]
  %v33 = vld [vmem:[%s0 + $0x4c] sm:$0xf]
  %v34 = vld [vmem:[%s0 + $0x50] sm:$0xf]
  %v35 = vld [vmem:[%s0 + $0x54] sm:$0xf]
  %v36 = vld [vmem:[%s0 + $0x58] sm:$0xf]
  %v37 = vld [vmem:[%s0 + $0x5c] sm:$0xf]
  %v38 = vld [vmem:[%s0 + $0x60] sm:$0xf]
  %v39 = vld [vmem:[%s0 + $0x64] sm:$0xf]
  %v40 = vld [vmem:[%s0 + $0x68] sm:$0xf]
  %v41 = vld [vmem:[%s0 + $0x6c] sm:$0xf]
  %v42 = vld [vmem:[%s0 + $0x70] sm:$0xf]
  %v43 = vld [vmem:[%s0 + $0x74] sm:$0xf]
  %v44 = vld [vmem:[%s0 + $0x78] sm:$0xf]
  %v45 = vld [vmem:[%s0 + $0x7c] sm:$0xf]
  %v46 = vld [vmem:[%s0 + $0x80] sm:$0xf]
  %v47 = vld [vmem:[%s0 + $0x84] sm:$0xf]
  %v48 = vld [vmem:[%s0 + $0x88] sm:$0xf]
  %v49 = vld [vmem:[%s0 + $0x8c] sm:$0xf]
  %v50 = vld [vmem:[%s0 + $0x90] sm:$0xf]
  %v51 = vld [vmem:[%s0 + $0x94] sm:$0xf]
  %v52 = vld [vmem:[%s0 + $0x98] sm:$0xf]
  %v53 = vld [vmem:[%s0 + $0x9c] sm:$0xf]
  %v54 = vld [vmem:[%s0 + $0xa0] sm:$0xf]
  %v55 = vld [vmem:[%s0 + $0xa4] sm:$0xf]
  %v56 = vld [vmem:[%s0 + $0xa8] sm:$0xf]
  %v57 = vld [vmem:[%s0 + $0xac] sm:$0xf]
  %v58 = vld [vmem:[%s0 + $0xb0] sm:$0xf]
  %v59 = vld [vmem:[%s0 + $0xb4] sm:$0xf]
  %v60 = vld [vmem:[%s0 + $0xb8] sm:$0xf]
  %v61 = vld [vmem:[%s0 + $0xbc] sm:$0xf]
  %v62 = vld [vmem:[%s0 + $0xc0] sm:$0xf]
  %v63 = vld [vmem:[%s0 + $0xc4] sm:$0xf]
  %v64 = vld [vmem:[%s0 + $0xc8] sm:$0xf]
  %v65 = vld [vmem:[%s0 + $0xcc] sm:$0xf]
  %v66 = vld [vmem:[%s0 + $0xd0] sm:$0xf]
  %v67 = vld [vmem:[%s0 + $0xd4] sm:$0xf]
  %v68 = vld [vmem:[%s0 + $0xd8] sm:$0xf]
  %v69 = vld [vmem:[%s0 + $0xdc] sm:$0xf]
  %v70 = vld [vmem:[%s0 + $0xe0] sm:$0xf]
  %v71 = vld [vmem:[%s0 + $0xe4] sm:$0xf]
  %v72 = vld [vmem:[%s0 + $0xe8] sm:$0xf]
  %v73 = vld [vmem:[%s0 + $0xec] sm:$0xf]
  %v74 = vld [vmem:[%s0 + $0xf0] sm:$0xf]
  %v75 = vld [vmem:[%s0 + $0xf4] sm:$0xf]
  %v76 = vld [vmem:[%s0 + $0xf8] sm:$0xf]
  %v77 = vld [vmem:[%s0 + $0xfc] sm:$0xf]
  %v78 = vld [vmem:[%s1] sm:$0xf]
  %v143 = vunpack.c.l.b16 %v14
  %v144 = vunpack.c.l.b16 %v15
  %v145 = vunpack.c.l.b16 %v16
  %v146 = vunpack.c.l.b16 %v17
  %v147 = vunpack.c.l.b16 %v18
  %v148 = vunpack.c.l.b16 %v19
  %v149 = vunpack.c.l.b16 %v20
  %v150 = vunpack.c.l.b16 %v21
  %v151 = vunpack.c.l.b16 %v22
  %v152 = vunpack.c.l.b16 %v23
  %v153 = vunpack.c.l.b16 %v24
  %v154 = vunpack.c.l.b16 %v25
  %v155 = vunpack.c.l.b16 %v26
  %v156 = vunpack.c.l.b16 %v27
  %v157 = vunpack.c.l.b16 %v28
  %v158 = vunpack.c.l.b16 %v29
  %v159 = vunpack.c.l.b16 %v30
  %v160 = vunpack.c.l.b16 %v31
  %v161 = vunpack.c.l.b16 %v32
  %v162 = vunpack.c.l.b16 %v33
  %v163 = vunpack.c.l.b16 %v34
  %v164 = vunpack.c.l.b16 %v35
  %v165 = vunpack.c.l.b16 %v36
  %v166 = vunpack.c.l.b16 %v37
  %v167 = vunpack.c.l.b16 %v38
  %v168 = vunpack.c.l.b16 %v39
  %v169 = vunpack.c.l.b16 %v40
  %v170 = vunpack.c.l.b16 %v41
  %v171 = vunpack.c.l.b16 %v42
  %v172 = vunpack.c.l.b16 %v43
  %v173 = vunpack.c.l.b16 %v44
  %v174 = vunpack.c.l.b16 %v45
  %v175 = vunpack.c.l.b16 %v46
  %v176 = vunpack.c.l.b16 %v47
  %v177 = vunpack.c.l.b16 %v48
  %v178 = vunpack.c.l.b16 %v49
  %v179 = vunpack.c.l.b16 %v50
  %v180 = vunpack.c.l.b16 %v51
  %v181 = vunpack.c.l.b16 %v52
  %v182 = vunpack.c.l.b16 %v53
  %v183 = vunpack.c.l.b16 %v54
  %v184 = vunpack.c.l.b16 %v55
  %v185 = vunpack.c.l.b16 %v56
  %v186 = vunpack.c.l.b16 %v57
  %v187 = vunpack.c.l.b16 %v58
  %v188 = vunpack.c.l.b16 %v59
  %v189 = vunpack.c.l.b16 %v60
  %v190 = vunpack.c.l.b16 %v61
  %v191 = vunpack.c.l.b16 %v62
  %v192 = vunpack.c.l.b16 %v63
  %v193 = vunpack.c.l.b16 %v64
  %v194 = vunpack.c.l.b16 %v65
  %v195 = vunpack.c.l.b16 %v66
  %v196 = vunpack.c.l.b16 %v67
  %v197 = vunpack.c.l.b16 %v68
  %v198 = vunpack.c.l.b16 %v69
  %v199 = vunpack.c.l.b16 %v70
  %v200 = vunpack.c.l.b16 %v71
  %v201 = vunpack.c.l.b16 %v72
  %v202 = vunpack.c.l.b16 %v73
  %v203 = vunpack.c.l.b16 %v74
  %v204 = vunpack.c.l.b16 %v75
  %v205 = vunpack.c.l.b16 %v76
  %v206 = vunpack.c.l.b16 %v77
  %v207 = vpack.c.b16 %v144, %v143
  %v208 = vpack.c.b16 %v146, %v145
  %v209 = vpack.c.b16 %v148, %v147
  %v210 = vpack.c.b16 %v150, %v149
  %v211 = vpack.c.b16 %v152, %v151
  %v212 = vpack.c.b16 %v154, %v153
  %v213 = vpack.c.b16 %v156, %v155
  %v214 = vpack.c.b16 %v158, %v157
  %v215 = vpack.c.b16 %v160, %v159
  %v216 = vpack.c.b16 %v162, %v161
  %v217 = vpack.c.b16 %v164, %v163
  %v218 = vpack.c.b16 %v166, %v165
  %v219 = vpack.c.b16 %v168, %v167
  %v220 = vpack.c.b16 %v170, %v169
  %v221 = vpack.c.b16 %v172, %v171
  %v222 = vpack.c.b16 %v174, %v173
  %v223 = vpack.c.b16 %v176, %v175
  %v224 = vpack.c.b16 %v178, %v177
  %v225 = vpack.c.b16 %v180, %v179
  %v226 = vpack.c.b16 %v182, %v181
  %v227 = vpack.c.b16 %v184, %v183
  %v228 = vpack.c.b16 %v186, %v185
  %v229 = vpack.c.b16 %v188, %v187
  %v230 = vpack.c.b16 %v190, %v189
  %v231 = vpack.c.b16 %v192, %v191
  %v232 = vpack.c.b16 %v194, %v193
  %v233 = vpack.c.b16 %v196, %v195
  %v234 = vpack.c.b16 %v198, %v197
  %v235 = vpack.c.b16 %v200, %v199
  %v236 = vpack.c.b16 %v202, %v201
  %v237 = vpack.c.b16 %v204, %v203
  %v238 = vpack.c.b16 %v206, %v205
  %vm239 = vcmask 64512
  %v241 = vsel %vm239, %v207, 0
  %v244 = vsel %vm239, %v208, 0
  %v247 = vsel %vm239, %v209, 0
  %v250 = vsel %vm239, %v210, 0
  %v253 = vsel %vm239, %v211, 0
  %v256 = vsel %vm239, %v212, 0
  %v259 = vsel %vm239, %v213, 0
  %v262 = vsel %vm239, %v214, 0
  %v265 = vsel %vm239, %v215, 0
  %v268 = vsel %vm239, %v216, 0
  %v271 = vsel %vm239, %v217, 0
  %v274 = vsel %vm239, %v218, 0
  %v277 = vsel %vm239, %v219, 0
  %v280 = vsel %vm239, %v220, 0
  %v283 = vsel %vm239, %v221, 0
  %v286 = vsel %vm239, %v222, 0
  %v289 = vsel %vm239, %v223, 0
  %v292 = vsel %vm239, %v224, 0
  %v295 = vsel %vm239, %v225, 0
  %v298 = vsel %vm239, %v226, 0
  %v301 = vsel %vm239, %v227, 0
  %v304 = vsel %vm239, %v228, 0
  %v307 = vsel %vm239, %v229, 0
  %v310 = vsel %vm239, %v230, 0
  %v313 = vsel %vm239, %v231, 0
  %v316 = vsel %vm239, %v232, 0
  %v319 = vsel %vm239, %v233, 0
  %v322 = vsel %vm239, %v234, 0
  %v325 = vsel %vm239, %v235, 0
  %v328 = vsel %vm239, %v236, 0
  %v331 = vsel %vm239, %v237, 0
  %v334 = vsel %vm239, %v238, 0
  %vm336 = vcmask 1043456
  %v338 = vsel %vm336, %v78, 0
  %340 = vmatprep.subr.bf16.mxu0 0
  %341 = vmatpush1.bf16.msra.mxu0 0
  %342 = vmatprep.subr.bf16.mxu0 0
  %343 = vmatpush1.bf16.msra.mxu0 0
  %344 = vmatprep.subr.bf16.mxu0 0
  %345 = vmatpush1.bf16.msra.mxu0 0
  %346 = vmatprep.subr.bf16.mxu0 0
  %347 = vmatpush1.bf16.msra.mxu0 0
  %348 = vmatprep.subr.bf16.mxu0 0
  %349 = vmatpush1.bf16.msra.mxu0 0
  %350 = vmatprep.subr.bf16.mxu0 0
  %351 = vmatpush1.bf16.msra.mxu0 0
  %352 = vmatprep.subr.bf16.mxu0 0
  %353 = vmatpush1.bf16.msra.mxu0 0
  %354 = vmatprep.subr.bf16.mxu0 0
  %355 = vmatpush1.bf16.msra.mxu0 %v338
  %356 = vmatprep.subr.bf16.mxu0 0
  %357 = vmatpush2.bf16.msra.mxu0 0
  %358 = vmatprep.subr.bf16.mxu0 0
  %359 = vmatpush2.bf16.msra.mxu0 0
  %360 = vmatprep.subr.bf16.mxu0 0
  %361 = vmatpush2.bf16.msra.mxu0 0
  %362 = vmatprep.subr.bf16.mxu0 0
  %363 = vmatpush2.bf16.msra.mxu0 0
  %364 = vmatprep.subr.bf16.mxu0 0
  %365 = vmatpush2.bf16.msra.mxu0 0
  %366 = vmatprep.subr.bf16.mxu0 0
  %367 = vmatpush2.bf16.msra.mxu0 0
  %368 = vmatprep.subr.bf16.mxu0 0
  %369 = vmatpush2.bf16.msra.mxu0 0
  %370 = vmatprep.subr.bf16.mxu0 0
  %371 = vmatpush2.bf16.msra.mxu0 0
  %372 = vmatprep.mubr.bf16.mxu0 0
  %373 = vmatmul.mubr.bf16.gmra.mxu0 %v241
  %v374 = vpop.f32.mrf.mxu0
  %v375 = vadd.f32 0.0, %v374
  %v376 = vpop.f32.mrf.mxu0
  %v377 = vpop.f32.mrf.mxu0
  %v378 = vadd.f32 0.0, %v377
  %v379 = vpop.f32.mrf.mxu0
  %380 = vmatprep.mubr.bf16.mxu0 0
  %381 = vmatmul.mubr.bf16.gmra.mxu0 %v244
  %v382 = vpop.f32.mrf.mxu0
  %v383 = vadd.f32 0.0, %v382
  %v384 = vpop.f32.mrf.mxu0
  %v385 = vpop.f32.mrf.mxu0
  %v386 = vadd.f32 0.0, %v385
  %v387 = vpop.f32.mrf.mxu0
  %388 = vmatprep.mubr.bf16.mxu0 0
  %389 = vmatmul.mubr.bf16.gmra.mxu0 %v247
  %v390 = vpop.f32.mrf.mxu0
  %v391 = vadd.f32 0.0, %v390
  %v392 = vpop.f32.mrf.mxu0
  %v393 = vpop.f32.mrf.mxu0
  %v394 = vadd.f32 0.0, %v393
  %v395 = vpop.f32.mrf.mxu0
  %396 = vmatprep.mubr.bf16.mxu0 0
  %397 = vmatmul.mubr.bf16.gmra.mxu0 %v250
  %v398 = vpop.f32.mrf.mxu0
  %v399 = vadd.f32 0.0, %v398
  %v400 = vpop.f32.mrf.mxu0
  %v401 = vpop.f32.mrf.mxu0
  %v402 = vadd.f32 0.0, %v401
  %v403 = vpop.f32.mrf.mxu0
  %404 = vmatprep.mubr.bf16.mxu0 0
  %405 = vmatmul.mubr.bf16.gmra.mxu0 %v253
  %v406 = vpop.f32.mrf.mxu0
  %v407 = vadd.f32 0.0, %v406
  %v408 = vpop.f32.mrf.mxu0
  %v409 = vpop.f32.mrf.mxu0
  %v410 = vadd.f32 0.0, %v409
  %v411 = vpop.f32.mrf.mxu0
  %412 = vmatprep.mubr.bf16.mxu0 0
  %413 = vmatmul.mubr.bf16.gmra.mxu0 %v256
  %v414 = vpop.f32.mrf.mxu0
  %v415 = vadd.f32 0.0, %v414
  %v416 = vpop.f32.mrf.mxu0
  %v417 = vpop.f32.mrf.mxu0
  %v418 = vadd.f32 0.0, %v417
  %v419 = vpop.f32.mrf.mxu0
  %420 = vmatprep.mubr.bf16.mxu0 0
  %421 = vmatmul.mubr.bf16.gmra.mxu0 %v259
  %v422 = vpop.f32.mrf.mxu0
  %v423 = vadd.f32 0.0, %v422
  %v424 = vpop.f32.mrf.mxu0
  %v425 = vpop.f32.mrf.mxu0
  %v426 = vadd.f32 0.0, %v425
  %v427 = vpop.f32.mrf.mxu0
  %428 = vmatprep.mubr.bf16.mxu0 0
  %429 = vmatmul.mubr.bf16.gmra.mxu0 %v262
  %v430 = vpop.f32.mrf.mxu0
  %v431 = vadd.f32 0.0, %v430
  %v432 = vpop.f32.mrf.mxu0
  %v433 = vpop.f32.mrf.mxu0
  %v434 = vadd.f32 0.0, %v433
  %v435 = vpop.f32.mrf.mxu0
  %436 = vmatprep.mubr.bf16.mxu0 0
  %437 = vmatmul.mubr.bf16.gmra.mxu0 %v265
  %v438 = vpop.f32.mrf.mxu0
  %v439 = vadd.f32 0.0, %v438
  %v440 = vpop.f32.mrf.mxu0
  %v441 = vpop.f32.mrf.mxu0
  %v442 = vadd.f32 0.0, %v441
  %v443 = vpop.f32.mrf.mxu0
  %444 = vmatprep.mubr.bf16.mxu0 0
  %445 = vmatmul.mubr.bf16.gmra.mxu0 %v268
  %v446 = vpop.f32.mrf.mxu0
  %v447 = vadd.f32 0.0, %v446
  %v448 = vpop.f32.mrf.mxu0
  %v449 = vpop.f32.mrf.mxu0
  %v450 = vadd.f32 0.0, %v449
  %v451 = vpop.f32.mrf.mxu0
  %452 = vmatprep.mubr.bf16.mxu0 0
  %453 = vmatmul.mubr.bf16.gmra.mxu0 %v271
  %v454 = vpop.f32.mrf.mxu0
  %v455 = vadd.f32 0.0, %v454
  %v456 = vpop.f32.mrf.mxu0
  %v457 = vpop.f32.mrf.mxu0
  %v458 = vadd.f32 0.0, %v457
  %v459 = vpop.f32.mrf.mxu0
  %460 = vmatprep.mubr.bf16.mxu0 0
  %461 = vmatmul.mubr.bf16.gmra.mxu0 %v274
  %v462 = vpop.f32.mrf.mxu0
  %v463 = vadd.f32 0.0, %v462
  %v464 = vpop.f32.mrf.mxu0
  %v465 = vpop.f32.mrf.mxu0
  %v466 = vadd.f32 0.0, %v465
  %v467 = vpop.f32.mrf.mxu0
  %468 = vmatprep.mubr.bf16.mxu0 0
  %469 = vmatmul.mubr.bf16.gmra.mxu0 %v277
  %v470 = vpop.f32.mrf.mxu0
  %v471 = vadd.f32 0.0, %v470
  %v472 = vpop.f32.mrf.mxu0
  %v473 = vpop.f32.mrf.mxu0
  %v474 = vadd.f32 0.0, %v473
  %v475 = vpop.f32.mrf.mxu0
  %476 = vmatprep.mubr.bf16.mxu0 0
  %477 = vmatmul.mubr.bf16.gmra.mxu0 %v280
  %v478 = vpop.f32.mrf.mxu0
  %v479 = vadd.f32 0.0, %v478
  %v480 = vpop.f32.mrf.mxu0
  %v481 = vpop.f32.mrf.mxu0
  %v482 = vadd.f32 0.0, %v481
  %v483 = vpop.f32.mrf.mxu0
  %484 = vmatprep.mubr.bf16.mxu0 0
  %485 = vmatmul.mubr.bf16.gmra.mxu0 %v283
  %v486 = vpop.f32.mrf.mxu0
  %v487 = vadd.f32 0.0, %v486
  %v488 = vpop.f32.mrf.mxu0
  %v489 = vpop.f32.mrf.mxu0
  %v490 = vadd.f32 0.0, %v489
  %v491 = vpop.f32.mrf.mxu0
  %492 = vmatprep.mubr.bf16.mxu0 0
  %493 = vmatmul.mubr.bf16.gmra.mxu0 %v286
  %v494 = vpop.f32.mrf.mxu0
  %v495 = vadd.f32 0.0, %v494
  %v496 = vpop.f32.mrf.mxu0
  %v497 = vpop.f32.mrf.mxu0
  %v498 = vadd.f32 0.0, %v497
  %v499 = vpop.f32.mrf.mxu0
  %500 = vmatprep.mubr.bf16.mxu0 0
  %501 = vmatmul.mubr.bf16.gmra.mxu0 %v289
  %v502 = vpop.f32.mrf.mxu0
  %v503 = vadd.f32 0.0, %v502
  %v504 = vpop.f32.mrf.mxu0
  %v505 = vpop.f32.mrf.mxu0
  %v506 = vadd.f32 0.0, %v505
  %v507 = vpop.f32.mrf.mxu0
  %508 = vmatprep.mubr.bf16.mxu0 0
  %509 = vmatmul.mubr.bf16.gmra.mxu0 %v292
  %v510 = vpop.f32.mrf.mxu0
  %v511 = vadd.f32 0.0, %v510
  %v512 = vpop.f32.mrf.mxu0
  %v513 = vpop.f32.mrf.mxu0
  %v514 = vadd.f32 0.0, %v513
  %v515 = vpop.f32.mrf.mxu0
  %516 = vmatprep.mubr.bf16.mxu0 0
  %517 = vmatmul.mubr.bf16.gmra.mxu0 %v295
  %v518 = vpop.f32.mrf.mxu0
  %v519 = vadd.f32 0.0, %v518
  %v520 = vpop.f32.mrf.mxu0
  %v521 = vpop.f32.mrf.mxu0
  %v522 = vadd.f32 0.0, %v521
  %v523 = vpop.f32.mrf.mxu0
  %524 = vmatprep.mubr.bf16.mxu0 0
  %525 = vmatmul.mubr.bf16.gmra.mxu0 %v298
  %v526 = vpop.f32.mrf.mxu0
  %v527 = vadd.f32 0.0, %v526
  %v528 = vpop.f32.mrf.mxu0
  %v529 = vpop.f32.mrf.mxu0
  %v530 = vadd.f32 0.0, %v529
  %v531 = vpop.f32.mrf.mxu0
  %532 = vmatprep.mubr.bf16.mxu0 0
  %533 = vmatmul.mubr.bf16.gmra.mxu0 %v301
  %v534 = vpop.f32.mrf.mxu0
  %v535 = vadd.f32 0.0, %v534
  %v536 = vpop.f32.mrf.mxu0
  %v537 = vpop.f32.mrf.mxu0
  %v538 = vadd.f32 0.0, %v537
  %v539 = vpop.f32.mrf.mxu0
  %540 = vmatprep.mubr.bf16.mxu0 0
  %541 = vmatmul.mubr.bf16.gmra.mxu0 %v304
  %v542 = vpop.f32.mrf.mxu0
  %v543 = vadd.f32 0.0, %v542
  %v544 = vpop.f32.mrf.mxu0
  %v545 = vpop.f32.mrf.mxu0
  %v546 = vadd.f32 0.0, %v545
  %v547 = vpop.f32.mrf.mxu0
  %548 = vmatprep.mubr.bf16.mxu0 0
  %549 = vmatmul.mubr.bf16.gmra.mxu0 %v307
  %v550 = vpop.f32.mrf.mxu0
  %v551 = vadd.f32 0.0, %v550
  %v552 = vpop.f32.mrf.mxu0
  %v553 = vpop.f32.mrf.mxu0
  %v554 = vadd.f32 0.0, %v553
  %v555 = vpop.f32.mrf.mxu0
  %556 = vmatprep.mubr.bf16.mxu0 0
  %557 = vmatmul.mubr.bf16.gmra.mxu0 %v310
  %v558 = vpop.f32.mrf.mxu0
  %v559 = vadd.f32 0.0, %v558
  %v560 = vpop.f32.mrf.mxu0
  %v561 = vpop.f32.mrf.mxu0
  %v562 = vadd.f32 0.0, %v561
  %v563 = vpop.f32.mrf.mxu0
  %564 = vmatprep.mubr.bf16.mxu0 0
  %565 = vmatmul.mubr.bf16.gmra.mxu0 %v313
  %v566 = vpop.f32.mrf.mxu0
  %v567 = vadd.f32 0.0, %v566
  %v568 = vpop.f32.mrf.mxu0
  %v569 = vpop.f32.mrf.mxu0
  %v570 = vadd.f32 0.0, %v569
  %v571 = vpop.f32.mrf.mxu0
  %572 = vmatprep.mubr.bf16.mxu0 0
  %573 = vmatmul.mubr.bf16.gmra.mxu0 %v316
  %v574 = vpop.f32.mrf.mxu0
  %v575 = vadd.f32 0.0, %v574
  %v576 = vpop.f32.mrf.mxu0
  %v577 = vpop.f32.mrf.mxu0
  %v578 = vadd.f32 0.0, %v577
  %v579 = vpop.f32.mrf.mxu0
  %580 = vmatprep.mubr.bf16.mxu0 0
  %581 = vmatmul.mubr.bf16.gmra.mxu0 %v319
  %v582 = vpop.f32.mrf.mxu0
  %v583 = vadd.f32 0.0, %v582
  %v584 = vpop.f32.mrf.mxu0
  %v585 = vpop.f32.mrf.mxu0
  %v586 = vadd.f32 0.0, %v585
  %v587 = vpop.f32.mrf.mxu0
  %588 = vmatprep.mubr.bf16.mxu0 0
  %589 = vmatmul.mubr.bf16.gmra.mxu0 %v322
  %v590 = vpop.f32.mrf.mxu0
  %v591 = vadd.f32 0.0, %v590
  %v592 = vpop.f32.mrf.mxu0
  %v593 = vpop.f32.mrf.mxu0
  %v594 = vadd.f32 0.0, %v593
  %v595 = vpop.f32.mrf.mxu0
  %596 = vmatprep.mubr.bf16.mxu0 0
  %597 = vmatmul.mubr.bf16.gmra.mxu0 %v325
  %v598 = vpop.f32.mrf.mxu0
  %v599 = vadd.f32 0.0, %v598
  %v600 = vpop.f32.mrf.mxu0
  %v601 = vpop.f32.mrf.mxu0
  %v602 = vadd.f32 0.0, %v601
  %v603 = vpop.f32.mrf.mxu0
  %604 = vmatprep.mubr.bf16.mxu0 0
  %605 = vmatmul.mubr.bf16.gmra.mxu0 %v328
  %v606 = vpop.f32.mrf.mxu0
  %v607 = vadd.f32 0.0, %v606
  %v608 = vpop.f32.mrf.mxu0
  %v609 = vpop.f32.mrf.mxu0
  %v610 = vadd.f32 0.0, %v609
  %v611 = vpop.f32.mrf.mxu0
  %612 = vmatprep.mubr.bf16.mxu0 0
  %613 = vmatmul.mubr.bf16.gmra.mxu0 %v331
  %v614 = vpop.f32.mrf.mxu0
  %v615 = vadd.f32 0.0, %v614
  %v616 = vpop.f32.mrf.mxu0
  %v617 = vpop.f32.mrf.mxu0
  %v618 = vadd.f32 0.0, %v617
  %v619 = vpop.f32.mrf.mxu0
  %620 = vmatprep.mubr.bf16.mxu0 0
  %621 = vmatmul.mubr.bf16.gmra.mxu0 %v334
  %v622 = vpop.f32.mrf.mxu0
  %v623 = vadd.f32 0.0, %v622
  %v624 = vpop.f32.mrf.mxu0
  %v625 = vpop.f32.mrf.mxu0
  %v626 = vadd.f32 0.0, %v625
  %v627 = vpop.f32.mrf.mxu0
  %628 = vdwg.mxu0
  %v629 = vpack.c.bf16 %v378, %v375
  %v630 = vpack.c.bf16 %v386, %v383
  %v631 = vpack.c.bf16 %v394, %v391
  %v632 = vpack.c.bf16 %v402, %v399
  %v633 = vpack.c.bf16 %v410, %v407
  %v634 = vpack.c.bf16 %v418, %v415
  %v635 = vpack.c.bf16 %v426, %v423
  %v636 = vpack.c.bf16 %v434, %v431
  %v637 = vpack.c.bf16 %v442, %v439
  %v638 = vpack.c.bf16 %v450, %v447
  %v639 = vpack.c.bf16 %v458, %v455
  %v640 = vpack.c.bf16 %v466, %v463
  %v641 = vpack.c.bf16 %v474, %v471
  %v642 = vpack.c.bf16 %v482, %v479
  %v643 = vpack.c.bf16 %v490, %v487
  %v644 = vpack.c.bf16 %v498, %v495
  %v645 = vpack.c.bf16 %v506, %v503
  %v646 = vpack.c.bf16 %v514, %v511
  %v647 = vpack.c.bf16 %v522, %v519
  %v648 = vpack.c.bf16 %v530, %v527
  %v649 = vpack.c.bf16 %v538, %v535
  %v650 = vpack.c.bf16 %v546, %v543
  %v651 = vpack.c.bf16 %v554, %v551
  %v652 = vpack.c.bf16 %v562, %v559
  %v653 = vpack.c.bf16 %v570, %v567
  %v654 = vpack.c.bf16 %v578, %v575
  %v655 = vpack.c.bf16 %v586, %v583
  %v656 = vpack.c.bf16 %v594, %v591
  %v657 = vpack.c.bf16 %v602, %v599
  %v658 = vpack.c.bf16 %v610, %v607
  %v659 = vpack.c.bf16 %v618, %v615
  %v660 = vpack.c.bf16 %v626, %v623
  %v693 = vunpack.c.l.b16 %v629
  %v694 = vunpack.c.h.b16 %v629
  %v695 = vunpack.c.l.b16 %v630
  %v696 = vunpack.c.h.b16 %v630
  %v697 = vunpack.c.l.b16 %v631
  %v698 = vunpack.c.h.b16 %v631
  %v699 = vunpack.c.l.b16 %v632
  %v700 = vunpack.c.h.b16 %v632
  %v701 = vunpack.c.l.b16 %v633
  %v702 = vunpack.c.h.b16 %v633
  %v703 = vunpack.c.l.b16 %v634
  %v704 = vunpack.c.h.b16 %v634
  %v705 = vunpack.c.l.b16 %v635
  %v706 = vunpack.c.h.b16 %v635
  %v707 = vunpack.c.l.b16 %v636
  %v708 = vunpack.c.h.b16 %v636
  %v709 = vunpack.c.l.b16 %v637
  %v710 = vunpack.c.h.b16 %v637
  %v711 = vunpack.c.l.b16 %v638
  %v712 = vunpack.c.h.b16 %v638
  %v713 = vunpack.c.l.b16 %v639
  %v714 = vunpack.c.h.b16 %v639
  %v715 = vunpack.c.l.b16 %v640
  %v716 = vunpack.c.h.b16 %v640
  %v717 = vunpack.c.l.b16 %v641
  %v718 = vunpack.c.h.b16 %v641
  %v719 = vunpack.c.l.b16 %v642
  %v720 = vunpack.c.h.b16 %v642
  %v721 = vunpack.c.l.b16 %v643
  %v722 = vunpack.c.h.b16 %v643
  %v723 = vunpack.c.l.b16 %v644
  %v724 = vunpack.c.h.b16 %v644
  %v725 = vunpack.c.l.b16 %v645
  %v726 = vunpack.c.h.b16 %v645
  %v727 = vunpack.c.l.b16 %v646
  %v728 = vunpack.c.h.b16 %v646
  %v729 = vunpack.c.l.b16 %v647
  %v730 = vunpack.c.h.b16 %v647
  %v731 = vunpack.c.l.b16 %v648
  %v732 = vunpack.c.h.b16 %v648
  %v733 = vunpack.c.l.b16 %v649
  %v734 = vunpack.c.h.b16 %v649
  %v735 = vunpack.c.l.b16 %v650
  %v736 = vunpack.c.h.b16 %v650
  %v737 = vunpack.c.l.b16 %v651
  %v738 = vunpack.c.h.b16 %v651
  %v739 = vunpack.c.l.b16 %v652
  %v740 = vunpack.c.h.b16 %v652
  %v741 = vunpack.c.l.b16 %v653
  %v742 = vunpack.c.h.b16 %v653
  %v743 = vunpack.c.l.b16 %v654
  %v744 = vunpack.c.h.b16 %v654
  %v745 = vunpack.c.l.b16 %v655
  %v746 = vunpack.c.h.b16 %v655
  %v747 = vunpack.c.l.b16 %v656
  %v748 = vunpack.c.h.b16 %v656
  %v749 = vunpack.c.l.b16 %v657
  %v750 = vunpack.c.h.b16 %v657
  %v751 = vunpack.c.l.b16 %v658
  %v752 = vunpack.c.h.b16 %v658
  %v753 = vunpack.c.l.b16 %v659
  %v754 = vunpack.c.h.b16 %v659
  %v755 = vunpack.c.l.b16 %v660
  %v756 = vunpack.c.h.b16 %v660
  %v757 = vpack.c.b16 %v693, %v693
  %v758 = vpack.c.b16 %v694, %v694
  %v759 = vpack.c.b16 %v695, %v695
  %v760 = vpack.c.b16 %v696, %v696
  %v761 = vpack.c.b16 %v697, %v697
  %v762 = vpack.c.b16 %v698, %v698
  %v763 = vpack.c.b16 %v699, %v699
  %v764 = vpack.c.b16 %v700, %v700
  %v765 = vpack.c.b16 %v701, %v701
  %v766 = vpack.c.b16 %v702, %v702
  %v767 = vpack.c.b16 %v703, %v703
  %v768 = vpack.c.b16 %v704, %v704
  %v769 = vpack.c.b16 %v705, %v705
  %v770 = vpack.c.b16 %v706, %v706
  %v771 = vpack.c.b16 %v707, %v707
  %v772 = vpack.c.b16 %v708, %v708
  %v773 = vpack.c.b16 %v709, %v709
  %v774 = vpack.c.b16 %v710, %v710
  %v775 = vpack.c.b16 %v711, %v711
  %v776 = vpack.c.b16 %v712, %v712
  %v777 = vpack.c.b16 %v713, %v713
  %v778 = vpack.c.b16 %v714, %v714
  %v779 = vpack.c.b16 %v715, %v715
  %v780 = vpack.c.b16 %v716, %v716
  %v781 = vpack.c.b16 %v717, %v717
  %v782 = vpack.c.b16 %v718, %v718
  %v783 = vpack.c.b16 %v719, %v719
  %v784 = vpack.c.b16 %v720, %v720
  %v785 = vpack.c.b16 %v721, %v721
  %v786 = vpack.c.b16 %v722, %v722
  %v787 = vpack.c.b16 %v723, %v723
  %v788 = vpack.c.b16 %v724, %v724
  %v789 = vpack.c.b16 %v725, %v725
  %v790 = vpack.c.b16 %v726, %v726
  %v791 = vpack.c.b16 %v727, %v727
  %v792 = vpack.c.b16 %v728, %v728
  %v793 = vpack.c.b16 %v729, %v729
  %v794 = vpack.c.b16 %v730, %v730
  %v795 = vpack.c.b16 %v731, %v731
  %v796 = vpack.c.b16 %v732, %v732
  %v797 = vpack.c.b16 %v733, %v733
  %v798 = vpack.c.b16 %v734, %v734
  %v799 = vpack.c.b16 %v735, %v735
  %v800 = vpack.c.b16 %v736, %v736
  %v801 = vpack.c.b16 %v737, %v737
  %v802 = vpack.c.b16 %v738, %v738
  %v803 = vpack.c.b16 %v739, %v739
  %v804 = vpack.c.b16 %v740, %v740
  %v805 = vpack.c.b16 %v741, %v741
  %v806 = vpack.c.b16 %v742, %v742
  %v807 = vpack.c.b16 %v743, %v743
  %v808 = vpack.c.b16 %v744, %v744
  %v809 = vpack.c.b16 %v745, %v745
  %v810 = vpack.c.b16 %v746, %v746
  %v811 = vpack.c.b16 %v747, %v747
  %v812 = vpack.c.b16 %v748, %v748
  %v813 = vpack.c.b16 %v749, %v749
  %v814 = vpack.c.b16 %v750, %v750
  %v815 = vpack.c.b16 %v751, %v751
  %v816 = vpack.c.b16 %v752, %v752
  %v817 = vpack.c.b16 %v753, %v753
  %v818 = vpack.c.b16 %v754, %v754
  %v819 = vpack.c.b16 %v755, %v755
  %v820 = vpack.c.b16 %v756, %v756
  %vm885 = vcmask 125952
  %886 = vst.msk [vmem:[%s2] sm:$0xf] %vm885, %v757
  %887 = vst.msk [vmem:[%s2 + $0x4] sm:$0xf] %vm885, %v758
  %888 = vst.msk [vmem:[%s2 + $0x8] sm:$0xf] %vm885, %v759
  %889 = vst.msk [vmem:[%s2 + $0xc] sm:$0xf] %vm885, %v760
  %890 = vst.msk [vmem:[%s2 + $0x10] sm:$0xf] %vm885, %v761
  %891 = vst.msk [vmem:[%s2 + $0x14] sm:$0xf] %vm885, %v762
  %892 = vst.msk [vmem:[%s2 + $0x18] sm:$0xf] %vm885, %v763
  %893 = vst.msk [vmem:[%s2 + $0x1c] sm:$0xf] %vm885, %v764
  %894 = vst.msk [vmem:[%s2 + $0x20] sm:$0xf] %vm885, %v765
  %895 = vst.msk [vmem:[%s2 + $0x24] sm:$0xf] %vm885, %v766
  %896 = vst.msk [vmem:[%s2 + $0x28] sm:$0xf] %vm885, %v767
  %897 = vst.msk [vmem:[%s2 + $0x2c] sm:$0xf] %vm885, %v768
  %898 = vst.msk [vmem:[%s2 + $0x30] sm:$0xf] %vm885, %v769
  %899 = vst.msk [vmem:[%s2 + $0x34] sm:$0xf] %vm885, %v770
  %900 = vst.msk [vmem:[%s2 + $0x38] sm:$0xf] %vm885, %v771
  %901 = vst.msk [vmem:[%s2 + $0x3c] sm:$0xf] %vm885, %v772
  %902 = vst.msk [vmem:[%s2 + $0x40] sm:$0xf] %vm885, %v773
  %903 = vst.msk [vmem:[%s2 + $0x44] sm:$0xf] %vm885, %v774
  %904 = vst.msk [vmem:[%s2 + $0x48] sm:$0xf] %vm885, %v775
  %905 = vst.msk [vmem:[%s2 + $0x4c] sm:$0xf] %vm885, %v776
  %906 = vst.msk [vmem:[%s2 + $0x50] sm:$0xf] %vm885, %v777
  %907 = vst.msk [vmem:[%s2 + $0x54] sm:$0xf] %vm885, %v778
  %908 = vst.msk [vmem:[%s2 + $0x58] sm:$0xf] %vm885, %v779
  %909 = vst.msk [vmem:[%s2 + $0x5c] sm:$0xf] %vm885, %v780
  %910 = vst.msk [vmem:[%s2 + $0x60] sm:$0xf] %vm885, %v781
  %911 = vst.msk [vmem:[%s2 + $0x64] sm:$0xf] %vm885, %v782
  %912 = vst.msk [vmem:[%s2 + $0x68] sm:$0xf] %vm885, %v783
  %913 = vst.msk [vmem:[%s2 + $0x6c] sm:$0xf] %vm885, %v784
  %914 = vst.msk [vmem:[%s2 + $0x70] sm:$0xf] %vm885, %v785
  %915 = vst.msk [vmem:[%s2 + $0x74] sm:$0xf] %vm885, %v786
  %916 = vst.msk [vmem:[%s2 + $0x78] sm:$0xf] %vm885, %v787
  %917 = vst.msk [vmem:[%s2 + $0x7c] sm:$0xf] %vm885, %v788
  %918 = vst.msk [vmem:[%s2 + $0x80] sm:$0xf] %vm885, %v789
  %919 = vst.msk [vmem:[%s2 + $0x84] sm:$0xf] %vm885, %v790
  %920 = vst.msk [vmem:[%s2 + $0x88] sm:$0xf] %vm885, %v791
  %921 = vst.msk [vmem:[%s2 + $0x8c] sm:$0xf] %vm885, %v792
  %922 = vst.msk [vmem:[%s2 + $0x90] sm:$0xf] %vm885, %v793
  %923 = vst.msk [vmem:[%s2 + $0x94] sm:$0xf] %vm885, %v794
  %924 = vst.msk [vmem:[%s2 + $0x98] sm:$0xf] %vm885, %v795
  %925 = vst.msk [vmem:[%s2 + $0x9c] sm:$0xf] %vm885, %v796
  %926 = vst.msk [vmem:[%s2 + $0xa0] sm:$0xf] %vm885, %v797
  %927 = vst.msk [vmem:[%s2 + $0xa4] sm:$0xf] %vm885, %v798
  %928 = vst.msk [vmem:[%s2 + $0xa8] sm:$0xf] %vm885, %v799
  %929 = vst.msk [vmem:[%s2 + $0xac] sm:$0xf] %vm885, %v800
  %930 = vst.msk [vmem:[%s2 + $0xb0] sm:$0xf] %vm885, %v801
  %931 = vst.msk [vmem:[%s2 + $0xb4] sm:$0xf] %vm885, %v802
  %932 = vst.msk [vmem:[%s2 + $0xb8] sm:$0xf] %vm885, %v803
  %933 = vst.msk [vmem:[%s2 + $0xbc] sm:$0xf] %vm885, %v804
  %934 = vst.msk [vmem:[%s2 + $0xc0] sm:$0xf] %vm885, %v805
  %935 = vst.msk [vmem:[%s2 + $0xc4] sm:$0xf] %vm885, %v806
  %936 = vst.msk [vmem:[%s2 + $0xc8] sm:$0xf] %vm885, %v807
  %937 = vst.msk [vmem:[%s2 + $0xcc] sm:$0xf] %vm885, %v808
  %938 = vst.msk [vmem:[%s2 + $0xd0] sm:$0xf] %vm885, %v809
  %939 = vst.msk [vmem:[%s2 + $0xd4] sm:$0xf] %vm885, %v810
  %940 = vst.msk [vmem:[%s2 + $0xd8] sm:$0xf] %vm885, %v811
  %941 = vst.msk [vmem:[%s2 + $0xdc] sm:$0xf] %vm885, %v812
  %942 = vst.msk [vmem:[%s2 + $0xe0] sm:$0xf] %vm885, %v813
  %943 = vst.msk [vmem:[%s2 + $0xe4] sm:$0xf] %vm885, %v814
  %944 = vst.msk [vmem:[%s2 + $0xe8] sm:$0xf] %vm885, %v815
  %945 = vst.msk [vmem:[%s2 + $0xec] sm:$0xf] %vm885, %v816
  %946 = vst.msk [vmem:[%s2 + $0xf0] sm:$0xf] %vm885, %v817
  %947 = vst.msk [vmem:[%s2 + $0xf4] sm:$0xf] %vm885, %v818
  %948 = vst.msk [vmem:[%s2 + $0xf8] sm:$0xf] %vm885, %v819
  %949 = vst.msk [vmem:[%s2 + $0xfc] sm:$0xf] %vm885, %v820
  %vm950 = vcmask 130048
  %v951 = vsel %vm950, %v375, 0.0
  %v952 = vsel %vm950, %v378, 0.0
  %v953 = vadd.f32 %v951, %v952
  %v954 = vsel %vm950, %v383, 0.0
  %v955 = vadd.f32 %v953, %v954
  %v956 = vsel %vm950, %v386, 0.0
  %v957 = vadd.f32 %v955, %v956
  %v958 = vsel %vm950, %v391, 0.0
  %v959 = vadd.f32 %v957, %v958
  %v960 = vsel %vm950, %v394, 0.0
  %v961 = vadd.f32 %v959, %v960
  %v962 = vsel %vm950, %v399, 0.0
  %v963 = vadd.f32 %v961, %v962
  %v964 = vsel %vm950, %v402, 0.0
  %v965 = vadd.f32 %v963, %v964
  %v966 = vsel %vm950, %v407, 0.0
  %v967 = vadd.f32 %v965, %v966
  %v968 = vsel %vm950, %v410, 0.0
  %v969 = vadd.f32 %v967, %v968
  %v970 = vsel %vm950, %v415, 0.0
  %v971 = vadd.f32 %v969, %v970
  %v972 = vsel %vm950, %v418, 0.0
  %v973 = vadd.f32 %v971, %v972
  %v974 = vsel %vm950, %v423, 0.0
  %v975 = vadd.f32 %v973, %v974
  %v976 = vsel %vm950, %v426, 0.0
  %v977 = vadd.f32 %v975, %v976
  %v978 = vsel %vm950, %v431, 0.0
  %v979 = vadd.f32 %v977, %v978
  %v980 = vsel %vm950, %v434, 0.0
  %v981 = vadd.f32 %v979, %v980
  %v982 = vsel %vm950, %v439, 0.0
  %v983 = vadd.f32 %v981, %v982
  %v984 = vsel %vm950, %v442, 0.0
  %v985 = vadd.f32 %v983, %v984
  %v986 = vsel %vm950, %v447, 0.0
  %v987 = vadd.f32 %v985, %v986
  %v988 = vsel %vm950, %v450, 0.0
  %v989 = vadd.f32 %v987, %v988
  %v990 = vsel %vm950, %v455, 0.0
  %v991 = vadd.f32 %v989, %v990
  %v992 = vsel %vm950, %v458, 0.0
  %v993 = vadd.f32 %v991, %v992
  %v994 = vsel %vm950, %v463, 0.0
  %v995 = vadd.f32 %v993, %v994
  %v996 = vsel %vm950, %v466, 0.0
  %v997 = vadd.f32 %v995, %v996
  %v998 = vsel %vm950, %v471, 0.0
  %v999 = vadd.f32 %v997, %v998
  %v1000 = vsel %vm950, %v474, 0.0
  %v1001 = vadd.f32 %v999, %v1000
  %v1002 = vsel %vm950, %v479, 0.0
  %v1003 = vadd.f32 %v1001, %v1002
  %v1004 = vsel %vm950, %v482, 0.0
  %v1005 = vadd.f32 %v1003, %v1004
  %v1006 = vsel %vm950, %v487, 0.0
  %v1007 = vadd.f32 %v1005, %v1006
  %v1008 = vsel %vm950, %v490, 0.0
  %v1009 = vadd.f32 %v1007, %v1008
  %v1010 = vsel %vm950, %v495, 0.0
  %v1011 = vadd.f32 %v1009, %v1010
  %v1012 = vsel %vm950, %v498, 0.0
  %v1013 = vadd.f32 %v1011, %v1012
  %v1014 = vsel %vm950, %v503, 0.0
  %v1015 = vadd.f32 %v1013, %v1014
  %v1016 = vsel %vm950, %v506, 0.0
  %v1017 = vadd.f32 %v1015, %v1016
  %v1018 = vsel %vm950, %v511, 0.0
  %v1019 = vadd.f32 %v1017, %v1018
  %v1020 = vsel %vm950, %v514, 0.0
  %v1021 = vadd.f32 %v1019, %v1020
  %v1022 = vsel %vm950, %v519, 0.0
  %v1023 = vadd.f32 %v1021, %v1022
  %v1024 = vsel %vm950, %v522, 0.0
  %v1025 = vadd.f32 %v1023, %v1024
  %v1026 = vsel %vm950, %v527, 0.0
  %v1027 = vadd.f32 %v1025, %v1026
  %v1028 = vsel %vm950, %v530, 0.0
  %v1029 = vadd.f32 %v1027, %v1028
  %v1030 = vsel %vm950, %v535, 0.0
  %v1031 = vadd.f32 %v1029, %v1030
  %v1032 = vsel %vm950, %v538, 0.0
  %v1033 = vadd.f32 %v1031, %v1032
  %v1034 = vsel %vm950, %v543, 0.0
  %v1035 = vadd.f32 %v1033, %v1034
  %v1036 = vsel %vm950, %v546, 0.0
  %v1037 = vadd.f32 %v1035, %v1036
  %v1038 = vsel %vm950, %v551, 0.0
  %v1039 = vadd.f32 %v1037, %v1038
  %v1040 = vsel %vm950, %v554, 0.0
  %v1041 = vadd.f32 %v1039, %v1040
  %v1042 = vsel %vm950, %v559, 0.0
  %v1043 = vadd.f32 %v1041, %v1042
  %v1044 = vsel %vm950, %v562, 0.0
  %v1045 = vadd.f32 %v1043, %v1044
  %v1046 = vsel %vm950, %v567, 0.0
  %v1047 = vadd.f32 %v1045, %v1046
  %v1048 = vsel %vm950, %v570, 0.0
  %v1049 = vadd.f32 %v1047, %v1048
  %v1050 = vsel %vm950, %v575, 0.0
  %v1051 = vadd.f32 %v1049, %v1050
  %v1052 = vsel %vm950, %v578, 0.0
  %v1053 = vadd.f32 %v1051, %v1052
  %v1054 = vsel %vm950, %v583, 0.0
  %v1055 = vadd.f32 %v1053, %v1054
  %v1056 = vsel %vm950, %v586, 0.0
  %v1057 = vadd.f32 %v1055, %v1056
  %v1058 = vsel %vm950, %v591, 0.0
  %v1059 = vadd.f32 %v1057, %v1058
  %v1060 = vsel %vm950, %v594, 0.0
  %v1061 = vadd.f32 %v1059, %v1060
  %v1062 = vsel %vm950, %v599, 0.0
  %v1063 = vadd.f32 %v1061, %v1062
  %v1064 = vsel %vm950, %v602, 0.0
  %v1065 = vadd.f32 %v1063, %v1064
  %v1066 = vsel %vm950, %v607, 0.0
  %v1067 = vadd.f32 %v1065, %v1066
  %v1068 = vsel %vm950, %v610, 0.0
  %v1069 = vadd.f32 %v1067, %v1068
  %v1070 = vsel %vm950, %v615, 0.0
  %v1071 = vadd.f32 %v1069, %v1070
  %v1072 = vsel %vm950, %v618, 0.0
  %v1073 = vadd.f32 %v1071, %v1072
  %v1074 = vsel %vm950, %v623, 0.0
  %v1075 = vadd.f32 %v1073, %v1074
  %v1076 = vsel %vm950, %v626, 0.0
  %v1077 = vadd.f32 %v1075, %v1076
  %v1078 = vrot.slane %v1077, 4
  %v1079 = vadd.f32 %v1077, %v1078
  %v1080 = vrot.slane %v1079, 2
  %v1081 = vadd.f32 %v1079, %v1080
  %v1082 = vrot.slane %v1081, 1
  %v1083 = vadd.f32 %v1081, %v1082
  %vm1084 = vcmask 122880
  %1085 = vst.msk [vmem:[%s3] sm:$0x1] %vm1084, %v1083
  %v1086 = vmul.f32 %v375, %v375
  %v1087 = vmul.f32 %v378, %v378
  %v1088 = vmul.f32 %v383, %v383
  %v1089 = vmul.f32 %v386, %v386
  %v1090 = vmul.f32 %v391, %v391
  %v1091 = vmul.f32 %v394, %v394
  %v1092 = vmul.f32 %v399, %v399
  %v1093 = vmul.f32 %v402, %v402
  %v1094 = vmul.f32 %v407, %v407
  %v1095 = vmul.f32 %v410, %v410
  %v1096 = vmul.f32 %v415, %v415
  %v1097 = vmul.f32 %v418, %v418
  %v1098 = vmul.f32 %v423, %v423
  %v1099 = vmul.f32 %v426, %v426
  %v1100 = vmul.f32 %v431, %v431
  %v1101 = vmul.f32 %v434, %v434
  %v1102 = vmul.f32 %v439, %v439
  %v1103 = vmul.f32 %v442, %v442
  %v1104 = vmul.f32 %v447, %v447
  %v1105 = vmul.f32 %v450, %v450
  %v1106 = vmul.f32 %v455, %v455
  %v1107 = vmul.f32 %v458, %v458
  %v1108 = vmul.f32 %v463, %v463
  %v1109 = vmul.f32 %v466, %v466
  %v1110 = vmul.f32 %v471, %v471
  %v1111 = vmul.f32 %v474, %v474
  %v1112 = vmul.f32 %v479, %v479
  %v1113 = vmul.f32 %v482, %v482
  %v1114 = vmul.f32 %v487, %v487
  %v1115 = vmul.f32 %v490, %v490
  %v1116 = vmul.f32 %v495, %v495
  %v1117 = vmul.f32 %v498, %v498
  %v1118 = vmul.f32 %v503, %v503
  %v1119 = vmul.f32 %v506, %v506
  %v1120 = vmul.f32 %v511, %v511
  %v1121 = vmul.f32 %v514, %v514
  %v1122 = vmul.f32 %v519, %v519
  %v1123 = vmul.f32 %v522, %v522
  %v1124 = vmul.f32 %v527, %v527
  %v1125 = vmul.f32 %v530, %v530
  %v1126 = vmul.f32 %v535, %v535
  %v1127 = vmul.f32 %v538, %v538
  %v1128 = vmul.f32 %v543, %v543
  %v1129 = vmul.f32 %v546, %v546
  %v1130 = vmul.f32 %v551, %v551
  %v1131 = vmul.f32 %v554, %v554
  %v1132 = vmul.f32 %v559, %v559
  %v1133 = vmul.f32 %v562, %v562
  %v1134 = vmul.f32 %v567, %v567
  %v1135 = vmul.f32 %v570, %v570
  %v1136 = vmul.f32 %v575, %v575
  %v1137 = vmul.f32 %v578, %v578
  %v1138 = vmul.f32 %v583, %v583
  %v1139 = vmul.f32 %v586, %v586
  %v1140 = vmul.f32 %v591, %v591
  %v1141 = vmul.f32 %v594, %v594
  %v1142 = vmul.f32 %v599, %v599
  %v1143 = vmul.f32 %v602, %v602
  %v1144 = vmul.f32 %v607, %v607
  %v1145 = vmul.f32 %v610, %v610
  %v1146 = vmul.f32 %v615, %v615
  %v1147 = vmul.f32 %v618, %v618
  %v1148 = vmul.f32 %v623, %v623
  %v1149 = vmul.f32 %v626, %v626
  %v1150 = vsel %vm950, %v1086, 0.0
  %v1151 = vsel %vm950, %v1087, 0.0
  %v1152 = vadd.f32 %v1150, %v1151
  %v1153 = vsel %vm950, %v1088, 0.0
  %v1154 = vadd.f32 %v1152, %v1153
  %v1155 = vsel %vm950, %v1089, 0.0
  %v1156 = vadd.f32 %v1154, %v1155
  %v1157 = vsel %vm950, %v1090, 0.0
  %v1158 = vadd.f32 %v1156, %v1157
  %v1159 = vsel %vm950, %v1091, 0.0
  %v1160 = vadd.f32 %v1158, %v1159
  %v1161 = vsel %vm950, %v1092, 0.0
  %v1162 = vadd.f32 %v1160, %v1161
  %v1163 = vsel %vm950, %v1093, 0.0
  %v1164 = vadd.f32 %v1162, %v1163
  %v1165 = vsel %vm950, %v1094, 0.0
  %v1166 = vadd.f32 %v1164, %v1165
  %v1167 = vsel %vm950, %v1095, 0.0
  %v1168 = vadd.f32 %v1166, %v1167
  %v1169 = vsel %vm950, %v1096, 0.0
  %v1170 = vadd.f32 %v1168, %v1169
  %v1171 = vsel %vm950, %v1097, 0.0
  %v1172 = vadd.f32 %v1170, %v1171
  %v1173 = vsel %vm950, %v1098, 0.0
  %v1174 = vadd.f32 %v1172, %v1173
  %v1175 = vsel %vm950, %v1099, 0.0
  %v1176 = vadd.f32 %v1174, %v1175
  %v1177 = vsel %vm950, %v1100, 0.0
  %v1178 = vadd.f32 %v1176, %v1177
  %v1179 = vsel %vm950, %v1101, 0.0
  %v1180 = vadd.f32 %v1178, %v1179
  %v1181 = vsel %vm950, %v1102, 0.0
  %v1182 = vadd.f32 %v1180, %v1181
  %v1183 = vsel %vm950, %v1103, 0.0
  %v1184 = vadd.f32 %v1182, %v1183
  %v1185 = vsel %vm950, %v1104, 0.0
  %v1186 = vadd.f32 %v1184, %v1185
  %v1187 = vsel %vm950, %v1105, 0.0
  %v1188 = vadd.f32 %v1186, %v1187
  %v1189 = vsel %vm950, %v1106, 0.0
  %v1190 = vadd.f32 %v1188, %v1189
  %v1191 = vsel %vm950, %v1107, 0.0
  %v1192 = vadd.f32 %v1190, %v1191
  %v1193 = vsel %vm950, %v1108, 0.0
  %v1194 = vadd.f32 %v1192, %v1193
  %v1195 = vsel %vm950, %v1109, 0.0
  %v1196 = vadd.f32 %v1194, %v1195
  %v1197 = vsel %vm950, %v1110, 0.0
  %v1198 = vadd.f32 %v1196, %v1197
  %v1199 = vsel %vm950, %v1111, 0.0
  %v1200 = vadd.f32 %v1198, %v1199
  %v1201 = vsel %vm950, %v1112, 0.0
  %v1202 = vadd.f32 %v1200, %v1201
  %v1203 = vsel %vm950, %v1113, 0.0
  %v1204 = vadd.f32 %v1202, %v1203
  %v1205 = vsel %vm950, %v1114, 0.0
  %v1206 = vadd.f32 %v1204, %v1205
  %v1207 = vsel %vm950, %v1115, 0.0
  %v1208 = vadd.f32 %v1206, %v1207
  %v1209 = vsel %vm950, %v1116, 0.0
  %v1210 = vadd.f32 %v1208, %v1209
  %v1211 = vsel %vm950, %v1117, 0.0
  %v1212 = vadd.f32 %v1210, %v1211
  %v1213 = vsel %vm950, %v1118, 0.0
  %v1214 = vadd.f32 %v1212, %v1213
  %v1215 = vsel %vm950, %v1119, 0.0
  %v1216 = vadd.f32 %v1214, %v1215
  %v1217 = vsel %vm950, %v1120, 0.0
  %v1218 = vadd.f32 %v1216, %v1217
  %v1219 = vsel %vm950, %v1121, 0.0
  %v1220 = vadd.f32 %v1218, %v1219
  %v1221 = vsel %vm950, %v1122, 0.0
  %v1222 = vadd.f32 %v1220, %v1221
  %v1223 = vsel %vm950, %v1123, 0.0
  %v1224 = vadd.f32 %v1222, %v1223
  %v1225 = vsel %vm950, %v1124, 0.0
  %v1226 = vadd.f32 %v1224, %v1225
  %v1227 = vsel %vm950, %v1125, 0.0
  %v1228 = vadd.f32 %v1226, %v1227
  %v1229 = vsel %vm950, %v1126, 0.0
  %v1230 = vadd.f32 %v1228, %v1229
  %v1231 = vsel %vm950, %v1127, 0.0
  %v1232 = vadd.f32 %v1230, %v1231
  %v1233 = vsel %vm950, %v1128, 0.0
  %v1234 = vadd.f32 %v1232, %v1233
  %v1235 = vsel %vm950, %v1129, 0.0
  %v1236 = vadd.f32 %v1234, %v1235
  %v1237 = vsel %vm950, %v1130, 0.0
  %v1238 = vadd.f32 %v1236, %v1237
  %v1239 = vsel %vm950, %v1131, 0.0
  %v1240 = vadd.f32 %v1238, %v1239
  %v1241 = vsel %vm950, %v1132, 0.0
  %v1242 = vadd.f32 %v1240, %v1241
  %v1243 = vsel %vm950, %v1133, 0.0
  %v1244 = vadd.f32 %v1242, %v1243
  %v1245 = vsel %vm950, %v1134, 0.0
  %v1246 = vadd.f32 %v1244, %v1245
  %v1247 = vsel %vm950, %v1135, 0.0
  %v1248 = vadd.f32 %v1246, %v1247
  %v1249 = vsel %vm950, %v1136, 0.0
  %v1250 = vadd.f32 %v1248, %v1249
  %v1251 = vsel %vm950, %v1137, 0.0
  %v1252 = vadd.f32 %v1250, %v1251
  %v1253 = vsel %vm950, %v1138, 0.0
  %v1254 = vadd.f32 %v1252, %v1253
  %v1255 = vsel %vm950, %v1139, 0.0
  %v1256 = vadd.f32 %v1254, %v1255
  %v1257 = vsel %vm950, %v1140, 0.0
  %v1258 = vadd.f32 %v1256, %v1257
  %v1259 = vsel %vm950, %v1141, 0.0
  %v1260 = vadd.f32 %v1258, %v1259
  %v1261 = vsel %vm950, %v1142, 0.0
  %v1262 = vadd.f32 %v1260, %v1261
  %v1263 = vsel %vm950, %v1143, 0.0
  %v1264 = vadd.f32 %v1262, %v1263
  %v1265 = vsel %vm950, %v1144, 0.0
  %v1266 = vadd.f32 %v1264, %v1265
  %v1267 = vsel %vm950, %v1145, 0.0
  %v1268 = vadd.f32 %v1266, %v1267
  %v1269 = vsel %vm950, %v1146, 0.0
  %v1270 = vadd.f32 %v1268, %v1269
  %v1271 = vsel %vm950, %v1147, 0.0
  %v1272 = vadd.f32 %v1270, %v1271
  %v1273 = vsel %vm950, %v1148, 0.0
  %v1274 = vadd.f32 %v1272, %v1273
  %v1275 = vsel %vm950, %v1149, 0.0
  %v1276 = vadd.f32 %v1274, %v1275
  %v1277 = vrot.slane %v1276, 4
  %v1278 = vadd.f32 %v1276, %v1277
  %v1279 = vrot.slane %v1278, 2
  %v1280 = vadd.f32 %v1278, %v1279
  %v1281 = vrot.slane %v1280, 1
  %v1282 = vadd.f32 %v1280, %v1281
  %1283 = vst.msk [vmem:[%s3 + $0x1] sm:$0x1] %vm1084, %v1282
  // Predicated region
  $region10: #{bottleneck_forward.6} parent=0 // pred_check
    _
  $region11: #{bottleneck_forward.6} parent=0 // pred_check_branch
    %1285 = sbr.rel (0) target = $region13
  $region12: #{bottleneck_forward.6} parent=0 // pred_region
    _
  $region13: #{bottleneck_forward.6} parent=0 // pred_fallthru
    _
  // Predicated region
  $region14: #{bottleneck_forward.6} parent=0 // pred_check
    _
  $region15: #{bottleneck_forward.6} parent=0 // pred_check_branch
    %1287 = sbr.rel (0) target = $region17
  $region16: #{bottleneck_forward.6} parent=0 // pred_region
    _
  $region17: #{bottleneck_forward.6} parent=0 // pred_fallthru
    _
  // Predicated region
  $region18: #{bottleneck_forward.6} parent=0 // pred_check
    _
  $region19: #{bottleneck_forward.6} parent=0 // pred_check_branch
    %1289 = sbr.rel (0) target = $region21
  $region20: #{bottleneck_forward.6} parent=0 // pred_region
    _
  $region21: #{bottleneck_forward.6} parent=0 // pred_fallthru
    _
  // Predicated region
  $region22: #{bottleneck_forward.6} parent=0 // pred_check
    _
  $region23: #{bottleneck_forward.6} parent=0 // pred_check_branch
    %1291 = sbr.rel (0) target = $region25
  $region24: #{bottleneck_forward.6} parent=0 // pred_region
    _
  $region25: #{bottleneck_forward.6} parent=0 // pred_fallthru
    _

// kernel: bottleneck_forward.8
$region0: #{bottleneck_forward.8}
  #allocation0 [shape = 'u32[]', space=smem, size = 0x4, offset = 0x4, fixed_abs, tag = 'smem constant byte address 0x4 - core index']
  #allocation1 [shape = 'u32[144,128]{1,0:T(1,128)}', space=vmem, size = 0x12000, scoped, tag = 'internal scratch']
  %s0 = inlined_call_operand.vmem [shape: bf16[128,144], index: 0, kind: input, shape index: {}]
  %s1 = inlined_call_operand.vmem [shape: bf16[144,16], index: 1, kind: input, shape index: {}]
  %s2 = inlined_call_operand.vmem [shape: bf16[128,16], index: 2, kind: output, shape index: {0}]
  %s3 = inlined_call_operand.vmem [shape: f32[1,2,16], index: 3, kind: output, shape index: {1}]
  %4 = xla_tuple %s2, %s3
  %s5 = sld [smem:[#allocation0]]
  $region26: #{bottleneck_forward.8} parent=0
    _
  %s7 = ssub.s32 1, %s5
  %s8 = scalar_select 0, %s7, %s5
  // Predicated region
  $region2: #{bottleneck_forward.8} parent=0 // pred_check
    _
  $region3: #{bottleneck_forward.8} parent=0 // pred_check_branch
    %10 = sbr.rel (0) target = $region5
  $region4: #{bottleneck_forward.8} parent=0 // pred_region
    _
  $region5: #{bottleneck_forward.8} parent=0 // pred_fallthru
    _
  // Predicated region
  $region6: #{bottleneck_forward.8} parent=0 // pred_check
    _
  $region7: #{bottleneck_forward.8} parent=0 // pred_check_branch
    %12 = sbr.rel (0) target = $region9
  $region8: #{bottleneck_forward.8} parent=0 // pred_region
    _
  $region9: #{bottleneck_forward.8} parent=0 // pred_fallthru
    _
  %v14 = vld [vmem:[%s0] sm:$0xff]
  %v15 = vld [vmem:[%s0 + $0x8] sm:$0xff]
  %v16 = vld [vmem:[%s0 + $0x10] sm:$0xff]
  %v17 = vld [vmem:[%s0 + $0x18] sm:$0xff]
  %v18 = vld [vmem:[%s0 + $0x20] sm:$0xff]
  %v19 = vld [vmem:[%s0 + $0x28] sm:$0xff]
  %v20 = vld [vmem:[%s0 + $0x30] sm:$0xff]
  %v21 = vld [vmem:[%s0 + $0x38] sm:$0xff]
  %v22 = vld [vmem:[%s0 + $0x40] sm:$0xff]
  %v23 = vld [vmem:[%s0 + $0x48] sm:$0xff]
  %v24 = vld [vmem:[%s0 + $0x50] sm:$0xff]
  %v25 = vld [vmem:[%s0 + $0x58] sm:$0xff]
  %v26 = vld [vmem:[%s0 + $0x60] sm:$0xff]
  %v27 = vld [vmem:[%s0 + $0x68] sm:$0xff]
  %v28 = vld [vmem:[%s0 + $0x70] sm:$0xff]
  %v29 = vld [vmem:[%s0 + $0x78] sm:$0xff]
  %v30 = vld [vmem:[%s1] sm:$0xf]
  %v31 = vld [vmem:[%s1 + $0x4] sm:$0xf]
  %v32 = vld [vmem:[%s1 + $0x8] sm:$0xf]
  %v33 = vld [vmem:[%s1 + $0xc] sm:$0xf]
  %v34 = vld [vmem:[%s1 + $0x10] sm:$0xf]
  %v35 = vld [vmem:[%s1 + $0x14] sm:$0xf]
  %v36 = vld [vmem:[%s1 + $0x18] sm:$0xf]
  %v37 = vld [vmem:[%s1 + $0x1c] sm:$0xf]
  %v38 = vld [vmem:[%s1 + $0x20] sm:$0xf]
  %v39 = vld [vmem:[%s1 + $0x24] sm:$0xf]
  %v40 = vld [vmem:[%s1 + $0x28] sm:$0xf]
  %v41 = vld [vmem:[%s1 + $0x2c] sm:$0xf]
  %v42 = vld [vmem:[%s1 + $0x30] sm:$0xf]
  %v43 = vld [vmem:[%s1 + $0x34] sm:$0xf]
  %v44 = vld [vmem:[%s1 + $0x38] sm:$0xf]
  %v45 = vld [vmem:[%s1 + $0x3c] sm:$0xf]
  %v46 = vld [vmem:[%s1 + $0x40] sm:$0xf]
  %v47 = vld [vmem:[%s1 + $0x44] sm:$0xf]
  %v64 = vunpack.c.l.b16 %v14
  %v65 = vunpack.c.h.b16 %v14
  %v66 = vunpack.c.l.b16 %v15
  %v67 = vunpack.c.h.b16 %v15
  %v68 = vunpack.c.l.b16 %v16
  %v69 = vunpack.c.h.b16 %v16
  %v70 = vunpack.c.l.b16 %v17
  %v71 = vunpack.c.h.b16 %v17
  %v72 = vunpack.c.l.b16 %v18
  %v73 = vunpack.c.h.b16 %v18
  %v74 = vunpack.c.l.b16 %v19
  %v75 = vunpack.c.h.b16 %v19
  %v76 = vunpack.c.l.b16 %v20
  %v77 = vunpack.c.h.b16 %v20
  %v78 = vunpack.c.l.b16 %v21
  %v79 = vunpack.c.h.b16 %v21
  %v80 = vunpack.c.l.b16 %v22
  %v81 = vunpack.c.h.b16 %v22
  %v82 = vunpack.c.l.b16 %v23
  %v83 = vunpack.c.h.b16 %v23
  %v84 = vunpack.c.l.b16 %v24
  %v85 = vunpack.c.h.b16 %v24
  %v86 = vunpack.c.l.b16 %v25
  %v87 = vunpack.c.h.b16 %v25
  %v88 = vunpack.c.l.b16 %v26
  %v89 = vunpack.c.h.b16 %v26
  %v90 = vunpack.c.l.b16 %v27
  %v91 = vunpack.c.h.b16 %v27
  %v92 = vunpack.c.l.b16 %v28
  %v93 = vunpack.c.h.b16 %v28
  %v94 = vunpack.c.l.b16 %v29
  %v95 = vunpack.c.h.b16 %v29
  %v96 = vpack.c.b16 %v66, %v64
  %v97 = vpack.c.b16 %v67, %v65
  %v98 = vpack.c.b16 %v70, %v68
  %v99 = vpack.c.b16 %v71, %v69
  %v100 = vpack.c.b16 %v74, %v72
  %v101 = vpack.c.b16 %v75, %v73
  %v102 = vpack.c.b16 %v78, %v76
  %v103 = vpack.c.b16 %v79, %v77
  %v104 = vpack.c.b16 %v82, %v80
  %v105 = vpack.c.b16 %v83, %v81
  %v106 = vpack.c.b16 %v86, %v84
  %v107 = vpack.c.b16 %v87, %v85
  %v108 = vpack.c.b16 %v90, %v88
  %v109 = vpack.c.b16 %v91, %v89
  %v110 = vpack.c.b16 %v94, %v92
  %v111 = vpack.c.b16 %v95, %v93
  %v138 = vunpack.c.l.b16 %v30
  %v139 = vunpack.c.l.b16 %v31
  %v140 = vunpack.c.l.b16 %v32
  %v141 = vunpack.c.l.b16 %v33
  %v142 = vunpack.c.l.b16 %v34
  %v143 = vunpack.c.l.b16 %v35
  %v144 = vunpack.c.l.b16 %v36
  %v145 = vunpack.c.l.b16 %v37
  %v146 = vunpack.c.l.b16 %v38
  %v147 = vunpack.c.l.b16 %v39
  %v148 = vunpack.c.l.b16 %v40
  %v149 = vunpack.c.l.b16 %v41
  %v150 = vunpack.c.l.b16 %v42
  %v151 = vunpack.c.l.b16 %v43
  %v152 = vunpack.c.l.b16 %v44
  %v153 = vunpack.c.l.b16 %v45
  %v154 = vunpack.c.l.b16 %v46
  %v155 = vunpack.c.l.b16 %v47
  %v156 = vpack.c.b16 %v139, %v138
  %v157 = vpack.c.b16 %v141, %v140
  %v158 = vpack.c.b16 %v143, %v142
  %v159 = vpack.c.b16 %v145, %v144
  %v160 = vpack.c.b16 %v147, %v146
  %v161 = vpack.c.b16 %v149, %v148
  %v162 = vpack.c.b16 %v151, %v150
  %v163 = vpack.c.b16 %v153, %v152
  %v164 = vpack.c.b16 %v155, %v154
  %vm174 = vcmask 130048
  %v176 = vsel %vm174, %v97, 0
  %v179 = vsel %vm174, %v99, 0
  %v182 = vsel %vm174, %v101, 0
  %v185 = vsel %vm174, %v103, 0
  %v188 = vsel %vm174, %v105, 0
  %v191 = vsel %vm174, %v107, 0
  %v194 = vsel %vm174, %v109, 0
  %v197 = vsel %vm174, %v111, 0
  %199 = vmatprep.subr.bf16.mxu0 0
  %200 = vmatpush1.bf16.msra.mxu0 %v163
  %201 = vmatprep.subr.bf16.mxu0 0
  %202 = vmatpush1.bf16.msra.mxu0 %v162
  %203 = vmatprep.subr.bf16.mxu0 0
  %204 = vmatpush1.bf16.msra.mxu0 %v161
  %205 = vmatprep.subr.bf16.mxu0 0
  %206 = vmatpush1.bf16.msra.mxu0 %v160
  %207 = vmatprep.subr.bf16.mxu0 0
  %208 = vmatpush1.bf16.msra.mxu0 %v159
  %209 = vmatprep.subr.bf16.mxu0 0
  %210 = vmatpush1.bf16.msra.mxu0 %v158
  %211 = vmatprep.subr.bf16.mxu0 0
  %212 = vmatpush1.bf16.msra.mxu0 %v157
  %213 = vmatprep.subr.bf16.mxu0 0
  %214 = vmatpush1.bf16.msra.mxu0 %v156
  %215 = vmatprep.subr.bf16.mxu0 0
  %216 = vmatpush2.bf16.msra.mxu0 0
  %217 = vmatprep.subr.bf16.mxu0 0
  %218 = vmatpush2.bf16.msra.mxu0 0
  %219 = vmatprep.subr.bf16.mxu0 0
  %220 = vmatpush2.bf16.msra.mxu0 0
  %221 = vmatprep.subr.bf16.mxu0 0
  %222 = vmatpush2.bf16.msra.mxu0 0
  %223 = vmatprep.subr.bf16.mxu0 0
  %224 = vmatpush2.bf16.msra.mxu0 0
  %225 = vmatprep.subr.bf16.mxu0 0
  %226 = vmatpush2.bf16.msra.mxu0 0
  %227 = vmatprep.subr.bf16.mxu0 0
  %228 = vmatpush2.bf16.msra.mxu0 0
  %229 = vmatprep.subr.bf16.mxu0 0
  %230 = vmatpush2.bf16.msra.mxu0 %v164
  %231 = vmatprep.mubr.bf16.mxu0 %v176
  %232 = vmatmul.mubr.bf16.gmra.mxu0 %v96
  %v233 = vpop.f32.mrf.mxu0
  %v234 = vadd.f32 0.0, %v233
  %v235 = vpop.f32.mrf.mxu0
  %v236 = vpop.f32.mrf.mxu0
  %v237 = vadd.f32 0.0, %v236
  %v238 = vpop.f32.mrf.mxu0
  %239 = vmatprep.mubr.bf16.mxu0 %v179
  %240 = vmatmul.mubr.bf16.gmra.mxu0 %v98
  %v241 = vpop.f32.mrf.mxu0
  %v242 = vadd.f32 0.0, %v241
  %v243 = vpop.f32.mrf.mxu0
  %v244 = vpop.f32.mrf.mxu0
  %v245 = vadd.f32 0.0, %v244
  %v246 = vpop.f32.mrf.mxu0
  %247 = vmatprep.mubr.bf16.mxu0 %v182
  %248 = vmatmul.mubr.bf16.gmra.mxu0 %v100
  %v249 = vpop.f32.mrf.mxu0
  %v250 = vadd.f32 0.0, %v249
  %v251 = vpop.f32.mrf.mxu0
  %v252 = vpop.f32.mrf.mxu0
  %v253 = vadd.f32 0.0, %v252
  %v254 = vpop.f32.mrf.mxu0
  %255 = vmatprep.mubr.bf16.mxu0 %v185
  %256 = vmatmul.mubr.bf16.gmra.mxu0 %v102
  %v257 = vpop.f32.mrf.mxu0
  %v258 = vadd.f32 0.0, %v257
  %v259 = vpop.f32.mrf.mxu0
  %v260 = vpop.f32.mrf.mxu0
  %v261 = vadd.f32 0.0, %v260
  %v262 = vpop.f32.mrf.mxu0
  %263 = vmatprep.mubr.bf16.mxu0 %v188
  %264 = vmatmul.mubr.bf16.gmra.mxu0 %v104
  %v265 = vpop.f32.mrf.mxu0
  %v266 = vadd.f32 0.0, %v265
  %v267 = vpop.f32.mrf.mxu0
  %v268 = vpop.f32.mrf.mxu0
  %v269 = vadd.f32 0.0, %v268
  %v270 = vpop.f32.mrf.mxu0
  %271 = vmatprep.mubr.bf16.mxu0 %v191
  %272 = vmatmul.mubr.bf16.gmra.mxu0 %v106
  %v273 = vpop.f32.mrf.mxu0
  %v274 = vadd.f32 0.0, %v273
  %v275 = vpop.f32.mrf.mxu0
  %v276 = vpop.f32.mrf.mxu0
  %v277 = vadd.f32 0.0, %v276
  %v278 = vpop.f32.mrf.mxu0
  %279 = vmatprep.mubr.bf16.mxu0 %v194
  %280 = vmatmul.mubr.bf16.gmra.mxu0 %v108
  %v281 = vpop.f32.mrf.mxu0
  %v282 = vadd.f32 0.0, %v281
  %v283 = vpop.f32.mrf.mxu0
  %v284 = vpop.f32.mrf.mxu0
  %v285 = vadd.f32 0.0, %v284
  %v286 = vpop.f32.mrf.mxu0
  %287 = vmatprep.mubr.bf16.mxu0 %v197
  %288 = vmatmul.mubr.bf16.gmra.mxu0 %v110
  %v289 = vpop.f32.mrf.mxu0
  %v290 = vadd.f32 0.0, %v289
  %v291 = vpop.f32.mrf.mxu0
  %v292 = vpop.f32.mrf.mxu0
  %v293 = vadd.f32 0.0, %v292
  %v294 = vpop.f32.mrf.mxu0
  %295 = vdwg.mxu0
  %v296 = vpack.c.bf16 %v237, %v234
  %v297 = vpack.c.bf16 %v245, %v242
  %v298 = vpack.c.bf16 %v253, %v250
  %v299 = vpack.c.bf16 %v261, %v258
  %v300 = vpack.c.bf16 %v269, %v266
  %v301 = vpack.c.bf16 %v277, %v274
  %v302 = vpack.c.bf16 %v285, %v282
  %v303 = vpack.c.bf16 %v293, %v290
  %v312 = vunpack.c.l.b16 %v296
  %v313 = vunpack.c.h.b16 %v296
  %v314 = vunpack.c.l.b16 %v297
  %v315 = vunpack.c.h.b16 %v297
  %v316 = vunpack.c.l.b16 %v298
  %v317 = vunpack.c.h.b16 %v298
  %v318 = vunpack.c.l.b16 %v299
  %v319 = vunpack.c.h.b16 %v299
  %v320 = vunpack.c.l.b16 %v300
  %v321 = vunpack.c.h.b16 %v300
  %v322 = vunpack.c.l.b16 %v301
  %v323 = vunpack.c.h.b16 %v301
  %v324 = vunpack.c.l.b16 %v302
  %v325 = vunpack.c.h.b16 %v302
  %v326 = vunpack.c.l.b16 %v303
  %v327 = vunpack.c.h.b16 %v303
  %v328 = vpack.c.b16 %v312, %v312
  %v329 = vpack.c.b16 %v313, %v313
  %v330 = vpack.c.b16 %v314, %v314
  %v331 = vpack.c.b16 %v315, %v315
  %v332 = vpack.c.b16 %v316, %v316
  %v333 = vpack.c.b16 %v317, %v317
  %v334 = vpack.c.b16 %v318, %v318
  %v335 = vpack.c.b16 %v319, %v319
  %v336 = vpack.c.b16 %v320, %v320
  %v337 = vpack.c.b16 %v321, %v321
  %v338 = vpack.c.b16 %v322, %v322
  %v339 = vpack.c.b16 %v323, %v323
  %v340 = vpack.c.b16 %v324, %v324
  %v341 = vpack.c.b16 %v325, %v325
  %v342 = vpack.c.b16 %v326, %v326
  %v343 = vpack.c.b16 %v327, %v327
  %vm360 = vcmask 125952
  %361 = vst.msk [vmem:[%s2] sm:$0xf] %vm360, %v328
  %362 = vst.msk [vmem:[%s2 + $0x4] sm:$0xf] %vm360, %v329
  %363 = vst.msk [vmem:[%s2 + $0x8] sm:$0xf] %vm360, %v330
  %364 = vst.msk [vmem:[%s2 + $0xc] sm:$0xf] %vm360, %v331
  %365 = vst.msk [vmem:[%s2 + $0x10] sm:$0xf] %vm360, %v332
  %366 = vst.msk [vmem:[%s2 + $0x14] sm:$0xf] %vm360, %v333
  %367 = vst.msk [vmem:[%s2 + $0x18] sm:$0xf] %vm360, %v334
  %368 = vst.msk [vmem:[%s2 + $0x1c] sm:$0xf] %vm360, %v335
  %369 = vst.msk [vmem:[%s2 + $0x20] sm:$0xf] %vm360, %v336
  %370 = vst.msk [vmem:[%s2 + $0x24] sm:$0xf] %vm360, %v337
  %371 = vst.msk [vmem:[%s2 + $0x28] sm:$0xf] %vm360, %v338
  %372 = vst.msk [vmem:[%s2 + $0x2c] sm:$0xf] %vm360, %v339
  %373 = vst.msk [vmem:[%s2 + $0x30] sm:$0xf] %vm360, %v340
  %374 = vst.msk [vmem:[%s2 + $0x34] sm:$0xf] %vm360, %v341
  %375 = vst.msk [vmem:[%s2 + $0x38] sm:$0xf] %vm360, %v342
  %376 = vst.msk [vmem:[%s2 + $0x3c] sm:$0xf] %vm360, %v343
  %v377 = vsel %vm174, %v234, 0.0
  %v378 = vsel %vm174, %v237, 0.0
  %v379 = vadd.f32 %v377, %v378
  %v380 = vsel %vm174, %v242, 0.0
  %v381 = vadd.f32 %v379, %v380
  %v382 = vsel %vm174, %v245, 0.0
  %v383 = vadd.f32 %v381, %v382
  %v384 = vsel %vm174, %v250, 0.0
  %v385 = vadd.f32 %v383, %v384
  %v386 = vsel %vm174, %v253, 0.0
  %v387 = vadd.f32 %v385, %v386
  %v388 = vsel %vm174, %v258, 0.0
  %v389 = vadd.f32 %v387, %v388
  %v390 = vsel %vm174, %v261, 0.0
  %v391 = vadd.f32 %v389, %v390
  %v392 = vsel %vm174, %v266, 0.0
  %v393 = vadd.f32 %v391, %v392
  %v394 = vsel %vm174, %v269, 0.0
  %v395 = vadd.f32 %v393, %v394
  %v396 = vsel %vm174, %v274, 0.0
  %v397 = vadd.f32 %v395, %v396
  %v398 = vsel %vm174, %v277, 0.0
  %v399 = vadd.f32 %v397, %v398
  %v400 = vsel %vm174, %v282, 0.0
  %v401 = vadd.f32 %v399, %v400
  %v402 = vsel %vm174, %v285, 0.0
  %v403 = vadd.f32 %v401, %v402
  %v404 = vsel %vm174, %v290, 0.0
  %v405 = vadd.f32 %v403, %v404
  %v406 = vsel %vm174, %v293, 0.0
  %v407 = vadd.f32 %v405, %v406
  %v408 = vrot.slane %v407, 4
  %v409 = vadd.f32 %v407, %v408
  %v410 = vrot.slane %v409, 2
  %v411 = vadd.f32 %v409, %v410
  %v412 = vrot.slane %v411, 1
  %v413 = vadd.f32 %v411, %v412
  %vm414 = vcmask 122880
  %415 = vst.msk [vmem:[%s3] sm:$0x1] %vm414, %v413
  %v416 = vmul.f32 %v234, %v234
  %v417 = vmul.f32 %v237, %v237
  %v418 = vmul.f32 %v242, %v242
  %v419 = vmul.f32 %v245, %v245
  %v420 = vmul.f32 %v250, %v250
  %v421 = vmul.f32 %v253, %v253
  %v422 = vmul.f32 %v258, %v258
  %v423 = vmul.f32 %v261, %v261
  %v424 = vmul.f32 %v266, %v266
  %v425 = vmul.f32 %v269, %v269
  %v426 = vmul.f32 %v274, %v274
  %v427 = vmul.f32 %v277, %v277
  %v428 = vmul.f32 %v282, %v282
  %v429 = vmul.f32 %v285, %v285
  %v430 = vmul.f32 %v290, %v290
  %v431 = vmul.f32 %v293, %v293
  %v432 = vsel %vm174, %v416, 0.0
  %v433 = vsel %vm174, %v417, 0.0
  %v434 = vadd.f32 %v432, %v433
  %v435 = vsel %vm174, %v418, 0.0
  %v436 = vadd.f32 %v434, %v435
  %v437 = vsel %vm174, %v419, 0.0
  %v438 = vadd.f32 %v436, %v437
  %v439 = vsel %vm174, %v420, 0.0
  %v440 = vadd.f32 %v438, %v439
  %v441 = vsel %vm174, %v421, 0.0
  %v442 = vadd.f32 %v440, %v441
  %v443 = vsel %vm174, %v422, 0.0
  %v444 = vadd.f32 %v442, %v443
  %v445 = vsel %vm174, %v423, 0.0
  %v446 = vadd.f32 %v444, %v445
  %v447 = vsel %vm174, %v424, 0.0
  %v448 = vadd.f32 %v446, %v447
  %v449 = vsel %vm174, %v425, 0.0
  %v450 = vadd.f32 %v448, %v449
  %v451 = vsel %vm174, %v426, 0.0
  %v452 = vadd.f32 %v450, %v451
  %v453 = vsel %vm174, %v427, 0.0
  %v454 = vadd.f32 %v452, %v453
  %v455 = vsel %vm174, %v428, 0.0
  %v456 = vadd.f32 %v454, %v455
  %v457 = vsel %vm174, %v429, 0.0
  %v458 = vadd.f32 %v456, %v457
  %v459 = vsel %vm174, %v430, 0.0
  %v460 = vadd.f32 %v458, %v459
  %v461 = vsel %vm174, %v431, 0.0
  %v462 = vadd.f32 %v460, %v461
  %v463 = vrot.slane %v462, 4
  %v464 = vadd.f32 %v462, %v463
  %v465 = vrot.slane %v464, 2
  %v466 = vadd.f32 %v464, %v465
  %v467 = vrot.slane %v466, 1
  %v468 = vadd.f32 %v466, %v467
  %469 = vst.msk [vmem:[%s3 + $0x1] sm:$0x1] %vm414, %v468
  // Predicated region
  $region10: #{bottleneck_forward.8} parent=0 // pred_check
    _
  $region11: #{bottleneck_forward.8} parent=0 // pred_check_branch
    %471 = sbr.rel (0) target = $region13
  $region12: #{bottleneck_forward.8} parent=0 // pred_region
    _
  $region13: #{bottleneck_forward.8} parent=0 // pred_fallthru
    _
  // Predicated region
  $region14: #{bottleneck_forward.8} parent=0 // pred_check
    _
  $region15: #{bottleneck_forward.8} parent=0 // pred_check_branch
    %473 = sbr.rel (0) target = $region17
  $region16: #{bottleneck_forward.8} parent=0 // pred_region
    _
  $region17: #{bottleneck_forward.8} parent=0 // pred_fallthru
    _
  // Predicated region
  $region18: #{bottleneck_forward.8} parent=0 // pred_check
    _
  $region19: #{bottleneck_forward.8} parent=0 // pred_check_branch
    %475 = sbr.rel (0) target = $region21
  $region20: #{bottleneck_forward.8} parent=0 // pred_region
    _
  $region21: #{bottleneck_forward.8} parent=0 // pred_fallthru
    _
  // Predicated region
  $region22: #{bottleneck_forward.8} parent=0 // pred_check
    _
  $region23: #{bottleneck_forward.8} parent=0 // pred_check_branch
    %477 = sbr.rel (0) target = $region25
  $region24: #{bottleneck_forward.8} parent=0 // pred_region
    _
  $region25: #{bottleneck_forward.8} parent=0 // pred_fallthru
    _

// kernel: bottleneck_forward.9
$region0: #{bottleneck_forward.9}
  #allocation0 [shape = 'u32[]', space=smem, size = 0x4, offset = 0x4, fixed_abs, tag = 'smem constant byte address 0x4 - core index']
  #allocation1 [shape = 'u32[144,128]{1,0:T(1,128)}', space=vmem, size = 0x12000, scoped, tag = 'internal scratch']
  %s0 = inlined_call_operand.vmem [shape: bf16[128,16], index: 0, kind: input, shape index: {}]
  %s1 = inlined_call_operand.vmem [shape: f32[1,16], index: 1, kind: input, shape index: {}]
  %s2 = inlined_call_operand.vmem [shape: f32[1,16], index: 2, kind: input, shape index: {}]
  %s3 = inlined_call_operand.vmem [shape: bf16[16,32], index: 3, kind: input, shape index: {}]
  %s4 = inlined_call_operand.vmem [shape: bf16[128,32], index: 4, kind: output, shape index: {0}]
  %s5 = inlined_call_operand.vmem [shape: f32[1,2,32], index: 5, kind: output, shape index: {1}]
  %6 = xla_tuple %s4, %s5
  %s7 = sld [smem:[#allocation0]]
  $region34: #{bottleneck_forward.9} parent=0
    _
  %s9 = ssub.s32 1, %s7
  %s10 = scalar_select 0, %s9, %s7
  // Predicated region
  $region2: #{bottleneck_forward.9} parent=0 // pred_check
    _
  $region3: #{bottleneck_forward.9} parent=0 // pred_check_branch
    %12 = sbr.rel (0) target = $region5
  $region4: #{bottleneck_forward.9} parent=0 // pred_region
    _
  $region5: #{bottleneck_forward.9} parent=0 // pred_fallthru
    _
  // Predicated region
  $region6: #{bottleneck_forward.9} parent=0 // pred_check
    _
  $region7: #{bottleneck_forward.9} parent=0 // pred_check_branch
    %14 = sbr.rel (0) target = $region9
  $region8: #{bottleneck_forward.9} parent=0 // pred_region
    _
  $region9: #{bottleneck_forward.9} parent=0 // pred_fallthru
    _
  // Predicated region
  $region10: #{bottleneck_forward.9} parent=0 // pred_check
    _
  $region11: #{bottleneck_forward.9} parent=0 // pred_check_branch
    %16 = sbr.rel (0) target = $region13
  $region12: #{bottleneck_forward.9} parent=0 // pred_region
    _
  $region13: #{bottleneck_forward.9} parent=0 // pred_fallthru
    _
  // Predicated region
  $region14: #{bottleneck_forward.9} parent=0 // pred_check
    _
  $region15: #{bottleneck_forward.9} parent=0 // pred_check_branch
    %18 = sbr.rel (0) target = $region17
  $region16: #{bottleneck_forward.9} parent=0 // pred_region
    _
  $region17: #{bottleneck_forward.9} parent=0 // pred_fallthru
    _
  %v20 = vld [vmem:[%s0] sm:$0xf]
  %v21 = vld [vmem:[%s0 + $0x4] sm:$0xf]
  %v22 = vld [vmem:[%s0 + $0x8] sm:$0xf]
  %v23 = vld [vmem:[%s0 + $0xc] sm:$0xf]
  %v24 = vld [vmem:[%s0 + $0x10] sm:$0xf]
  %v25 = vld [vmem:[%s0 + $0x14] sm:$0xf]
  %v26 = vld [vmem:[%s0 + $0x18] sm:$0xf]
  %v27 = vld [vmem:[%s0 + $0x1c] sm:$0xf]
  %v28 = vld [vmem:[%s0 + $0x20] sm:$0xf]
  %v29 = vld [vmem:[%s0 + $0x24] sm:$0xf]
  %v30 = vld [vmem:[%s0 + $0x28] sm:$0xf]
  %v31 = vld [vmem:[%s0 + $0x2c] sm:$0xf]
  %v32 = vld [vmem:[%s0 + $0x30] sm:$0xf]
  %v33 = vld [vmem:[%s0 + $0x34] sm:$0xf]
  %v34 = vld [vmem:[%s0 + $0x38] sm:$0xf]
  %v35 = vld [vmem:[%s0 + $0x3c] sm:$0xf]
  %v36 = vunpack.c.l.bf16 %v20
  %v37 = vunpack.c.l.bf16 %v21
  %v38 = vunpack.c.l.bf16 %v22
  %v39 = vunpack.c.l.bf16 %v23
  %v40 = vunpack.c.l.bf16 %v24
  %v41 = vunpack.c.l.bf16 %v25
  %v42 = vunpack.c.l.bf16 %v26
  %v43 = vunpack.c.l.bf16 %v27
  %v44 = vunpack.c.l.bf16 %v28
  %v45 = vunpack.c.l.bf16 %v29
  %v46 = vunpack.c.l.bf16 %v30
  %v47 = vunpack.c.l.bf16 %v31
  %v48 = vunpack.c.l.bf16 %v32
  %v49 = vunpack.c.l.bf16 %v33
  %v50 = vunpack.c.l.bf16 %v34
  %v51 = vunpack.c.l.bf16 %v35
  %v52 = vld [vmem:[%s1] sm:$0x1]
  %v54 = vlaneseq
  %v55 = vshrl.u32 %v54, 7
  %v56 = vsub.s32 0, %v55
  %v57 = vrot.slane %v52, %v56
  %v59 = vmul.f32 %v36, %v57
  %v60 = vmul.f32 %v37, %v57
  %v61 = vmul.f32 %v38, %v57
  %v62 = vmul.f32 %v39, %v57
  %v63 = vmul.f32 %v40, %v57
  %v64 = vmul.f32 %v41, %v57
  %v65 = vmul.f32 %v42, %v57
  %v66 = vmul.f32 %v43, %v57
  %v67 = vmul.f32 %v44, %v57
  %v68 = vmul.f32 %v45, %v57
  %v69 = vmul.f32 %v46, %v57
  %v70 = vmul.f32 %v47, %v57
  %v71 = vmul.f32 %v48, %v57
  %v72 = vmul.f32 %v49, %v57
  %v73 = vmul.f32 %v50, %v57
  %v74 = vmul.f32 %v51, %v57
  %v75 = vld [vmem:[%s2] sm:$0x1]
  %v77 = vlaneseq
  %v78 = vshrl.u32 %v77, 7
  %v79 = vsub.s32 0, %v78
  %v80 = vrot.slane %v75, %v79
  %v82 = vadd.f32 %v59, %v80
  %v83 = vadd.f32 %v60, %v80
  %v84 = vadd.f32 %v61, %v80
  %v85 = vadd.f32 %v62, %v80
  %v86 = vadd.f32 %v63, %v80
  %v87 = vadd.f32 %v64, %v80
  %v88 = vadd.f32 %v65, %v80
  %v89 = vadd.f32 %v66, %v80
  %v90 = vadd.f32 %v67, %v80
  %v91 = vadd.f32 %v68, %v80
  %v92 = vadd.f32 %v69, %v80
  %v93 = vadd.f32 %v70, %v80
  %v94 = vadd.f32 %v71, %v80
  %v95 = vadd.f32 %v72, %v80
  %v96 = vadd.f32 %v73, %v80
  %v97 = vadd.f32 %v74, %v80
  %v98 = vmax.f32 %v82, 0.0
  %v99 = vmax.f32 %v83, 0.0
  %v100 = vmax.f32 %v84, 0.0
  %v101 = vmax.f32 %v85, 0.0
  %v102 = vmax.f32 %v86, 0.0
  %v103 = vmax.f32 %v87, 0.0
  %v104 = vmax.f32 %v88, 0.0
  %v105 = vmax.f32 %v89, 0.0
  %v106 = vmax.f32 %v90, 0.0
  %v107 = vmax.f32 %v91, 0.0
  %v108 = vmax.f32 %v92, 0.0
  %v109 = vmax.f32 %v93, 0.0
  %v110 = vmax.f32 %v94, 0.0
  %v111 = vmax.f32 %v95, 0.0
  %v112 = vmax.f32 %v96, 0.0
  %v113 = vmax.f32 %v97, 0.0
  %v114 = vpack.c.bf16 %v99, %v98
  %v115 = vpack.c.bf16 %v101, %v100
  %v116 = vpack.c.bf16 %v103, %v102
  %v117 = vpack.c.bf16 %v105, %v104
  %v118 = vpack.c.bf16 %v107, %v106
  %v119 = vpack.c.bf16 %v109, %v108
  %v120 = vpack.c.bf16 %v111, %v110
  %v121 = vpack.c.bf16 %v113, %v112
  %v122 = vld [vmem:[%s3] sm:$0xf]
  %v123 = vld [vmem:[%s3 + $0x4] sm:$0xf]
  %v126 = vunpack.c.l.b16 %v122
  %v127 = vunpack.c.l.b16 %v123
  %v128 = vpack.c.b16 %v127, %v126
  %vm130 = vcmask 130048
  %v132 = vsel %vm130, %v114, 0
  %v135 = vsel %vm130, %v115, 0
  %v138 = vsel %vm130, %v116, 0
  %v141 = vsel %vm130, %v117, 0
  %v144 = vsel %vm130, %v118, 0
  %v147 = vsel %vm130, %v119, 0
  %v150 = vsel %vm130, %v120, 0
  %v153 = vsel %vm130, %v121, 0
  %155 = vmatprep.subr.bf16.mxu0 0
  %156 = vmatpush1.bf16.msra.mxu0 0
  %157 = vmatprep.subr.bf16.mxu0 0
  %158 = vmatpush1.bf16.msra.mxu0 0
  %159 = vmatprep.subr.bf16.mxu0 0
  %160 = vmatpush1.bf16.msra.mxu0 0
  %161 = vmatprep.subr.bf16.mxu0 0
  %162 = vmatpush1.bf16.msra.mxu0 0
  %163 = vmatprep.subr.bf16.mxu0 0
  %164 = vmatpush1.bf16.msra.mxu0 0
  %165 = vmatprep.subr.bf16.mxu0 0
  %166 = vmatpush1.bf16.msra.mxu0 0
  %167 = vmatprep.subr.bf16.mxu0 0
  %168 = vmatpush1.bf16.msra.mxu0 0
  %169 = vmatprep.subr.bf16.mxu0 0
  %170 = vmatpush1.bf16.msra.mxu0 %v128
  %171 = vmatprep.subr.bf16.mxu0 0
  %172 = vmatpush2.bf16.msra.mxu0 0
  %173 = vmatprep.subr.bf16.mxu0 0
  %174 = vmatpush2.bf16.msra.mxu0 0
  %175 = vmatprep.subr.bf16.mxu0 0
  %176 = vmatpush2.bf16.msra.mxu0 0
  %177 = vmatprep.subr.bf16.mxu0 0
  %178 = vmatpush2.bf16.msra.mxu0 0
  %179 = vmatprep.subr.bf16.mxu0 0
  %180 = vmatpush2.bf16.msra.mxu0 0
  %181 = vmatprep.subr.bf16.mxu0 0
  %182 = vmatpush2.bf16.msra.mxu0 0
  %183 = vmatprep.subr.bf16.mxu0 0
  %184 = vmatpush2.bf16.msra.mxu0 0
  %185 = vmatprep.subr.bf16.mxu0 0
  %186 = vmatpush2.bf16.msra.mxu0 0
  %187 = vmatprep.mubr.bf16.mxu0 0
  %188 = vmatmul.mubr.bf16.gmra.mxu0 %v132
  %v189 = vpop.f32.mrf.mxu0
  %v190 = vadd.f32 0.0, %v189
  %v191 = vpop.f32.mrf.mxu0
  %v192 = vpop.f32.mrf.mxu0
  %v193 = vadd.f32 0.0, %v192
  %v194 = vpop.f32.mrf.mxu0
  %195 = vmatprep.mubr.bf16.mxu0 0
  %196 = vmatmul.mubr.bf16.gmra.mxu0 %v135
  %v197 = vpop.f32.mrf.mxu0
  %v198 = vadd.f32 0.0, %v197
  %v199 = vpop.f32.mrf.mxu0
  %v200 = vpop.f32.mrf.mxu0
  %v201 = vadd.f32 0.0, %v200
  %v202 = vpop.f32.mrf.mxu0
  %203 = vmatprep.mubr.bf16.mxu0 0
  %204 = vmatmul.mubr.bf16.gmra.mxu0 %v138
  %v205 = vpop.f32.mrf.mxu0
  %v206 = vadd.f32 0.0, %v205
  %v207 = vpop.f32.mrf.mxu0
  %v208 = vpop.f32.mrf.mxu0
  %v209 = vadd.f32 0.0, %v208
  %v210 = vpop.f32.mrf.mxu0
  %211 = vmatprep.mubr.bf16.mxu0 0
  %212 = vmatmul.mubr.bf16.gmra.mxu0 %v141
  %v213 = vpop.f32.mrf.mxu0
  %v214 = vadd.f32 0.0, %v213
  %v215 = vpop.f32.mrf.mxu0
  %v216 = vpop.f32.mrf.mxu0
  %v217 = vadd.f32 0.0, %v216
  %v218 = vpop.f32.mrf.mxu0
  %219 = vmatprep.mubr.bf16.mxu0 0
  %220 = vmatmul.mubr.bf16.gmra.mxu0 %v144
  %v221 = vpop.f32.mrf.mxu0
  %v222 = vadd.f32 0.0, %v221
  %v223 = vpop.f32.mrf.mxu0
  %v224 = vpop.f32.mrf.mxu0
  %v225 = vadd.f32 0.0, %v224
  %v226 = vpop.f32.mrf.mxu0
  %227 = vmatprep.mubr.bf16.mxu0 0
  %228 = vmatmul.mubr.bf16.gmra.mxu0 %v147
  %v229 = vpop.f32.mrf.mxu0
  %v230 = vadd.f32 0.0, %v229
  %v231 = vpop.f32.mrf.mxu0
  %v232 = vpop.f32.mrf.mxu0
  %v233 = vadd.f32 0.0, %v232
  %v234 = vpop.f32.mrf.mxu0
  %235 = vmatprep.mubr.bf16.mxu0 0
  %236 = vmatmul.mubr.bf16.gmra.mxu0 %v150
  %v237 = vpop.f32.mrf.mxu0
  %v238 = vadd.f32 0.0, %v237
  %v239 = vpop.f32.mrf.mxu0
  %v240 = vpop.f32.mrf.mxu0
  %v241 = vadd.f32 0.0, %v240
  %v242 = vpop.f32.mrf.mxu0
  %243 = vmatprep.mubr.bf16.mxu0 0
  %244 = vmatmul.mubr.bf16.gmra.mxu0 %v153
  %v245 = vpop.f32.mrf.mxu0
  %v246 = vadd.f32 0.0, %v245
  %v247 = vpop.f32.mrf.mxu0
  %v248 = vpop.f32.mrf.mxu0
  %v249 = vadd.f32 0.0, %v248
  %v250 = vpop.f32.mrf.mxu0
  %251 = vdwg.mxu0
  %v252 = vpack.c.bf16 %v193, %v190
  %v253 = vpack.c.bf16 %v201, %v198
  %v254 = vpack.c.bf16 %v209, %v206
  %v255 = vpack.c.bf16 %v217, %v214
  %v256 = vpack.c.bf16 %v225, %v222
  %v257 = vpack.c.bf16 %v233, %v230
  %v258 = vpack.c.bf16 %v241, %v238
  %v259 = vpack.c.bf16 %v249, %v246
  %v268 = vunpack.c.l.b16 %v252
  %v269 = vunpack.c.h.b16 %v252
  %v270 = vunpack.c.l.b16 %v253
  %v271 = vunpack.c.h.b16 %v253
  %v272 = vunpack.c.l.b16 %v254
  %v273 = vunpack.c.h.b16 %v254
  %v274 = vunpack.c.l.b16 %v255
  %v275 = vunpack.c.h.b16 %v255
  %v276 = vunpack.c.l.b16 %v256
  %v277 = vunpack.c.h.b16 %v256
  %v278 = vunpack.c.l.b16 %v257
  %v279 = vunpack.c.h.b16 %v257
  %v280 = vunpack.c.l.b16 %v258
  %v281 = vunpack.c.h.b16 %v258
  %v282 = vunpack.c.l.b16 %v259
  %v283 = vunpack.c.h.b16 %v259
  %v284 = vpack.c.b16 %v268, %v268
  %v285 = vpack.c.b16 %v269, %v269
  %v286 = vpack.c.b16 %v270, %v270
  %v287 = vpack.c.b16 %v271, %v271
  %v288 = vpack.c.b16 %v272, %v272
  %v289 = vpack.c.b16 %v273, %v273
  %v290 = vpack.c.b16 %v274, %v274
  %v291 = vpack.c.b16 %v275, %v275
  %v292 = vpack.c.b16 %v276, %v276
  %v293 = vpack.c.b16 %v277, %v277
  %v294 = vpack.c.b16 %v278, %v278
  %v295 = vpack.c.b16 %v279, %v279
  %v296 = vpack.c.b16 %v280, %v280
  %v297 = vpack.c.b16 %v281, %v281
  %v298 = vpack.c.b16 %v282, %v282
  %v299 = vpack.c.b16 %v283, %v283
  %vm316 = vcmask 257024
  %317 = vst.msk [vmem:[%s4] sm:$0xf] %vm316, %v284
  %318 = vst.msk [vmem:[%s4 + $0x4] sm:$0xf] %vm316, %v285
  %319 = vst.msk [vmem:[%s4 + $0x8] sm:$0xf] %vm316, %v286
  %320 = vst.msk [vmem:[%s4 + $0xc] sm:$0xf] %vm316, %v287
  %321 = vst.msk [vmem:[%s4 + $0x10] sm:$0xf] %vm316, %v288
  %322 = vst.msk [vmem:[%s4 + $0x14] sm:$0xf] %vm316, %v289
  %323 = vst.msk [vmem:[%s4 + $0x18] sm:$0xf] %vm316, %v290
  %324 = vst.msk [vmem:[%s4 + $0x1c] sm:$0xf] %vm316, %v291
  %325 = vst.msk [vmem:[%s4 + $0x20] sm:$0xf] %vm316, %v292
  %326 = vst.msk [vmem:[%s4 + $0x24] sm:$0xf] %vm316, %v293
  %327 = vst.msk [vmem:[%s4 + $0x28] sm:$0xf] %vm316, %v294
  %328 = vst.msk [vmem:[%s4 + $0x2c] sm:$0xf] %vm316, %v295
  %329 = vst.msk [vmem:[%s4 + $0x30] sm:$0xf] %vm316, %v296
  %330 = vst.msk [vmem:[%s4 + $0x34] sm:$0xf] %vm316, %v297
  %331 = vst.msk [vmem:[%s4 + $0x38] sm:$0xf] %vm316, %v298
  %332 = vst.msk [vmem:[%s4 + $0x3c] sm:$0xf] %vm316, %v299
  %vm333 = vcmask 261120
  %v334 = vsel %vm333, %v190, 0.0
  %v335 = vsel %vm333, %v193, 0.0
  %v336 = vadd.f32 %v334, %v335
  %v337 = vsel %vm333, %v198, 0.0
  %v338 = vadd.f32 %v336, %v337
  %v339 = vsel %vm333, %v201, 0.0
  %v340 = vadd.f32 %v338, %v339
  %v341 = vsel %vm333, %v206, 0.0
  %v342 = vadd.f32 %v340, %v341
  %v343 = vsel %vm333, %v209, 0.0
  %v344 = vadd.f32 %v342, %v343
  %v345 = vsel %vm333, %v214, 0.0
  %v346 = vadd.f32 %v344, %v345
  %v347 = vsel %vm333, %v217, 0.0
  %v348 = vadd.f32 %v346, %v347
  %v349 = vsel %vm333, %v222, 0.0
  %v350 = vadd.f32 %v348, %v349
  %v351 = vsel %vm333, %v225, 0.0
  %v352 = vadd.f32 %v350, %v351
  %v353 = vsel %vm333, %v230, 0.0
  %v354 = vadd.f32 %v352, %v353
  %v355 = vsel %vm333, %v233, 0.0
  %v356 = vadd.f32 %v354, %v355
  %v357 = vsel %vm333, %v238, 0.0
  %v358 = vadd.f32 %v356, %v357
  %v359 = vsel %vm333, %v241, 0.0
  %v360 = vadd.f32 %v358, %v359
  %v361 = vsel %vm333, %v246, 0.0
  %v362 = vadd.f32 %v360, %v361
  %v363 = vsel %vm333, %v249, 0.0
  %v364 = vadd.f32 %v362, %v363
  %v365 = vrot.slane %v364, 4
  %v366 = vadd.f32 %v364, %v365
  %v367 = vrot.slane %v366, 2
  %v368 = vadd.f32 %v366, %v367
  %v369 = vrot.slane %v368, 1
  %v370 = vadd.f32 %v368, %v369
  %vm371 = vcmask 253952
  %372 = vst.msk [vmem:[%s5] sm:$0x1] %vm371, %v370
  %v373 = vmul.f32 %v190, %v190
  %v374 = vmul.f32 %v193, %v193
  %v375 = vmul.f32 %v198, %v198
  %v376 = vmul.f32 %v201, %v201
  %v377 = vmul.f32 %v206, %v206
  %v378 = vmul.f32 %v209, %v209
  %v379 = vmul.f32 %v214, %v214
  %v380 = vmul.f32 %v217, %v217
  %v381 = vmul.f32 %v222, %v222
  %v382 = vmul.f32 %v225, %v225
  %v383 = vmul.f32 %v230, %v230
  %v384 = vmul.f32 %v233, %v233
  %v385 = vmul.f32 %v238, %v238
  %v386 = vmul.f32 %v241, %v241
  %v387 = vmul.f32 %v246, %v246
  %v388 = vmul.f32 %v249, %v249
  %v389 = vsel %vm333, %v373, 0.0
  %v390 = vsel %vm333, %v374, 0.0
  %v391 = vadd.f32 %v389, %v390
  %v392 = vsel %vm333, %v375, 0.0
  %v393 = vadd.f32 %v391, %v392
  %v394 = vsel %vm333, %v376, 0.0
  %v395 = vadd.f32 %v393, %v394
  %v396 = vsel %vm333, %v377, 0.0
  %v397 = vadd.f32 %v395, %v396
  %v398 = vsel %vm333, %v378, 0.0
  %v399 = vadd.f32 %v397, %v398
  %v400 = vsel %vm333, %v379, 0.0
  %v401 = vadd.f32 %v399, %v400
  %v402 = vsel %vm333, %v380, 0.0
  %v403 = vadd.f32 %v401, %v402
  %v404 = vsel %vm333, %v381, 0.0
  %v405 = vadd.f32 %v403, %v404
  %v406 = vsel %vm333, %v382, 0.0
  %v407 = vadd.f32 %v405, %v406
  %v408 = vsel %vm333, %v383, 0.0
  %v409 = vadd.f32 %v407, %v408
  %v410 = vsel %vm333, %v384, 0.0
  %v411 = vadd.f32 %v409, %v410
  %v412 = vsel %vm333, %v385, 0.0
  %v413 = vadd.f32 %v411, %v412
  %v414 = vsel %vm333, %v386, 0.0
  %v415 = vadd.f32 %v413, %v414
  %v416 = vsel %vm333, %v387, 0.0
  %v417 = vadd.f32 %v415, %v416
  %v418 = vsel %vm333, %v388, 0.0
  %v419 = vadd.f32 %v417, %v418
  %v420 = vrot.slane %v419, 4
  %v421 = vadd.f32 %v419, %v420
  %v422 = vrot.slane %v421, 2
  %v423 = vadd.f32 %v421, %v422
  %v424 = vrot.slane %v423, 1
  %v425 = vadd.f32 %v423, %v424
  %426 = vst.msk [vmem:[%s5 + $0x1] sm:$0x1] %vm371, %v425
  // Predicated region
  $region18: #{bottleneck_forward.9} parent=0 // pred_check
    _
  $region19: #{bottleneck_forward.9} parent=0 // pred_check_branch
    %428 = sbr.rel (0) target = $region21
  $region20: #{bottleneck_forward.9} parent=0 // pred_region
    _
  $region21: #{bottleneck_forward.9} parent=0 // pred_fallthru
    _
  // Predicated region
  $region22: #{bottleneck_forward.9} parent=0 // pred_check
    _
  $region23: #{bottleneck_forward.9} parent=0 // pred_check_branch
    %430 = sbr.rel (0) target = $region25
  $region24: #{bottleneck_forward.9} parent=0 // pred_region
    _
  $region25: #{bottleneck_forward.9} parent=0 // pred_fallthru
    _
  // Predicated region
  $region26: #{bottleneck_forward.9} parent=0 // pred_check
    _
  $region27: #{bottleneck_forward.9} parent=0 // pred_check_branch
    %432 = sbr.rel (0) target = $region29
  $region28: #{bottleneck_forward.9} parent=0 // pred_region
    _
  $region29: #{bottleneck_forward.9} parent=0 // pred_fallthru
    _
  // Predicated region
  $region30: #{bottleneck_forward.9} parent=0 // pred_check
    _
  $region31: #{bottleneck_forward.9} parent=0 // pred_check_branch
    %434 = sbr.rel (0) target = $region33
  $region32: #{bottleneck_forward.9} parent=0 // pred_region
    _
  $region33: #{bottleneck_forward.9} parent=0 // pred_fallthru
    _

// kernel: bottleneck_forward.10
$region0: #{bottleneck_forward.10}
  #allocation0 [shape = 'u32[]', space=smem, size = 0x4, offset = 0x4, fixed_abs, tag = 'smem constant byte address 0x4 - core index']
  #allocation1 [shape = 'u32[144,128]{1,0:T(1,128)}', space=vmem, size = 0x12000, scoped, tag = 'internal scratch']
  %s0 = inlined_call_operand.vmem [shape: bf16[128,8], index: 0, kind: input, shape index: {}]
  %s1 = inlined_call_operand.vmem [shape: bf16[8,32], index: 1, kind: input, shape index: {}]
  %s2 = inlined_call_operand.vmem [shape: bf16[128,32], index: 2, kind: output, shape index: {0}]
  %s3 = inlined_call_operand.vmem [shape: f32[1,2,32], index: 3, kind: output, shape index: {1}]
  %4 = xla_tuple %s2, %s3
  %s5 = sld [smem:[#allocation0]]
  $region26: #{bottleneck_forward.10} parent=0
    _
  %s7 = ssub.s32 1, %s5
  %s8 = scalar_select 0, %s7, %s5
  // Predicated region
  $region2: #{bottleneck_forward.10} parent=0 // pred_check
    _
  $region3: #{bottleneck_forward.10} parent=0 // pred_check_branch
    %10 = sbr.rel (0) target = $region5
  $region4: #{bottleneck_forward.10} parent=0 // pred_region
    _
  $region5: #{bottleneck_forward.10} parent=0 // pred_fallthru
    _
  // Predicated region
  $region6: #{bottleneck_forward.10} parent=0 // pred_check
    _
  $region7: #{bottleneck_forward.10} parent=0 // pred_check_branch
    %12 = sbr.rel (0) target = $region9
  $region8: #{bottleneck_forward.10} parent=0 // pred_region
    _
  $region9: #{bottleneck_forward.10} parent=0 // pred_fallthru
    _
  %v14 = vld [vmem:[%s0] sm:$0xf]
  %v15 = vld [vmem:[%s0 + $0x4] sm:$0xf]
  %v16 = vld [vmem:[%s0 + $0x8] sm:$0xf]
  %v17 = vld [vmem:[%s0 + $0xc] sm:$0xf]
  %v18 = vld [vmem:[%s0 + $0x10] sm:$0xf]
  %v19 = vld [vmem:[%s0 + $0x14] sm:$0xf]
  %v20 = vld [vmem:[%s0 + $0x18] sm:$0xf]
  %v21 = vld [vmem:[%s0 + $0x1c] sm:$0xf]
  %v22 = vld [vmem:[%s0 + $0x20] sm:$0xf]
  %v23 = vld [vmem:[%s0 + $0x24] sm:$0xf]
  %v24 = vld [vmem:[%s0 + $0x28] sm:$0xf]
  %v25 = vld [vmem:[%s0 + $0x2c] sm:$0xf]
  %v26 = vld [vmem:[%s0 + $0x30] sm:$0xf]
  %v27 = vld [vmem:[%s0 + $0x34] sm:$0xf]
  %v28 = vld [vmem:[%s0 + $0x38] sm:$0xf]
  %v29 = vld [vmem:[%s0 + $0x3c] sm:$0xf]
  %v30 = vld [vmem:[%s1] sm:$0xf]
  %v47 = vunpack.c.l.b16 %v14
  %v48 = vunpack.c.l.b16 %v15
  %v49 = vunpack.c.l.b16 %v16
  %v50 = vunpack.c.l.b16 %v17
  %v51 = vunpack.c.l.b16 %v18
  %v52 = vunpack.c.l.b16 %v19
  %v53 = vunpack.c.l.b16 %v20
  %v54 = vunpack.c.l.b16 %v21
  %v55 = vunpack.c.l.b16 %v22
  %v56 = vunpack.c.l.b16 %v23
  %v57 = vunpack.c.l.b16 %v24
  %v58 = vunpack.c.l.b16 %v25
  %v59 = vunpack.c.l.b16 %v26
  %v60 = vunpack.c.l.b16 %v27
  %v61 = vunpack.c.l.b16 %v28
  %v62 = vunpack.c.l.b16 %v29
  %v63 = vpack.c.b16 %v48, %v47
  %v64 = vpack.c.b16 %v50, %v49
  %v65 = vpack.c.b16 %v52, %v51
  %v66 = vpack.c.b16 %v54, %v53
  %v67 = vpack.c.b16 %v56, %v55
  %v68 = vpack.c.b16 %v58, %v57
  %v69 = vpack.c.b16 %v60, %v59
  %v70 = vpack.c.b16 %v62, %v61
  %vm71 = vcmask 64512
  %v73 = vsel %vm71, %v63, 0
  %v76 = vsel %vm71, %v64, 0
  %v79 = vsel %vm71, %v65, 0
  %v82 = vsel %vm71, %v66, 0
  %v85 = vsel %vm71, %v67, 0
  %v88 = vsel %vm71, %v68, 0
  %v91 = vsel %vm71, %v69, 0
  %v94 = vsel %vm71, %v70, 0
  %vm96 = vcmask 1043456
  %v98 = vsel %vm96, %v30, 0
  %100 = vmatprep.subr.bf16.mxu0 0
  %101 = vmatpush1.bf16.msra.mxu0 0
  %102 = vmatprep.subr.bf16.mxu0 0
  %103 = vmatpush1.bf16.msra.mxu0 0
  %104 = vmatprep.subr.bf16.mxu0 0
  %105 = vmatpush1.bf16.msra.mxu0 0
  %106 = vmatprep.subr.bf16.mxu0 0
  %107 = vmatpush1.bf16.msra.mxu0 0
  %108 = vmatprep.subr.bf16.mxu0 0
  %109 = vmatpush1.bf16.msra.mxu0 0
  %110 = vmatprep.subr.bf16.mxu0 0
  %111 = vmatpush1.bf16.msra.mxu0 0
  %112 = vmatprep.subr.bf16.mxu0 0
  %113 = vmatpush1.bf16.msra.mxu0 0
  %114 = vmatprep.subr.bf16.mxu0 0
  %115 = vmatpush1.bf16.msra.mxu0 %v98
  %116 = vmatprep.subr.bf16.mxu0 0
  %117 = vmatpush2.bf16.msra.mxu0 0
  %118 = vmatprep.subr.bf16.mxu0 0
  %119 = vmatpush2.bf16.msra.mxu0 0
  %120 = vmatprep.subr.bf16.mxu0 0
  %121 = vmatpush2.bf16.msra.mxu0 0
  %122 = vmatprep.subr.bf16.mxu0 0
  %123 = vmatpush2.bf16.msra.mxu0 0
  %124 = vmatprep.subr.bf16.mxu0 0
  %125 = vmatpush2.bf16.msra.mxu0 0
  %126 = vmatprep.subr.bf16.mxu0 0
  %127 = vmatpush2.bf16.msra.mxu0 0
  %128 = vmatprep.subr.bf16.mxu0 0
  %129 = vmatpush2.bf16.msra.mxu0 0
  %130 = vmatprep.subr.bf16.mxu0 0
  %131 = vmatpush2.bf16.msra.mxu0 0
  %132 = vmatprep.mubr.bf16.mxu0 0
  %133 = vmatmul.mubr.bf16.gmra.mxu0 %v73
  %v134 = vpop.f32.mrf.mxu0
  %v135 = vadd.f32 0.0, %v134
  %v136 = vpop.f32.mrf.mxu0
  %v137 = vpop.f32.mrf.mxu0
  %v138 = vadd.f32 0.0, %v137
  %v139 = vpop.f32.mrf.mxu0
  %140 = vmatprep.mubr.bf16.mxu0 0
  %141 = vmatmul.mubr.bf16.gmra.mxu0 %v76
  %v142 = vpop.f32.mrf.mxu0
  %v143 = vadd.f32 0.0, %v142
  %v144 = vpop.f32.mrf.mxu0
  %v145 = vpop.f32.mrf.mxu0
  %v146 = vadd.f32 0.0, %v145
  %v147 = vpop.f32.mrf.mxu0
  %148 = vmatprep.mubr.bf16.mxu0 0
  %149 = vmatmul.mubr.bf16.gmra.mxu0 %v79
  %v150 = vpop.f32.mrf.mxu0
  %v151 = vadd.f32 0.0, %v150
  %v152 = vpop.f32.mrf.mxu0
  %v153 = vpop.f32.mrf.mxu0
  %v154 = vadd.f32 0.0, %v153
  %v155 = vpop.f32.mrf.mxu0
  %156 = vmatprep.mubr.bf16.mxu0 0
  %157 = vmatmul.mubr.bf16.gmra.mxu0 %v82
  %v158 = vpop.f32.mrf.mxu0
  %v159 = vadd.f32 0.0, %v158
  %v160 = vpop.f32.mrf.mxu0
  %v161 = vpop.f32.mrf.mxu0
  %v162 = vadd.f32 0.0, %v161
  %v163 = vpop.f32.mrf.mxu0
  %164 = vmatprep.mubr.bf16.mxu0 0
  %165 = vmatmul.mubr.bf16.gmra.mxu0 %v85
  %v166 = vpop.f32.mrf.mxu0
  %v167 = vadd.f32 0.0, %v166
  %v168 = vpop.f32.mrf.mxu0
  %v169 = vpop.f32.mrf.mxu0
  %v170 = vadd.f32 0.0, %v169
  %v171 = vpop.f32.mrf.mxu0
  %172 = vmatprep.mubr.bf16.mxu0 0
  %173 = vmatmul.mubr.bf16.gmra.mxu0 %v88
  %v174 = vpop.f32.mrf.mxu0
  %v175 = vadd.f32 0.0, %v174
  %v176 = vpop.f32.mrf.mxu0
  %v177 = vpop.f32.mrf.mxu0
  %v178 = vadd.f32 0.0, %v177
  %v179 = vpop.f32.mrf.mxu0
  %180 = vmatprep.mubr.bf16.mxu0 0
  %181 = vmatmul.mubr.bf16.gmra.mxu0 %v91
  %v182 = vpop.f32.mrf.mxu0
  %v183 = vadd.f32 0.0, %v182
  %v184 = vpop.f32.mrf.mxu0
  %v185 = vpop.f32.mrf.mxu0
  %v186 = vadd.f32 0.0, %v185
  %v187 = vpop.f32.mrf.mxu0
  %188 = vmatprep.mubr.bf16.mxu0 0
  %189 = vmatmul.mubr.bf16.gmra.mxu0 %v94
  %v190 = vpop.f32.mrf.mxu0
  %v191 = vadd.f32 0.0, %v190
  %v192 = vpop.f32.mrf.mxu0
  %v193 = vpop.f32.mrf.mxu0
  %v194 = vadd.f32 0.0, %v193
  %v195 = vpop.f32.mrf.mxu0
  %196 = vdwg.mxu0
  %v197 = vpack.c.bf16 %v138, %v135
  %v198 = vpack.c.bf16 %v146, %v143
  %v199 = vpack.c.bf16 %v154, %v151
  %v200 = vpack.c.bf16 %v162, %v159
  %v201 = vpack.c.bf16 %v170, %v167
  %v202 = vpack.c.bf16 %v178, %v175
  %v203 = vpack.c.bf16 %v186, %v183
  %v204 = vpack.c.bf16 %v194, %v191
  %v213 = vunpack.c.l.b16 %v197
  %v214 = vunpack.c.h.b16 %v197
  %v215 = vunpack.c.l.b16 %v198
  %v216 = vunpack.c.h.b16 %v198
  %v217 = vunpack.c.l.b16 %v199
  %v218 = vunpack.c.h.b16 %v199
  %v219 = vunpack.c.l.b16 %v200
  %v220 = vunpack.c.h.b16 %v200
  %v221 = vunpack.c.l.b16 %v201
  %v222 = vunpack.c.h.b16 %v201
  %v223 = vunpack.c.l.b16 %v202
  %v224 = vunpack.c.h.b16 %v202
  %v225 = vunpack.c.l.b16 %v203
  %v226 = vunpack.c.h.b16 %v203
  %v227 = vunpack.c.l.b16 %v204
  %v228 = vunpack.c.h.b16 %v204
  %v229 = vpack.c.b16 %v213, %v213
  %v230 = vpack.c.b16 %v214, %v214
  %v231 = vpack.c.b16 %v215, %v215
  %v232 = vpack.c.b16 %v216, %v216
  %v233 = vpack.c.b16 %v217, %v217
  %v234 = vpack.c.b16 %v218, %v218
  %v235 = vpack.c.b16 %v219, %v219
  %v236 = vpack.c.b16 %v220, %v220
  %v237 = vpack.c.b16 %v221, %v221
  %v238 = vpack.c.b16 %v222, %v222
  %v239 = vpack.c.b16 %v223, %v223
  %v240 = vpack.c.b16 %v224, %v224
  %v241 = vpack.c.b16 %v225, %v225
  %v242 = vpack.c.b16 %v226, %v226
  %v243 = vpack.c.b16 %v227, %v227
  %v244 = vpack.c.b16 %v228, %v228
  %vm261 = vcmask 257024
  %262 = vst.msk [vmem:[%s2] sm:$0xf] %vm261, %v229
  %263 = vst.msk [vmem:[%s2 + $0x4] sm:$0xf] %vm261, %v230
  %264 = vst.msk [vmem:[%s2 + $0x8] sm:$0xf] %vm261, %v231
  %265 = vst.msk [vmem:[%s2 + $0xc] sm:$0xf] %vm261, %v232
  %266 = vst.msk [vmem:[%s2 + $0x10] sm:$0xf] %vm261, %v233
  %267 = vst.msk [vmem:[%s2 + $0x14] sm:$0xf] %vm261, %v234
  %268 = vst.msk [vmem:[%s2 + $0x18] sm:$0xf] %vm261, %v235
  %269 = vst.msk [vmem:[%s2 + $0x1c] sm:$0xf] %vm261, %v236
  %270 = vst.msk [vmem:[%s2 + $0x20] sm:$0xf] %vm261, %v237
  %271 = vst.msk [vmem:[%s2 + $0x24] sm:$0xf] %vm261, %v238
  %272 = vst.msk [vmem:[%s2 + $0x28] sm:$0xf] %vm261, %v239
  %273 = vst.msk [vmem:[%s2 + $0x2c] sm:$0xf] %vm261, %v240
  %274 = vst.msk [vmem:[%s2 + $0x30] sm:$0xf] %vm261, %v241
  %275 = vst.msk [vmem:[%s2 + $0x34] sm:$0xf] %vm261, %v242
  %276 = vst.msk [vmem:[%s2 + $0x38] sm:$0xf] %vm261, %v243
  %277 = vst.msk [vmem:[%s2 + $0x3c] sm:$0xf] %vm261, %v244
  %vm278 = vcmask 261120
  %v279 = vsel %vm278, %v135, 0.0
  %v280 = vsel %vm278, %v138, 0.0
  %v281 = vadd.f32 %v279, %v280
  %v282 = vsel %vm278, %v143, 0.0
  %v283 = vadd.f32 %v281, %v282
  %v284 = vsel %vm278, %v146, 0.0
  %v285 = vadd.f32 %v283, %v284
  %v286 = vsel %vm278, %v151, 0.0
  %v287 = vadd.f32 %v285, %v286
  %v288 = vsel %vm278, %v154, 0.0
  %v289 = vadd.f32 %v287, %v288
  %v290 = vsel %vm278, %v159, 0.0
  %v291 = vadd.f32 %v289, %v290
  %v292 = vsel %vm278, %v162, 0.0
  %v293 = vadd.f32 %v291, %v292
  %v294 = vsel %vm278, %v167, 0.0
  %v295 = vadd.f32 %v293, %v294
  %v296 = vsel %vm278, %v170, 0.0
  %v297 = vadd.f32 %v295, %v296
  %v298 = vsel %vm278, %v175, 0.0
  %v299 = vadd.f32 %v297, %v298
  %v300 = vsel %vm278, %v178, 0.0
  %v301 = vadd.f32 %v299, %v300
  %v302 = vsel %vm278, %v183, 0.0
  %v303 = vadd.f32 %v301, %v302
  %v304 = vsel %vm278, %v186, 0.0
  %v305 = vadd.f32 %v303, %v304
  %v306 = vsel %vm278, %v191, 0.0
  %v307 = vadd.f32 %v305, %v306
  %v308 = vsel %vm278, %v194, 0.0
  %v309 = vadd.f32 %v307, %v308
  %v310 = vrot.slane %v309, 4
  %v311 = vadd.f32 %v309, %v310
  %v312 = vrot.slane %v311, 2
  %v313 = vadd.f32 %v311, %v312
  %v314 = vrot.slane %v313, 1
  %v315 = vadd.f32 %v313, %v314
  %vm316 = vcmask 253952
  %317 = vst.msk [vmem:[%s3] sm:$0x1] %vm316, %v315
  %v318 = vmul.f32 %v135, %v135
  %v319 = vmul.f32 %v138, %v138
  %v320 = vmul.f32 %v143, %v143
  %v321 = vmul.f32 %v146, %v146
  %v322 = vmul.f32 %v151, %v151
  %v323 = vmul.f32 %v154, %v154
  %v324 = vmul.f32 %v159, %v159
  %v325 = vmul.f32 %v162, %v162
  %v326 = vmul.f32 %v167, %v167
  %v327 = vmul.f32 %v170, %v170
  %v328 = vmul.f32 %v175, %v175
  %v329 = vmul.f32 %v178, %v178
  %v330 = vmul.f32 %v183, %v183
  %v331 = vmul.f32 %v186, %v186
  %v332 = vmul.f32 %v191, %v191
  %v333 = vmul.f32 %v194, %v194
  %v334 = vsel %vm278, %v318, 0.0
  %v335 = vsel %vm278, %v319, 0.0
  %v336 = vadd.f32 %v334, %v335
  %v337 = vsel %vm278, %v320, 0.0
  %v338 = vadd.f32 %v336, %v337
  %v339 = vsel %vm278, %v321, 0.0
  %v340 = vadd.f32 %v338, %v339
  %v341 = vsel %vm278, %v322, 0.0
  %v342 = vadd.f32 %v340, %v341
  %v343 = vsel %vm278, %v323, 0.0
  %v344 = vadd.f32 %v342, %v343
  %v345 = vsel %vm278, %v324, 0.0
  %v346 = vadd.f32 %v344, %v345
  %v347 = vsel %vm278, %v325, 0.0
  %v348 = vadd.f32 %v346, %v347
  %v349 = vsel %vm278, %v326, 0.0
  %v350 = vadd.f32 %v348, %v349
  %v351 = vsel %vm278, %v327, 0.0
  %v352 = vadd.f32 %v350, %v351
  %v353 = vsel %vm278, %v328, 0.0
  %v354 = vadd.f32 %v352, %v353
  %v355 = vsel %vm278, %v329, 0.0
  %v356 = vadd.f32 %v354, %v355
  %v357 = vsel %vm278, %v330, 0.0
  %v358 = vadd.f32 %v356, %v357
  %v359 = vsel %vm278, %v331, 0.0
  %v360 = vadd.f32 %v358, %v359
  %v361 = vsel %vm278, %v332, 0.0
  %v362 = vadd.f32 %v360, %v361
  %v363 = vsel %vm278, %v333, 0.0
  %v364 = vadd.f32 %v362, %v363
  %v365 = vrot.slane %v364, 4
  %v366 = vadd.f32 %v364, %v365
  %v367 = vrot.slane %v366, 2
  %v368 = vadd.f32 %v366, %v367
  %v369 = vrot.slane %v368, 1
  %v370 = vadd.f32 %v368, %v369
  %371 = vst.msk [vmem:[%s3 + $0x1] sm:$0x1] %vm316, %v370
  // Predicated region
  $region10: #{bottleneck_forward.10} parent=0 // pred_check
    _
  $region11: #{bottleneck_forward.10} parent=0 // pred_check_branch
    %373 = sbr.rel (0) target = $region13
  $region12: #{bottleneck_forward.10} parent=0 // pred_region
    _
  $region13: #{bottleneck_forward.10} parent=0 // pred_fallthru
    _
  // Predicated region
  $region14: #{bottleneck_forward.10} parent=0 // pred_check
    _
  $region15: #{bottleneck_forward.10} parent=0 // pred_check_branch
    %375 = sbr.rel (0) target = $region17
  $region16: #{bottleneck_forward.10} parent=0 // pred_region
    _
  $region17: #{bottleneck_forward.10} parent=0 // pred_fallthru
    _
  // Predicated region
  $region18: #{bottleneck_forward.10} parent=0 // pred_check
    _
  $region19: #{bottleneck_forward.10} parent=0 // pred_check_branch
    %377 = sbr.rel (0) target = $region21
  $region20: #{bottleneck_forward.10} parent=0 // pred_region
    _
  $region21: #{bottleneck_forward.10} parent=0 // pred_fallthru
    _
  // Predicated region
  $region22: #{bottleneck_forward.10} parent=0 // pred_check
    _
  $region23: #{bottleneck_forward.10} parent=0 // pred_check_branch
    %379 = sbr.rel (0) target = $region25
  $region24: #{bottleneck_forward.10} parent=0 // pred_region
    _
  $region25: #{bottleneck_forward.10} parent=0 // pred_fallthru
    _

// kernel: bottleneck_forward.11
$region0: #{bottleneck_forward.11}
  #allocation0 [shape = 'u32[]', space=smem, size = 0x4, offset = 0x4, fixed_abs, tag = 'smem constant byte address 0x4 - core index']
  #allocation1 [shape = 'u32[144,128]{1,0:T(1,128)}', space=vmem, size = 0x12000, scoped, tag = 'internal scratch']
  %s0 = inlined_call_operand.vmem [shape: bf16[128,32], index: 0, kind: input, shape index: {}]
  %s1 = inlined_call_operand.vmem [shape: f32[1,32], index: 1, kind: input, shape index: {}]
  %s2 = inlined_call_operand.vmem [shape: f32[1,32], index: 2, kind: input, shape index: {}]
  %s3 = inlined_call_operand.vmem [shape: bf16[128,32], index: 3, kind: input, shape index: {}]
  %s4 = inlined_call_operand.vmem [shape: f32[1,32], index: 4, kind: input, shape index: {}]
  %s5 = inlined_call_operand.vmem [shape: f32[1,32], index: 5, kind: input, shape index: {}]
  %s6 = inlined_call_operand.hbm [shape: f32[128,32], index: 6, kind: output, shape index: {}]
  %s7 = sld [smem:[#allocation0]]
  $region34: #{bottleneck_forward.11} parent=0
    _
  %s9 = ssub.s32 1, %s7
  %s10 = scalar_select 0, %s9, %s7
  $region1: #{bottleneck_forward.11} parent=0
    #allocation2 [shape = 'u8[65536]{0}', space=vmem, size = 0x10000, scoped, tag = 'output window, operand 0, single buffered']
    #allocation3 [shape = 's32[1]{0}', space=sflag, size = 0x4, scoped, tag = 'scoped memory for bottleneck_forward.11']
    %11 = vsyncpa [#allocation3], 0
    // Predicated region
    $region2: #{bottleneck_forward.11} parent=1 // pred_check
      _
    $region3: #{bottleneck_forward.11} parent=1 // pred_check_branch
      %13 = sbr.rel (0) target = $region5
    $region4: #{bottleneck_forward.11} parent=1 // pred_region
      _
    $region5: #{bottleneck_forward.11} parent=1 // pred_fallthru
      _
    // Predicated region
    $region6: #{bottleneck_forward.11} parent=1 // pred_check
      _
    $region7: #{bottleneck_forward.11} parent=1 // pred_check_branch
      %15 = sbr.rel (0) target = $region9
    $region8: #{bottleneck_forward.11} parent=1 // pred_region
      _
    $region9: #{bottleneck_forward.11} parent=1 // pred_fallthru
      _
    // Predicated region
    $region10: #{bottleneck_forward.11} parent=1 // pred_check
      _
    $region11: #{bottleneck_forward.11} parent=1 // pred_check_branch
      %17 = sbr.rel (0) target = $region13
    $region12: #{bottleneck_forward.11} parent=1 // pred_region
      _
    $region13: #{bottleneck_forward.11} parent=1 // pred_fallthru
      _
    // Predicated region
    $region14: #{bottleneck_forward.11} parent=1 // pred_check
      _
    $region15: #{bottleneck_forward.11} parent=1 // pred_check_branch
      %19 = sbr.rel (0) target = $region17
    $region16: #{bottleneck_forward.11} parent=1 // pred_region
      _
    $region17: #{bottleneck_forward.11} parent=1 // pred_fallthru
      _
    // Predicated region
    $region18: #{bottleneck_forward.11} parent=1 // pred_check
      _
    $region19: #{bottleneck_forward.11} parent=1 // pred_check_branch
      %21 = sbr.rel (0) target = $region21
    $region20: #{bottleneck_forward.11} parent=1 // pred_region
      _
    $region21: #{bottleneck_forward.11} parent=1 // pred_fallthru
      _
    // Predicated region
    $region22: #{bottleneck_forward.11} parent=1 // pred_check
      _
    $region23: #{bottleneck_forward.11} parent=1 // pred_check_branch
      %23 = sbr.rel (0) target = $region25
    $region24: #{bottleneck_forward.11} parent=1 // pred_region
      _
    $region25: #{bottleneck_forward.11} parent=1 // pred_fallthru
      _
    %v24 = vld [vmem:[%s0] sm:$0xf]
    %v25 = vld [vmem:[%s0 + $0x4] sm:$0xf]
    %v26 = vld [vmem:[%s0 + $0x8] sm:$0xf]
    %v27 = vld [vmem:[%s0 + $0xc] sm:$0xf]
    %v28 = vld [vmem:[%s0 + $0x10] sm:$0xf]
    %v29 = vld [vmem:[%s0 + $0x14] sm:$0xf]
    %v30 = vld [vmem:[%s0 + $0x18] sm:$0xf]
    %v31 = vld [vmem:[%s0 + $0x1c] sm:$0xf]
    %v32 = vld [vmem:[%s0 + $0x20] sm:$0xf]
    %v33 = vld [vmem:[%s0 + $0x24] sm:$0xf]
    %v34 = vld [vmem:[%s0 + $0x28] sm:$0xf]
    %v35 = vld [vmem:[%s0 + $0x2c] sm:$0xf]
    %v36 = vld [vmem:[%s0 + $0x30] sm:$0xf]
    %v37 = vld [vmem:[%s0 + $0x34] sm:$0xf]
    %v38 = vld [vmem:[%s0 + $0x38] sm:$0xf]
    %v39 = vld [vmem:[%s0 + $0x3c] sm:$0xf]
    %v40 = vunpack.c.l.bf16 %v24
    %v41 = vunpack.c.l.bf16 %v25
    %v42 = vunpack.c.l.bf16 %v26
    %v43 = vunpack.c.l.bf16 %v27
    %v44 = vunpack.c.l.bf16 %v28
    %v45 = vunpack.c.l.bf16 %v29
    %v46 = vunpack.c.l.bf16 %v30
    %v47 = vunpack.c.l.bf16 %v31
    %v48 = vunpack.c.l.bf16 %v32
    %v49 = vunpack.c.l.bf16 %v33
    %v50 = vunpack.c.l.bf16 %v34
    %v51 = vunpack.c.l.bf16 %v35
    %v52 = vunpack.c.l.bf16 %v36
    %v53 = vunpack.c.l.bf16 %v37
    %v54 = vunpack.c.l.bf16 %v38
    %v55 = vunpack.c.l.bf16 %v39
    %v56 = vld [vmem:[%s1] sm:$0x1]
    %v58 = vlaneseq
    %v59 = vshrl.u32 %v58, 7
    %v60 = vsub.s32 0, %v59
    %v61 = vrot.slane %v56, %v60
    %v63 = vmul.f32 %v40, %v61
    %v64 = vmul.f32 %v41, %v61
    %v65 = vmul.f32 %v42, %v61
    %v66 = vmul.f32 %v43, %v61
    %v67 = vmul.f32 %v44, %v61
    %v68 = vmul.f32 %v45, %v61
    %v69 = vmul.f32 %v46, %v61
    %v70 = vmul.f32 %v47, %v61
    %v71 = vmul.f32 %v48, %v61
    %v72 = vmul.f32 %v49, %v61
    %v73 = vmul.f32 %v50, %v61
    %v74 = vmul.f32 %v51, %v61
    %v75 = vmul.f32 %v52, %v61
    %v76 = vmul.f32 %v53, %v61
    %v77 = vmul.f32 %v54, %v61
    %v78 = vmul.f32 %v55, %v61
    %v79 = vld [vmem:[%s2] sm:$0x1]
    %v81 = vlaneseq
    %v82 = vshrl.u32 %v81, 7
    %v83 = vsub.s32 0, %v82
    %v84 = vrot.slane %v79, %v83
    %v86 = vadd.f32 %v63, %v84
    %v87 = vadd.f32 %v64, %v84
    %v88 = vadd.f32 %v65, %v84
    %v89 = vadd.f32 %v66, %v84
    %v90 = vadd.f32 %v67, %v84
    %v91 = vadd.f32 %v68, %v84
    %v92 = vadd.f32 %v69, %v84
    %v93 = vadd.f32 %v70, %v84
    %v94 = vadd.f32 %v71, %v84
    %v95 = vadd.f32 %v72, %v84
    %v96 = vadd.f32 %v73, %v84
    %v97 = vadd.f32 %v74, %v84
    %v98 = vadd.f32 %v75, %v84
    %v99 = vadd.f32 %v76, %v84
    %v100 = vadd.f32 %v77, %v84
    %v101 = vadd.f32 %v78, %v84
    %v102 = vld [vmem:[%s3] sm:$0xf]
    %v103 = vld [vmem:[%s3 + $0x4] sm:$0xf]
    %v104 = vld [vmem:[%s3 + $0x8] sm:$0xf]
    %v105 = vld [vmem:[%s3 + $0xc] sm:$0xf]
    %v106 = vld [vmem:[%s3 + $0x10] sm:$0xf]
    %v107 = vld [vmem:[%s3 + $0x14] sm:$0xf]
    %v108 = vld [vmem:[%s3 + $0x18] sm:$0xf]
    %v109 = vld [vmem:[%s3 + $0x1c] sm:$0xf]
    %v110 = vld [vmem:[%s3 + $0x20] sm:$0xf]
    %v111 = vld [vmem:[%s3 + $0x24] sm:$0xf]
    %v112 = vld [vmem:[%s3 + $0x28] sm:$0xf]
    %v113 = vld [vmem:[%s3 + $0x2c] sm:$0xf]
    %v114 = vld [vmem:[%s3 + $0x30] sm:$0xf]
    %v115 = vld [vmem:[%s3 + $0x34] sm:$0xf]
    %v116 = vld [vmem:[%s3 + $0x38] sm:$0xf]
    %v117 = vld [vmem:[%s3 + $0x3c] sm:$0xf]
    %v118 = vunpack.c.l.bf16 %v102
    %v119 = vunpack.c.l.bf16 %v103
    %v120 = vunpack.c.l.bf16 %v104
    %v121 = vunpack.c.l.bf16 %v105
    %v122 = vunpack.c.l.bf16 %v106
    %v123 = vunpack.c.l.bf16 %v107
    %v124 = vunpack.c.l.bf16 %v108
    %v125 = vunpack.c.l.bf16 %v109
    %v126 = vunpack.c.l.bf16 %v110
    %v127 = vunpack.c.l.bf16 %v111
    %v128 = vunpack.c.l.bf16 %v112
    %v129 = vunpack.c.l.bf16 %v113
    %v130 = vunpack.c.l.bf16 %v114
    %v131 = vunpack.c.l.bf16 %v115
    %v132 = vunpack.c.l.bf16 %v116
    %v133 = vunpack.c.l.bf16 %v117
    %v134 = vld [vmem:[%s4] sm:$0x1]
    %v136 = vlaneseq
    %v137 = vshrl.u32 %v136, 7
    %v138 = vsub.s32 0, %v137
    %v139 = vrot.slane %v134, %v138
    %v141 = vmul.f32 %v118, %v139
    %v142 = vmul.f32 %v119, %v139
    %v143 = vmul.f32 %v120, %v139
    %v144 = vmul.f32 %v121, %v139
    %v145 = vmul.f32 %v122, %v139
    %v146 = vmul.f32 %v123, %v139
    %v147 = vmul.f32 %v124, %v139
    %v148 = vmul.f32 %v125, %v139
    %v149 = vmul.f32 %v126, %v139
    %v150 = vmul.f32 %v127, %v139
    %v151 = vmul.f32 %v128, %v139
    %v152 = vmul.f32 %v129, %v139
    %v153 = vmul.f32 %v130, %v139
    %v154 = vmul.f32 %v131, %v139
    %v155 = vmul.f32 %v132, %v139
    %v156 = vmul.f32 %v133, %v139
    %v157 = vld [vmem:[%s5] sm:$0x1]
    %v159 = vlaneseq
    %v160 = vshrl.u32 %v159, 7
    %v161 = vsub.s32 0, %v160
    %v162 = vrot.slane %v157, %v161
    %v164 = vadd.f32 %v141, %v162
    %v165 = vadd.f32 %v142, %v162
    %v166 = vadd.f32 %v143, %v162
    %v167 = vadd.f32 %v144, %v162
    %v168 = vadd.f32 %v145, %v162
    %v169 = vadd.f32 %v146, %v162
    %v170 = vadd.f32 %v147, %v162
    %v171 = vadd.f32 %v148, %v162
    %v172 = vadd.f32 %v149, %v162
    %v173 = vadd.f32 %v150, %v162
    %v174 = vadd.f32 %v151, %v162
    %v175 = vadd.f32 %v152, %v162
    %v176 = vadd.f32 %v153, %v162
    %v177 = vadd.f32 %v154, %v162
    %v178 = vadd.f32 %v155, %v162
    %v179 = vadd.f32 %v156, %v162
    %v180 = vadd.f32 %v86, %v164
    %v181 = vadd.f32 %v87, %v165
    %v182 = vadd.f32 %v88, %v166
    %v183 = vadd.f32 %v89, %v167
    %v184 = vadd.f32 %v90, %v168
    %v185 = vadd.f32 %v91, %v169
    %v186 = vadd.f32 %v92, %v170
    %v187 = vadd.f32 %v93, %v171
    %v188 = vadd.f32 %v94, %v172
    %v189 = vadd.f32 %v95, %v173
    %v190 = vadd.f32 %v96, %v174
    %v191 = vadd.f32 %v97, %v175
    %v192 = vadd.f32 %v98, %v176
    %v193 = vadd.f32 %v99, %v177
    %v194 = vadd.f32 %v100, %v178
    %v195 = vadd.f32 %v101, %v179
    %v196 = vmax.f32 %v180, 0.0
    %v197 = vmax.f32 %v181, 0.0
    %v198 = vmax.f32 %v182, 0.0
    %v199 = vmax.f32 %v183, 0.0
    %v200 = vmax.f32 %v184, 0.0
    %v201 = vmax.f32 %v185, 0.0
    %v202 = vmax.f32 %v186, 0.0
    %v203 = vmax.f32 %v187, 0.0
    %v204 = vmax.f32 %v188, 0.0
    %v205 = vmax.f32 %v189, 0.0
    %v206 = vmax.f32 %v190, 0.0
    %v207 = vmax.f32 %v191, 0.0
    %v208 = vmax.f32 %v192, 0.0
    %v209 = vmax.f32 %v193, 0.0
    %v210 = vmax.f32 %v194, 0.0
    %v211 = vmax.f32 %v195, 0.0
    %vm212 = vcmask 261120
    %213 = vst.msk [vmem:[#allocation2] sm:$0xff] %vm212, %v196
    %214 = vst.msk [vmem:[#allocation2 + $0x8] sm:$0xff] %vm212, %v197
    %215 = vst.msk [vmem:[#allocation2 + $0x10] sm:$0xff] %vm212, %v198
    %216 = vst.msk [vmem:[#allocation2 + $0x18] sm:$0xff] %vm212, %v199
    %217 = vst.msk [vmem:[#allocation2 + $0x20] sm:$0xff] %vm212, %v200
    %218 = vst.msk [vmem:[#allocation2 + $0x28] sm:$0xff] %vm212, %v201
    %219 = vst.msk [vmem:[#allocation2 + $0x30] sm:$0xff] %vm212, %v202
    %220 = vst.msk [vmem:[#allocation2 + $0x38] sm:$0xff] %vm212, %v203
    %221 = vst.msk [vmem:[#allocation2 + $0x40] sm:$0xff] %vm212, %v204
    %222 = vst.msk [vmem:[#allocation2 + $0x48] sm:$0xff] %vm212, %v205
    %223 = vst.msk [vmem:[#allocation2 + $0x50] sm:$0xff] %vm212, %v206
    %224 = vst.msk [vmem:[#allocation2 + $0x58] sm:$0xff] %vm212, %v207
    %225 = vst.msk [vmem:[#allocation2 + $0x60] sm:$0xff] %vm212, %v208
    %226 = vst.msk [vmem:[#allocation2 + $0x68] sm:$0xff] %vm212, %v209
    %227 = vst.msk [vmem:[#allocation2 + $0x70] sm:$0xff] %vm212, %v210
    %228 = vst.msk [vmem:[#allocation2 + $0x78] sm:$0xff] %vm212, %v211
    // Predicated region
    $region26: #{bottleneck_forward.11} parent=1 // pred_check
      _
    $region27: #{bottleneck_forward.11} parent=1 // pred_check_branch
      %230 = sbr.rel (0) target = $region29
    $region28: #{bottleneck_forward.11} parent=1 // pred_region
      %s232 = ssub.s32 2048, 2048
      %233 = vsyncadd [#allocation3], %s232
      %s234 = sshll.u32 [#allocation2], 4
      %s235 = int_to_ptr.vmem [resolvable:$true] %s234
      %240 = dma.vmem_to_hbm [thread:$0]  %s235, 2048, %s6, [#allocation3], 128, 128, 8
    $region29: #{bottleneck_forward.11} parent=1 // pred_fallthru
      _
    // Predicated region
    $region30: #{bottleneck_forward.11} parent=1 // pred_check
      _
    $region31: #{bottleneck_forward.11} parent=1 // pred_check_branch
      %242 = sbr.rel (0) target = $region33
    $region32: #{bottleneck_forward.11} parent=1 // pred_region
      %243 = dma.done [#allocation3], 2048
    $region33: #{bottleneck_forward.11} parent=1 // pred_fallthru
      _
    %244 = vsyncpa [#allocation3], 1

</llo_original>
